<compile_context>
chip_gen: v7x
topology: tpu7x:2x2x1
jax: 0.10.0
libtpu: 0.0.40
codegen_flags: <defaults>
</compile_context>

<pallas_src>
import functools

import jax
import jax.numpy as jnp
from jax.experimental import pallas as pl
from jax.experimental.pallas import tpu as pltpu

_NEG_SLOPE = 0.2
_EPS = 1e-5


def _round_up(x, m):
    return (x + m - 1) // m * m


def _pad_axis(a, axis, target):
    pad = target - a.shape[axis]
    if pad == 0:
        return a
    widths = [(0, 0)] * a.ndim
    widths[axis] = (0, pad)
    return jnp.pad(a, widths)


@functools.lru_cache(maxsize=None)
def _vmem_limit_bytes():
    """Generation-aware scoped-VMEM budget: 3/4 of physical, capped at 96 MiB."""
    phys = 64 * 1024 * 1024           # conservative fallback (v7x-sized)
    try:
        phys = int(pltpu.get_tpu_info().vmem_capacity_bytes)
    except Exception:
        pass
    return max(32 * 1024 * 1024, min(phys * 3 // 4, 96 * 1024 * 1024))


def _plan_tiles(P, k_pad, c_pad, N, vmem_limit):
    """Pick (c_tile, tile_p, p_pad) for one conv layer."""
    # Output-channel split only when batch alone cannot feed both TensorCores
    # (v7x megacore at N == 1); otherwise keep Cout whole so the patch tile is
    # streamed from HBM exactly once.
    c_tile = c_pad // 2 if (N == 1 and c_pad >= 256) else c_pad
    # Adaptive P tile: ~vmem/8 bytes per bf16 patch block, clamped to [256, 2048].
    budget = max(vmem_limit // 8, 1 << 20)
    cap = budget // (k_pad * 2)
    cap = max(256, min(2048, cap // 128 * 128))
    tile_p = min(cap, _round_up(P, 16))
    p_pad = _round_up(P, tile_p)
    return c_tile, tile_p, p_pad


# ---------------------------------------------------------------------------
# Kernel 1: fused matmul + bias (+ LeakyReLU) -- layers without InstanceNorm
# ---------------------------------------------------------------------------
def _matmul_bias_act_kernel(p_ref, w_ref, b_ref, o_ref, *, do_act):
    y = jnp.dot(p_ref[0], w_ref[...], preferred_element_type=jnp.float32)
    y = y + b_ref[...]
    if do_act:
        y = jnp.where(y >= 0, y, _NEG_SLOPE * y)
    o_ref[0] = y.astype(o_ref.dtype)


# ---------------------------------------------------------------------------
# Kernel 2: fully fused matmul + bias + InstanceNorm + LeakyReLU
# (used when the whole per-sample spatial extent fits one tile: no pre-norm
#  activation ever touches HBM and the second pallas_call disappears)
# ---------------------------------------------------------------------------
def _fused_matmul_in_act_kernel(p_ref, w_ref, b_ref, o_ref, *, p_valid, do_act):
    y = jnp.dot(p_ref[0], w_ref[...], preferred_element_type=jnp.float32)
    y = y + b_ref[...]                               # (p_pad, c_tile) f32
    if p_valid == y.shape[0]:
        ym = y
    else:
        row = jax.lax.broadcasted_iota(jnp.int32, y.shape, 0)
        ym = jnp.where(row < p_valid, y, 0.0)        # exclude padded rows from stats
    inv_p = 1.0 / float(p_valid)
    mean = jnp.sum(ym, axis=0, keepdims=True) * inv_p
    var = jnp.maximum(jnp.sum(ym * ym, axis=0, keepdims=True) * inv_p - mean * mean, 0.0)
    y = (y - mean) * jax.lax.rsqrt(var + _EPS)
    if do_act:
        y = jnp.where(y >= 0, y, _NEG_SLOPE * y)
    o_ref[0] = y.astype(o_ref.dtype)


# ---------------------------------------------------------------------------
# Kernel 3a (fallback for large P): matmul + bias, accumulate per-(sample,
# channel) sum / sum-of-squares across the "arbitrary" P-tile axis into
# resident f32 output blocks.  Padded-row masking only on the last P tile.
# ---------------------------------------------------------------------------
def _matmul_bias_stats_kernel(p_ref, w_ref, b_ref, y_ref, sum_ref, sq_ref, *,
                              tile_p, p_valid, num_pt):
    pt = pl.program_id(2)

    @pl.when(pt == 0)
    def _():
        sum_ref[...] = jnp.zeros_like(sum_ref)
        sq_ref[...] = jnp.zeros_like(sq_ref)

    y = jnp.dot(p_ref[0], w_ref[...], preferred_element_type=jnp.float32)
    y = y + b_ref[...]                               # (tile_p, c_tile) f32
    y_ref[0] = y.astype(y_ref.dtype)

    def _acc(v):
        sum_ref[0] = sum_ref[0] + jnp.sum(v, axis=0, keepdims=True)
        sq_ref[0] = sq_ref[0] + jnp.sum(v * v, axis=0, keepdims=True)

    if p_valid % tile_p == 0:
        _acc(y)                                      # no padded rows anywhere
    else:
        @pl.when(pt < num_pt - 1)
        def _():
            _acc(y)                                  # interior tiles: no mask work

        @pl.when(pt == num_pt - 1)
        def _():
            row = (jax.lax.broadcasted_iota(jnp.int32, y.shape, 0)
                   + (num_pt - 1) * tile_p)
            _acc(jnp.where(row < p_valid, y, 0.0))   # only last tile pays the mask


# ---------------------------------------------------------------------------
# Kernel 3b: finalize InstanceNorm (+ LeakyReLU) over the pre-norm tiles
# ---------------------------------------------------------------------------
def _norm_act_kernel(y_ref, sum_ref, sq_ref, o_ref, *, p_valid, do_act):
    y = y_ref[0].astype(jnp.float32)
    inv_p = 1.0 / float(p_valid)
    mean = sum_ref[0] * inv_p
    var = jnp.maximum(sq_ref[0] * inv_p - mean * mean, 0.0)
    y = (y - mean) * jax.lax.rsqrt(var + _EPS)
    if do_act:
        y = jnp.where(y >= 0, y, _NEG_SLOPE * y)
    o_ref[0] = y.astype(o_ref.dtype)


# ---------------------------------------------------------------------------
# Plain-JAX glue: padding + im2col patch extraction (pure data rearrangement)
# ---------------------------------------------------------------------------
def _im2col(x_nhwc, kh, kw, stride, pad):
    # TODO(synk): fuse patch extraction into the Pallas call (stride-phase
    # decomposed NHWC slabs + KH*KW accumulating taps via manual halo DMA) to
    # avoid round-tripping the 4-16x expanded patch tensor through HBM on the
    # mem-bound early layers and the K=16*Cin final layers.
    x = jnp.pad(x_nhwc, ((0, 0), (pad, pad), (pad, pad), (0, 0)))
    N, H, W, C = x.shape
    oh = (H - kh) // stride + 1
    ow = (W - kw) // stride + 1
    cols = []
    for i in range(kh):
        for j in range(kw):
            cols.append(x[:, i:i + stride * oh:stride, j:j + stride * ow:stride, :])
    # (N, oh, ow, kh*kw, C) -> (N, oh*ow, kh*kw*C); channel fastest within a patch.
    p = jnp.stack(cols, axis=3).reshape(N, oh * ow, kh * kw * C)
    return p, oh, ow


# ---------------------------------------------------------------------------
# One conv layer: pad to lane-friendly shapes, run the Pallas call(s), slice.
# ---------------------------------------------------------------------------
def _conv_layer(x_nhwc, w_pt, bias, *, stride, do_norm, do_act, out_dtype):
    N = x_nhwc.shape[0]
    cout, cin, kh, kw = w_pt.shape
    patches, oh, ow = _im2col(x_nhwc, kh, kw, stride, pad=1)
    P = oh * ow
    K = kh * kw * cin

    vmem_limit = _vmem_limit_bytes()
    k_pad = _round_up(K, 128)                 # lane-dense contraction
    c_pad = _round_up(cout, 128)              # lane-dense output (Cout=1 case too)
    c_tile, tile_p, p_pad = _plan_tiles(P, k_pad, c_pad, N, vmem_limit)
    n_ct = c_pad // c_tile
    n_pt = p_pad // tile_p

    patches = _pad_axis(_pad_axis(patches, 2, k_pad), 1, p_pad).astype(jnp.bfloat16)
    w_mat = jnp.transpose(w_pt, (2, 3, 1, 0)).reshape(K, cout)   # (KH,KW,Cin,Cout)
    w_mat = _pad_axis(_pad_axis(w_mat, 0, k_pad), 1, c_pad).astype(jnp.bfloat16)
    b_row = _pad_axis(bias.reshape(1, cout).astype(jnp.float32), 1, c_pad)

    # TODO(synk): pipeline_mode=pl.Buffered(1) on the resident weight/bias specs
    # would save one weight-sized double-buffer (~2 MiB at K=8192) -- most useful
    # on v7x's 64 MiB VMEM.
    # TODO(synk): the final Cout=1 conv still runs as a 1->128 padded matmul; a
    # tap-accumulating channel reduction would avoid the 127/128 padding waste.

    if do_norm and n_pt == 1:
        # Fully fused conv + bias + InstanceNorm + LeakyReLU.
        out = pl.pallas_call(
            functools.partial(_fused_matmul_in_act_kernel, p_valid=P, do_act=do_act),
            out_shape=jax.ShapeDtypeStruct((N, p_pad, c_pad), out_dtype),
            grid=(N, n_ct),
            in_specs=[pl.BlockSpec((1, p_pad, k_pad), lambda n, c: (n, 0, 0)),
                      pl.BlockSpec((k_pad, c_tile), lambda n, c: (0, c)),
                      pl.BlockSpec((1, c_tile), lambda n, c: (0, c))],
            out_specs=pl.BlockSpec((1, p_pad, c_tile), lambda n, c: (n, 0, c)),
            compiler_params=pltpu.CompilerParams(
                dimension_semantics=("parallel", "parallel"),
                vmem_limit_bytes=vmem_limit),
        )(patches, w_mat, b_row)
    elif do_norm:
        # Pass 1: matmul + bias + stats accumulation over P tiles.
        patch_spec = pl.BlockSpec((1, tile_p, k_pad), lambda n, c, p: (n, p, 0))
        w_spec = pl.BlockSpec((k_pad, c_tile), lambda n, c, p: (0, c))
        b_spec = pl.BlockSpec((1, c_tile), lambda n, c, p: (0, c))
        y_spec = pl.BlockSpec((1, tile_p, c_tile), lambda n, c, p: (n, p, c))
        stat_spec = pl.BlockSpec((1, 1, c_tile), lambda n, c, p: (n, 0, c))

        y_pre, ysum, ysq = pl.pallas_call(
            functools.partial(_matmul_bias_stats_kernel,
                              tile_p=tile_p, p_valid=P, num_pt=n_pt),
            out_shape=(
                jax.ShapeDtypeStruct((N, p_pad, c_pad), jnp.bfloat16),
                jax.ShapeDtypeStruct((N, 1, c_pad), jnp.float32),
                jax.ShapeDtypeStruct((N, 1, c_pad), jnp.float32),
            ),
            grid=(N, n_ct, n_pt),
            in_specs=[patch_spec, w_spec, b_spec],
            out_specs=(y_spec, stat_spec, stat_spec),
            compiler_params=pltpu.CompilerParams(
                dimension_semantics=("parallel", "parallel", "arbitrary"),
                vmem_limit_bytes=vmem_limit),
        )(patches, w_mat, b_row)

        # Pass 2: normalize + LeakyReLU with a decoupled, larger P tile
        # (pure mem-bound: fewer, bigger grid steps amortize per-step overhead).
        f = max(1, min(n_pt, 2048 // tile_p))
        while n_pt % f:
            f -= 1
        tile_p2 = tile_p * f
        n_pt2 = p_pad // tile_p2

        out = pl.pallas_call(
            functools.partial(_norm_act_kernel, p_valid=P, do_act=do_act),
            out_shape=jax.ShapeDtypeStruct((N, p_pad, c_pad), out_dtype),
            grid=(N, n_ct, n_pt2),
            in_specs=[pl.BlockSpec((1, tile_p2, c_tile), lambda n, c, p: (n, p, c)),
                      pl.BlockSpec((1, 1, c_tile), lambda n, c, p: (n, 0, c)),
                      pl.BlockSpec((1, 1, c_tile), lambda n, c, p: (n, 0, c))],
            out_specs=pl.BlockSpec((1, tile_p2, c_tile), lambda n, c, p: (n, p, c)),
            compiler_params=pltpu.CompilerParams(
                dimension_semantics=("parallel", "parallel", "parallel"),
                vmem_limit_bytes=vmem_limit),
        )(y_pre, ysum, ysq)
    else:
        out = pl.pallas_call(
            functools.partial(_matmul_bias_act_kernel, do_act=do_act),
            out_shape=jax.ShapeDtypeStruct((N, p_pad, c_pad), out_dtype),
            grid=(N, n_ct, n_pt),
            in_specs=[pl.BlockSpec((1, tile_p, k_pad), lambda n, c, p: (n, p, 0)),
                      pl.BlockSpec((k_pad, c_tile), lambda n, c, p: (0, c)),
                      pl.BlockSpec((1, c_tile), lambda n, c, p: (0, c))],
            out_specs=pl.BlockSpec((1, tile_p, c_tile), lambda n, c, p: (n, p, c)),
            compiler_params=pltpu.CompilerParams(
                dimension_semantics=("parallel", "parallel", "parallel"),
                vmem_limit_bytes=vmem_limit),
        )(patches, w_mat, b_row)

    return out[:, :P, :cout].reshape(N, oh, ow, cout)


# ---------------------------------------------------------------------------
# Parameter construction (deterministic, matches nn.Conv2d shapes / layer plan)
# ---------------------------------------------------------------------------
def make_params(in_nc, nf=64, n_layers=3, seed=0):
    key = jax.random.PRNGKey(seed)
    layers = []

    def conv_param(key, cin, cout):
        kw_, kb_ = jax.random.split(key)
        w = jax.random.normal(kw_, (cout, cin, 4, 4), jnp.float32) * 0.05
        b = jax.random.normal(kb_, (cout,), jnp.float32) * 0.05
        return w, b

    key, sub = jax.random.split(key)
    w, b = conv_param(sub, in_nc, nf)
    layers.append(dict(w=w, b=b, stride=2, norm=False, act=True))

    nf_mult = 1
    for n in range(1, n_layers):
        nf_mult_prev = nf_mult
        nf_mult = min(2 ** n, 8)
        key, sub = jax.random.split(key)
        w, b = conv_param(sub, nf * nf_mult_prev, nf * nf_mult)
        layers.append(dict(w=w, b=b, stride=2, norm=True, act=True))

    nf_mult_prev = nf_mult
    nf_mult = min(2 ** n_layers, 8)
    key, sub = jax.random.split(key)
    w, b = conv_param(sub, nf * nf_mult_prev, nf * nf_mult)
    layers.append(dict(w=w, b=b, stride=1, norm=True, act=True))

    key, sub = jax.random.split(key)
    w, b = conv_param(sub, nf * nf_mult, 1)
    layers.append(dict(w=w, b=b, stride=1, norm=False, act=False))
    return layers


# ---------------------------------------------------------------------------
# Full forward pass
# ---------------------------------------------------------------------------
def discriminator_nlayer_forward(x_nchw, layers):
    x = jnp.transpose(x_nchw, (0, 2, 3, 1)).astype(jnp.bfloat16)  # NCHW -> NHWC
    last = len(layers) - 1
    for idx, lyr in enumerate(layers):
        x = _conv_layer(
            x, lyr["w"], lyr["b"],
            stride=lyr["stride"], do_norm=lyr["norm"], do_act=lyr["act"],
            out_dtype=jnp.float32 if idx == last else jnp.bfloat16)
    return jnp.transpose(x, (0, 3, 1, 2)).astype(jnp.float32)     # NHWC -> NCHW


if __name__ == "__main__":
    # Spatial must be >= 32 for n_layers=3 (three stride-2 convs + two k=4 p=1 convs).
    batch, in_nc, spatial = 2, 4, 32
    nf, n_layers = 8, 3

    key = jax.random.PRNGKey(0)
    x = jax.random.normal(key, (batch, in_nc, spatial, spatial), jnp.float32)

    layers = make_params(in_nc, nf=nf, n_layers=n_layers, seed=0)

    fwd = jax.jit(lambda inp: discriminator_nlayer_forward(inp, layers))
    out = fwd(x)
    jax.block_until_ready(out)

    # Expected PatchGAN output: (batch, 1, 2, 2) for 32x32 input with n_layers=3.
    assert out.shape == (batch, 1, 2, 2), out.shape
    assert jnp.all(jnp.isfinite(out))
    print("KERNEL_OK")
</pallas_src>

<mosaic_0001>
module attributes {stable_mosaic.version = 11 : i64} {
  func.func @_matmul_bias_act_kernel(%arg0: i32, %arg1: i32, %arg2: i32, %arg3: memref<1x256x128xbf16, #tpu.memory_space<vmem>>, %arg4: memref<128x128xbf16, #tpu.memory_space<vmem>>, %arg5: memref<1x128xf32, #tpu.memory_space<vmem>>, %arg6: memref<1x256x128xbf16, #tpu.memory_space<vmem>>) attributes {dimension_semantics = [#tpu.dimension_semantics<parallel>, #tpu.dimension_semantics<parallel>, #tpu.dimension_semantics<parallel>], iteration_bounds = array<i64: 2, 1, 1>, scalar_prefetch = 0 : i64, scratch_operands = 0 : i64, tpu.core_type = #tpu.core_type<tc>, window_params = [{transform_indices = @transform_0, window_bounds = array<i64: 1, 256, 128>}, {transform_indices = @transform_1, window_bounds = array<i64: 128, 128>}, {transform_indices = @transform_2, window_bounds = array<i64: 1, 128>}, {transform_indices = @transform_3, window_bounds = array<i64: 1, 256, 128>}]} {
    %c0 = arith.constant 0 : index
    %c0_0 = arith.constant 0 : index
    %c0_1 = arith.constant 0 : index
    %0 = vector.load %arg3[%c0, %c0_0, %c0_1] : memref<1x256x128xbf16, #tpu.memory_space<vmem>>, vector<1x256x128xbf16>
    %1 = vector.shape_cast %0 : vector<1x256x128xbf16> to vector<256x128xbf16>
    %c0_2 = arith.constant 0 : index
    %c0_3 = arith.constant 0 : index
    %2 = vector.load %arg4[%c0_2, %c0_3] : memref<128x128xbf16, #tpu.memory_space<vmem>>, vector<128x128xbf16>
    %cst = arith.constant dense<0.000000e+00> : vector<256x128xf32>
    %3 = tpu.matmul %1, %2, %cst {dimension_numbers = #tpu.dot_dimension_numbers<[1], [0], [0], [1], [0, 0, 1, 1], [], []>} : vector<256x128xbf16>, vector<128x128xbf16>, vector<256x128xf32> -> vector<256x128xf32>
    %c0_4 = arith.constant 0 : index
    %c0_5 = arith.constant 0 : index
    %4 = vector.load %arg5[%c0_4, %c0_5] : memref<1x128xf32, #tpu.memory_space<vmem>>, vector<1x128xf32>
    %5 = vector.broadcast %4 : vector<1x128xf32> to vector<256x128xf32>
    %6 = arith.addf %3, %5 : vector<256x128xf32>
    %cst_6 = arith.constant 0.000000e+00 : f32
    %7 = vector.broadcast %cst_6 : f32 to vector<256x128xf32>
    %8 = arith.cmpf oge, %6, %7 : vector<256x128xf32>
    %cst_7 = arith.constant 2.000000e-01 : f32
    %9 = vector.broadcast %cst_7 : f32 to vector<256x128xf32>
    %10 = arith.mulf %9, %6 : vector<256x128xf32>
    %11 = arith.select %8, %6, %10 : vector<256x128xi1>, vector<256x128xf32>
    %12 = arith.truncf %11 : vector<256x128xf32> to vector<256x128xbf16>
    %c0_8 = arith.constant 0 : index
    %c0_9 = arith.constant 0 : index
    %c0_10 = arith.constant 0 : index
    %13 = vector.load %arg6[%c0_8, %c0_9, %c0_10] : memref<1x256x128xbf16, #tpu.memory_space<vmem>>, vector<1x256x128xbf16>
    %14 = vector.shape_cast %13 : vector<1x256x128xbf16> to vector<256x128xbf16>
    %15 = vector.shape_cast %12 : vector<256x128xbf16> to vector<1x256x128xbf16>
    tpu.vector_store %arg6[%c0_8, %c0_9, %c0_10], %15 {strides = array<i32>} : memref<1x256x128xbf16, #tpu.memory_space<vmem>>, vector<1x256x128xbf16>,
    return
  }
  func.func @transform_0(%arg0: i32, %arg1: i32, %arg2: i32) -> (i32, i32, i32) {
    %c0_i32 = arith.constant 0 : i32
    %c0_i32_0 = arith.constant 0 : i32
    return %arg0, %arg2, %c0_i32 : i32, i32, i32
  }
  func.func @transform_1(%arg0: i32, %arg1: i32, %arg2: i32) -> (i32, i32) {
    %c0_i32 = arith.constant 0 : i32
    %c0_i32_0 = arith.constant 0 : i32
    return %c0_i32, %arg1 : i32, i32
  }
  func.func @transform_2(%arg0: i32, %arg1: i32, %arg2: i32) -> (i32, i32) {
    %c0_i32 = arith.constant 0 : i32
    %c0_i32_0 = arith.constant 0 : i32
    return %c0_i32, %arg1 : i32, i32
  }
  func.func @transform_3(%arg0: i32, %arg1: i32, %arg2: i32) -> (i32, i32, i32) {
    %c0_i32 = arith.constant 0 : i32
    return %arg0, %arg2, %arg1 : i32, i32, i32
  }
}

module attributes {stable_mosaic.version = 11 : i64} {
  func.func @_fused_matmul_in_act_kernel(%arg0: i32, %arg1: i32, %arg2: memref<1x64x128xbf16, #tpu.memory_space<vmem>>, %arg3: memref<128x128xbf16, #tpu.memory_space<vmem>>, %arg4: memref<1x128xf32, #tpu.memory_space<vmem>>, %arg5: memref<1x64x128xbf16, #tpu.memory_space<vmem>>) attributes {dimension_semantics = [#tpu.dimension_semantics<parallel>, #tpu.dimension_semantics<parallel>], iteration_bounds = array<i64: 2, 1>, scalar_prefetch = 0 : i64, scratch_operands = 0 : i64, tpu.core_type = #tpu.core_type<tc>, window_params = [{transform_indices = @transform_0, window_bounds = array<i64: 1, 64, 128>}, {transform_indices = @transform_1, window_bounds = array<i64: 128, 128>}, {transform_indices = @transform_2, window_bounds = array<i64: 1, 128>}, {transform_indices = @transform_3, window_bounds = array<i64: 1, 64, 128>}]} {
    %c0 = arith.constant 0 : index
    %c0_0 = arith.constant 0 : index
    %c0_1 = arith.constant 0 : index
    %0 = vector.load %arg2[%c0, %c0_0, %c0_1] : memref<1x64x128xbf16, #tpu.memory_space<vmem>>, vector<1x64x128xbf16>
    %1 = vector.shape_cast %0 : vector<1x64x128xbf16> to vector<64x128xbf16>
    %c0_2 = arith.constant 0 : index
    %c0_3 = arith.constant 0 : index
    %2 = vector.load %arg3[%c0_2, %c0_3] : memref<128x128xbf16, #tpu.memory_space<vmem>>, vector<128x128xbf16>
    %cst = arith.constant dense<0.000000e+00> : vector<64x128xf32>
    %3 = tpu.matmul %1, %2, %cst {dimension_numbers = #tpu.dot_dimension_numbers<[1], [0], [0], [1], [0, 0, 1, 1], [], []>} : vector<64x128xbf16>, vector<128x128xbf16>, vector<64x128xf32> -> vector<64x128xf32>
    %c0_4 = arith.constant 0 : index
    %c0_5 = arith.constant 0 : index
    %4 = vector.load %arg4[%c0_4, %c0_5] : memref<1x128xf32, #tpu.memory_space<vmem>>, vector<1x128xf32>
    %5 = vector.broadcast %4 : vector<1x128xf32> to vector<64x128xf32>
    %6 = arith.addf %3, %5 : vector<64x128xf32>
    %cst_6 = arith.constant dense<0.000000e+00> : vector<128xf32>
    %7 = vector.multi_reduction <add>, %6, %cst_6 [0] : vector<64x128xf32> to vector<128xf32>
    %8 = vector.shape_cast %7 : vector<128xf32> to vector<1x128xf32>
    %cst_7 = arith.constant 1.562500e-02 : f32
    %9 = vector.broadcast %cst_7 : f32 to vector<1x128xf32>
    %10 = arith.mulf %8, %9 : vector<1x128xf32>
    %11 = arith.mulf %6, %6 : vector<64x128xf32>
    %cst_8 = arith.constant dense<0.000000e+00> : vector<128xf32>
    %12 = vector.multi_reduction <add>, %11, %cst_8 [0] : vector<64x128xf32> to vector<128xf32>
    %13 = vector.shape_cast %12 : vector<128xf32> to vector<1x128xf32>
    %cst_9 = arith.constant 1.562500e-02 : f32
    %14 = vector.broadcast %cst_9 : f32 to vector<1x128xf32>
    %15 = arith.mulf %13, %14 : vector<1x128xf32>
    %16 = arith.mulf %10, %10 : vector<1x128xf32>
    %17 = arith.subf %15, %16 : vector<1x128xf32>
    %cst_10 = arith.constant 0.000000e+00 : f32
    %18 = vector.broadcast %cst_10 : f32 to vector<1x128xf32>
    %19 = arith.maximumf %17, %18 : vector<1x128xf32>
    %20 = vector.broadcast %10 : vector<1x128xf32> to vector<64x128xf32>
    %21 = arith.subf %6, %20 : vector<64x128xf32>
    %cst_11 = arith.constant 9.99999974E-6 : f32
    %22 = vector.broadcast %cst_11 : f32 to vector<1x128xf32>
    %23 = arith.addf %19, %22 : vector<1x128xf32>
    %24 = math.rsqrt %23 : vector<1x128xf32>
    %25 = vector.broadcast %24 : vector<1x128xf32> to vector<64x128xf32>
    %26 = arith.mulf %21, %25 : vector<64x128xf32>
    %cst_12 = arith.constant 0.000000e+00 : f32
    %27 = vector.broadcast %cst_12 : f32 to vector<64x128xf32>
    %28 = arith.cmpf oge, %26, %27 : vector<64x128xf32>
    %cst_13 = arith.constant 2.000000e-01 : f32
    %29 = vector.broadcast %cst_13 : f32 to vector<64x128xf32>
    %30 = arith.mulf %29, %26 : vector<64x128xf32>
    %31 = arith.select %28, %26, %30 : vector<64x128xi1>, vector<64x128xf32>
    %32 = arith.truncf %31 : vector<64x128xf32> to vector<64x128xbf16>
    %c0_14 = arith.constant 0 : index
    %c0_15 = arith.constant 0 : index
    %c0_16 = arith.constant 0 : index
    %33 = vector.load %arg5[%c0_14, %c0_15, %c0_16] : memref<1x64x128xbf16, #tpu.memory_space<vmem>>, vector<1x64x128xbf16>
    %34 = vector.shape_cast %33 : vector<1x64x128xbf16> to vector<64x128xbf16>
    %35 = vector.shape_cast %32 : vector<64x128xbf16> to vector<1x64x128xbf16>
    tpu.vector_store %arg5[%c0_14, %c0_15, %c0_16], %35 {strides = array<i32>} : memref<1x64x128xbf16, #tpu.memory_space<vmem>>, vector<1x64x128xbf16>,
    return
  }
  func.func @transform_0(%arg0: i32, %arg1: i32) -> (i32, i32, i32) {
    %c0_i32 = arith.constant 0 : i32
    %c0_i32_0 = arith.constant 0 : i32
    %c0_i32_1 = arith.constant 0 : i32
    return %arg0, %c0_i32, %c0_i32_0 : i32, i32, i32
  }
  func.func @transform_1(%arg0: i32, %arg1: i32) -> (i32, i32) {
    %c0_i32 = arith.constant 0 : i32
    %c0_i32_0 = arith.constant 0 : i32
    return %c0_i32, %arg1 : i32, i32
  }
  func.func @transform_2(%arg0: i32, %arg1: i32) -> (i32, i32) {
    %c0_i32 = arith.constant 0 : i32
    %c0_i32_0 = arith.constant 0 : i32
    return %c0_i32, %arg1 : i32, i32
  }
  func.func @transform_3(%arg0: i32, %arg1: i32) -> (i32, i32, i32) {
    %c0_i32 = arith.constant 0 : i32
    %c0_i32_0 = arith.constant 0 : i32
    return %arg0, %c0_i32, %arg1 : i32, i32, i32
  }
}

module attributes {stable_mosaic.version = 11 : i64} {
  func.func @_fused_matmul_in_act_kernel(%arg0: i32, %arg1: i32, %arg2: memref<1x16x256xbf16, #tpu.memory_space<vmem>>, %arg3: memref<256x128xbf16, #tpu.memory_space<vmem>>, %arg4: memref<1x128xf32, #tpu.memory_space<vmem>>, %arg5: memref<1x16x128xbf16, #tpu.memory_space<vmem>>) attributes {dimension_semantics = [#tpu.dimension_semantics<parallel>, #tpu.dimension_semantics<parallel>], iteration_bounds = array<i64: 2, 1>, scalar_prefetch = 0 : i64, scratch_operands = 0 : i64, tpu.core_type = #tpu.core_type<tc>, window_params = [{transform_indices = @transform_0, window_bounds = array<i64: 1, 16, 256>}, {transform_indices = @transform_1, window_bounds = array<i64: 256, 128>}, {transform_indices = @transform_2, window_bounds = array<i64: 1, 128>}, {transform_indices = @transform_3, window_bounds = array<i64: 1, 16, 128>}]} {
    %c0 = arith.constant 0 : index
    %c0_0 = arith.constant 0 : index
    %c0_1 = arith.constant 0 : index
    %0 = vector.load %arg2[%c0, %c0_0, %c0_1] : memref<1x16x256xbf16, #tpu.memory_space<vmem>>, vector<1x16x256xbf16>
    %1 = vector.shape_cast %0 : vector<1x16x256xbf16> to vector<16x256xbf16>
    %c0_2 = arith.constant 0 : index
    %c0_3 = arith.constant 0 : index
    %2 = vector.load %arg3[%c0_2, %c0_3] : memref<256x128xbf16, #tpu.memory_space<vmem>>, vector<256x128xbf16>
    %cst = arith.constant dense<0.000000e+00> : vector<16x128xf32>
    %3 = tpu.matmul %1, %2, %cst {dimension_numbers = #tpu.dot_dimension_numbers<[1], [0], [0], [1], [0, 0, 1, 1], [], []>} : vector<16x256xbf16>, vector<256x128xbf16>, vector<16x128xf32> -> vector<16x128xf32>
    %c0_4 = arith.constant 0 : index
    %c0_5 = arith.constant 0 : index
    %4 = vector.load %arg4[%c0_4, %c0_5] : memref<1x128xf32, #tpu.memory_space<vmem>>, vector<1x128xf32>
    %5 = vector.broadcast %4 : vector<1x128xf32> to vector<16x128xf32>
    %6 = arith.addf %3, %5 : vector<16x128xf32>
    %cst_6 = arith.constant dense<0.000000e+00> : vector<128xf32>
    %7 = vector.multi_reduction <add>, %6, %cst_6 [0] : vector<16x128xf32> to vector<128xf32>
    %8 = vector.shape_cast %7 : vector<128xf32> to vector<1x128xf32>
    %cst_7 = arith.constant 6.250000e-02 : f32
    %9 = vector.broadcast %cst_7 : f32 to vector<1x128xf32>
    %10 = arith.mulf %8, %9 : vector<1x128xf32>
    %11 = arith.mulf %6, %6 : vector<16x128xf32>
    %cst_8 = arith.constant dense<0.000000e+00> : vector<128xf32>
    %12 = vector.multi_reduction <add>, %11, %cst_8 [0] : vector<16x128xf32> to vector<128xf32>
    %13 = vector.shape_cast %12 : vector<128xf32> to vector<1x128xf32>
    %cst_9 = arith.constant 6.250000e-02 : f32
    %14 = vector.broadcast %cst_9 : f32 to vector<1x128xf32>
    %15 = arith.mulf %13, %14 : vector<1x128xf32>
    %16 = arith.mulf %10, %10 : vector<1x128xf32>
    %17 = arith.subf %15, %16 : vector<1x128xf32>
    %cst_10 = arith.constant 0.000000e+00 : f32
    %18 = vector.broadcast %cst_10 : f32 to vector<1x128xf32>
    %19 = arith.maximumf %17, %18 : vector<1x128xf32>
    %20 = vector.broadcast %10 : vector<1x128xf32> to vector<16x128xf32>
    %21 = arith.subf %6, %20 : vector<16x128xf32>
    %cst_11 = arith.constant 9.99999974E-6 : f32
    %22 = vector.broadcast %cst_11 : f32 to vector<1x128xf32>
    %23 = arith.addf %19, %22 : vector<1x128xf32>
    %24 = math.rsqrt %23 : vector<1x128xf32>
    %25 = vector.broadcast %24 : vector<1x128xf32> to vector<16x128xf32>
    %26 = arith.mulf %21, %25 : vector<16x128xf32>
    %cst_12 = arith.constant 0.000000e+00 : f32
    %27 = vector.broadcast %cst_12 : f32 to vector<16x128xf32>
    %28 = arith.cmpf oge, %26, %27 : vector<16x128xf32>
    %cst_13 = arith.constant 2.000000e-01 : f32
    %29 = vector.broadcast %cst_13 : f32 to vector<16x128xf32>
    %30 = arith.mulf %29, %26 : vector<16x128xf32>
    %31 = arith.select %28, %26, %30 : vector<16x128xi1>, vector<16x128xf32>
    %32 = arith.truncf %31 : vector<16x128xf32> to vector<16x128xbf16>
    %c0_14 = arith.constant 0 : index
    %c0_15 = arith.constant 0 : index
    %c0_16 = arith.constant 0 : index
    %33 = vector.load %arg5[%c0_14, %c0_15, %c0_16] : memref<1x16x128xbf16, #tpu.memory_space<vmem>>, vector<1x16x128xbf16>
    %34 = vector.shape_cast %33 : vector<1x16x128xbf16> to vector<16x128xbf16>
    %35 = vector.shape_cast %32 : vector<16x128xbf16> to vector<1x16x128xbf16>
    tpu.vector_store %arg5[%c0_14, %c0_15, %c0_16], %35 {strides = array<i32>} : memref<1x16x128xbf16, #tpu.memory_space<vmem>>, vector<1x16x128xbf16>,
    return
  }
  func.func @transform_0(%arg0: i32, %arg1: i32) -> (i32, i32, i32) {
    %c0_i32 = arith.constant 0 : i32
    %c0_i32_0 = arith.constant 0 : i32
    %c0_i32_1 = arith.constant 0 : i32
    return %arg0, %c0_i32, %c0_i32_0 : i32, i32, i32
  }
  func.func @transform_1(%arg0: i32, %arg1: i32) -> (i32, i32) {
    %c0_i32 = arith.constant 0 : i32
    %c0_i32_0 = arith.constant 0 : i32
    return %c0_i32, %arg1 : i32, i32
  }
  func.func @transform_2(%arg0: i32, %arg1: i32) -> (i32, i32) {
    %c0_i32 = arith.constant 0 : i32
    %c0_i32_0 = arith.constant 0 : i32
    return %c0_i32, %arg1 : i32, i32
  }
  func.func @transform_3(%arg0: i32, %arg1: i32) -> (i32, i32, i32) {
    %c0_i32 = arith.constant 0 : i32
    %c0_i32_0 = arith.constant 0 : i32
    return %arg0, %c0_i32, %arg1 : i32, i32, i32
  }
}

module attributes {stable_mosaic.version = 11 : i64} {
  func.func @_fused_matmul_in_act_kernel(%arg0: i32, %arg1: i32, %arg2: memref<1x16x512xbf16, #tpu.memory_space<vmem>>, %arg3: memref<512x128xbf16, #tpu.memory_space<vmem>>, %arg4: memref<1x128xf32, #tpu.memory_space<vmem>>, %arg5: memref<1x16x128xbf16, #tpu.memory_space<vmem>>) attributes {dimension_semantics = [#tpu.dimension_semantics<parallel>, #tpu.dimension_semantics<parallel>], iteration_bounds = array<i64: 2, 1>, scalar_prefetch = 0 : i64, scratch_operands = 0 : i64, tpu.core_type = #tpu.core_type<tc>, window_params = [{transform_indices = @transform_0, window_bounds = array<i64: 1, 16, 512>}, {transform_indices = @transform_1, window_bounds = array<i64: 512, 128>}, {transform_indices = @transform_2, window_bounds = array<i64: 1, 128>}, {transform_indices = @transform_3, window_bounds = array<i64: 1, 16, 128>}]} {
    %c0 = arith.constant 0 : index
    %c0_0 = arith.constant 0 : index
    %c0_1 = arith.constant 0 : index
    %0 = vector.load %arg2[%c0, %c0_0, %c0_1] : memref<1x16x512xbf16, #tpu.memory_space<vmem>>, vector<1x16x512xbf16>
    %1 = vector.shape_cast %0 : vector<1x16x512xbf16> to vector<16x512xbf16>
    %c0_2 = arith.constant 0 : index
    %c0_3 = arith.constant 0 : index
    %2 = vector.load %arg3[%c0_2, %c0_3] : memref<512x128xbf16, #tpu.memory_space<vmem>>, vector<512x128xbf16>
    %cst = arith.constant dense<0.000000e+00> : vector<16x128xf32>
    %3 = tpu.matmul %1, %2, %cst {dimension_numbers = #tpu.dot_dimension_numbers<[1], [0], [0], [1], [0, 0, 1, 1], [], []>} : vector<16x512xbf16>, vector<512x128xbf16>, vector<16x128xf32> -> vector<16x128xf32>
    %c0_4 = arith.constant 0 : index
    %c0_5 = arith.constant 0 : index
    %4 = vector.load %arg4[%c0_4, %c0_5] : memref<1x128xf32, #tpu.memory_space<vmem>>, vector<1x128xf32>
    %5 = vector.broadcast %4 : vector<1x128xf32> to vector<16x128xf32>
    %6 = arith.addf %3, %5 : vector<16x128xf32>
    %7 = tpu.iota {dimensions = array<i32: 0>} : vector<16x128xi32>
    %c9_i32 = arith.constant 9 : i32
    %8 = vector.broadcast %c9_i32 : i32 to vector<16x128xi32>
    %9 = arith.cmpi slt, %7, %8 : vector<16x128xi32>
    %cst_6 = arith.constant 0.000000e+00 : f32
    %10 = vector.broadcast %cst_6 : f32 to vector<16x128xf32>
    %11 = arith.select %9, %6, %10 : vector<16x128xi1>, vector<16x128xf32>
    %cst_7 = arith.constant dense<0.000000e+00> : vector<128xf32>
    %12 = vector.multi_reduction <add>, %11, %cst_7 [0] : vector<16x128xf32> to vector<128xf32>
    %13 = vector.shape_cast %12 : vector<128xf32> to vector<1x128xf32>
    %cst_8 = arith.constant 0.111111112 : f32
    %14 = vector.broadcast %cst_8 : f32 to vector<1x128xf32>
    %15 = arith.mulf %13, %14 : vector<1x128xf32>
    %16 = arith.mulf %11, %11 : vector<16x128xf32>
    %cst_9 = arith.constant dense<0.000000e+00> : vector<128xf32>
    %17 = vector.multi_reduction <add>, %16, %cst_9 [0] : vector<16x128xf32> to vector<128xf32>
    %18 = vector.shape_cast %17 : vector<128xf32> to vector<1x128xf32>
    %cst_10 = arith.constant 0.111111112 : f32
    %19 = vector.broadcast %cst_10 : f32 to vector<1x128xf32>
    %20 = arith.mulf %18, %19 : vector<1x128xf32>
    %21 = arith.mulf %15, %15 : vector<1x128xf32>
    %22 = arith.subf %20, %21 : vector<1x128xf32>
    %cst_11 = arith.constant 0.000000e+00 : f32
    %23 = vector.broadcast %cst_11 : f32 to vector<1x128xf32>
    %24 = arith.maximumf %22, %23 : vector<1x128xf32>
    %25 = vector.broadcast %15 : vector<1x128xf32> to vector<16x128xf32>
    %26 = arith.subf %6, %25 : vector<16x128xf32>
    %cst_12 = arith.constant 9.99999974E-6 : f32
    %27 = vector.broadcast %cst_12 : f32 to vector<1x128xf32>
    %28 = arith.addf %24, %27 : vector<1x128xf32>
    %29 = math.rsqrt %28 : vector<1x128xf32>
    %30 = vector.broadcast %29 : vector<1x128xf32> to vector<16x128xf32>
    %31 = arith.mulf %26, %30 : vector<16x128xf32>
    %cst_13 = arith.constant 0.000000e+00 : f32
    %32 = vector.broadcast %cst_13 : f32 to vector<16x128xf32>
    %33 = arith.cmpf oge, %31, %32 : vector<16x128xf32>
    %cst_14 = arith.constant 2.000000e-01 : f32
    %34 = vector.broadcast %cst_14 : f32 to vector<16x128xf32>
    %35 = arith.mulf %34, %31 : vector<16x128xf32>
    %36 = arith.select %33, %31, %35 : vector<16x128xi1>, vector<16x128xf32>
    %37 = arith.truncf %36 : vector<16x128xf32> to vector<16x128xbf16>
    %c0_15 = arith.constant 0 : index
    %c0_16 = arith.constant 0 : index
    %c0_17 = arith.constant 0 : index
    %38 = vector.load %arg5[%c0_15, %c0_16, %c0_17] : memref<1x16x128xbf16, #tpu.memory_space<vmem>>, vector<1x16x128xbf16>
    %39 = vector.shape_cast %38 : vector<1x16x128xbf16> to vector<16x128xbf16>
    %40 = vector.shape_cast %37 : vector<16x128xbf16> to vector<1x16x128xbf16>
    tpu.vector_store %arg5[%c0_15, %c0_16, %c0_17], %40 {strides = array<i32>} : memref<1x16x128xbf16, #tpu.memory_space<vmem>>, vector<1x16x128xbf16>,
    return
  }
  func.func @transform_0(%arg0: i32, %arg1: i32) -> (i32, i32, i32) {
    %c0_i32 = arith.constant 0 : i32
    %c0_i32_0 = arith.constant 0 : i32
    %c0_i32_1 = arith.constant 0 : i32
    return %arg0, %c0_i32, %c0_i32_0 : i32, i32, i32
  }
  func.func @transform_1(%arg0: i32, %arg1: i32) -> (i32, i32) {
    %c0_i32 = arith.constant 0 : i32
    %c0_i32_0 = arith.constant 0 : i32
    return %c0_i32, %arg1 : i32, i32
  }
  func.func @transform_2(%arg0: i32, %arg1: i32) -> (i32, i32) {
    %c0_i32 = arith.constant 0 : i32
    %c0_i32_0 = arith.constant 0 : i32
    return %c0_i32, %arg1 : i32, i32
  }
  func.func @transform_3(%arg0: i32, %arg1: i32) -> (i32, i32, i32) {
    %c0_i32 = arith.constant 0 : i32
    %c0_i32_0 = arith.constant 0 : i32
    return %arg0, %c0_i32, %arg1 : i32, i32, i32
  }
}

module attributes {stable_mosaic.version = 11 : i64} {
  func.func @_matmul_bias_act_kernel(%arg0: i32, %arg1: i32, %arg2: i32, %arg3: memref<1x16x1024xbf16, #tpu.memory_space<vmem>>, %arg4: memref<1024x128xbf16, #tpu.memory_space<vmem>>, %arg5: memref<1x128xf32, #tpu.memory_space<vmem>>, %arg6: memref<1x16x128xf32, #tpu.memory_space<vmem>>) attributes {dimension_semantics = [#tpu.dimension_semantics<parallel>, #tpu.dimension_semantics<parallel>, #tpu.dimension_semantics<parallel>], iteration_bounds = array<i64: 2, 1, 1>, scalar_prefetch = 0 : i64, scratch_operands = 0 : i64, tpu.core_type = #tpu.core_type<tc>, window_params = [{transform_indices = @transform_0, window_bounds = array<i64: 1, 16, 1024>}, {transform_indices = @transform_1, window_bounds = array<i64: 1024, 128>}, {transform_indices = @transform_2, window_bounds = array<i64: 1, 128>}, {transform_indices = @transform_3, window_bounds = array<i64: 1, 16, 128>}]} {
    %c0 = arith.constant 0 : index
    %c0_0 = arith.constant 0 : index
    %c0_1 = arith.constant 0 : index
    %0 = vector.load %arg3[%c0, %c0_0, %c0_1] : memref<1x16x1024xbf16, #tpu.memory_space<vmem>>, vector<1x16x1024xbf16>
    %1 = vector.shape_cast %0 : vector<1x16x1024xbf16> to vector<16x1024xbf16>
    %c0_2 = arith.constant 0 : index
    %c0_3 = arith.constant 0 : index
    %2 = vector.load %arg4[%c0_2, %c0_3] : memref<1024x128xbf16, #tpu.memory_space<vmem>>, vector<1024x128xbf16>
    %cst = arith.constant dense<0.000000e+00> : vector<16x128xf32>
    %3 = tpu.matmul %1, %2, %cst {dimension_numbers = #tpu.dot_dimension_numbers<[1], [0], [0], [1], [0, 0, 1, 1], [], []>} : vector<16x1024xbf16>, vector<1024x128xbf16>, vector<16x128xf32> -> vector<16x128xf32>
    %c0_4 = arith.constant 0 : index
    %c0_5 = arith.constant 0 : index
    %4 = vector.load %arg5[%c0_4, %c0_5] : memref<1x128xf32, #tpu.memory_space<vmem>>, vector<1x128xf32>
    %5 = vector.broadcast %4 : vector<1x128xf32> to vector<16x128xf32>
    %6 = arith.addf %3, %5 : vector<16x128xf32>
    %c0_6 = arith.constant 0 : index
    %c0_7 = arith.constant 0 : index
    %c0_8 = arith.constant 0 : index
    %7 = vector.load %arg6[%c0_6, %c0_7, %c0_8] : memref<1x16x128xf32, #tpu.memory_space<vmem>>, vector<1x16x128xf32>
    %8 = vector.shape_cast %7 : vector<1x16x128xf32> to vector<16x128xf32>
    %9 = vector.shape_cast %6 : vector<16x128xf32> to vector<1x16x128xf32>
    tpu.vector_store %arg6[%c0_6, %c0_7, %c0_8], %9 {strides = array<i32>} : memref<1x16x128xf32, #tpu.memory_space<vmem>>, vector<1x16x128xf32>,
    return
  }
  func.func @transform_0(%arg0: i32, %arg1: i32, %arg2: i32) -> (i32, i32, i32) {
    %c0_i32 = arith.constant 0 : i32
    %c0_i32_0 = arith.constant 0 : i32
    return %arg0, %arg2, %c0_i32 : i32, i32, i32
  }
  func.func @transform_1(%arg0: i32, %arg1: i32, %arg2: i32) -> (i32, i32) {
    %c0_i32 = arith.constant 0 : i32
    %c0_i32_0 = arith.constant 0 : i32
    return %c0_i32, %arg1 : i32, i32
  }
  func.func @transform_2(%arg0: i32, %arg1: i32, %arg2: i32) -> (i32, i32) {
    %c0_i32 = arith.constant 0 : i32
    %c0_i32_0 = arith.constant 0 : i32
    return %c0_i32, %arg1 : i32, i32
  }
  func.func @transform_3(%arg0: i32, %arg1: i32, %arg2: i32) -> (i32, i32, i32) {
    %c0_i32 = arith.constant 0 : i32
    return %arg0, %arg2, %arg1 : i32, i32, i32
  }
}

</mosaic_0001>

<llo_original>
// kernel: _lambda_.5
$region0: #{_lambda_.5}
  #allocation0 [shape = 'u32[]', space=smem, size = 0x4, offset = 0x4, fixed_abs, tag = 'smem constant byte address 0x4 - core index']
  #allocation1 [shape = 'u32[144,128]{1,0:T(1,128)}', space=vmem, size = 0x12000, scoped, tag = 'internal scratch']
  %s0 = inlined_call_operand.vmem [shape: bf16[2,256,128], index: 0, kind: input, shape index: {}]
  %s1 = inlined_call_operand.vmem [shape: bf16[128,128], index: 1, kind: input, shape index: {}]
  %s2 = inlined_call_operand.vmem [shape: f32[1,128], index: 2, kind: input, shape index: {}]
  %s3 = inlined_call_operand.vmem [shape: bf16[2,256,128], index: 3, kind: output, shape index: {}]
  %s4 = sld [smem:[#allocation0]]
  $region45: #{_lambda_.5} parent=0
    _
  %s6 = ssub.s32 1, %s4
  %s7 = scalar_select 0, %s6, %s4
  loop: start=0, step=1, limit=4
  $region2: #{_lambda_.5} parent=0 // loop_pre_header
    _
  $region3: #{_lambda_.5} parent=0 // loop_header
    %s9 = sphi 0, %s13
    %p10 = scmp.ge.s32.totalorder %s9, 4
    %s16 = sphi 0, %s35
    %s17 = sphi 0, %s31
    %s18 = sphi 0, %s27
    %s19 = sphi 0, %s16
    %s20 = sphi 0, %s17
    %s21 = sphi 0, %s18
    %s22 = sphi 0, %s19
    %s23 = sphi 0, %s20
    %s24 = sphi 0, %s21
    %s40 = sphi 0, %s42
    %s43 = sphi 0, %s40
    %s44 = sphi 0, %s43
    %s60 = sphi 0, %s44
    %s66 = sphi 0, %s68
    %s69 = sphi 0, %s66
    %s70 = sphi 0, %s69
    %s86 = sphi 0, %s70
    %s92 = sphi 0, %s94
    %s95 = sphi 0, %s92
    %s96 = sphi 0, %s95
    %s112 = sphi 0, %s96
    %s122 = sphi 0, %s124
    %s125 = sphi 0, %s122
    %s126 = sphi 0, %s125
    %s142 = sphi 0, %s126
  $region4: #{_lambda_.5} parent=0 // loop_header_branch
    %12 = sbr.rel (%p10) target = $region8
  $region5: #{_lambda_.5} parent=0 // loop_body
    %s14 = ssub.s32 %s9, 1
    %s15 = ssub.s32 %s9, 2
    %s25 = sadd.s32 1, %s18
    %p26 = scmp.ge.s32.totalorder %s25, 1
    %s27 = scalar_select %p26, 0, %s25
    %s28 = sadd.s32 1, %s17
    %s29 = scalar_select %p26, %s28, %s17
    %p30 = scmp.ge.s32.totalorder %s29, 1
    %s31 = scalar_select %p30, 0, %s29
    %s32 = sadd.s32 1, %s16
    %s33 = scalar_select %p30, %s32, %s16
    %p34 = scmp.ge.s32.totalorder %s33, 2
    %s35 = scalar_select %p34, 0, %s33
    %s36 = ssub.s32 %s16, %s35
    %s37 = ssub.s32 %s18, %s27
    %s38 = sor.u32 %s36, %s37
    %p39 = scmp.eq.s32.totalorder %s38, 0
    %s41 = sadd.s32 %s40, 1
    %s42 = scalar_select %p39, %s40, %s41
    %p45 = pneg %p39
    %p46 = scmp.eq.s32.totalorder %s9, 1
    %p47 = por %p45, %p46
    %p48 = scmp.ne.s32.totalorder %s40, %s43
    %p49 = scmp.eq.s32.totalorder %s9, 0
    %p50 = por %p48, %p49
    %p51 = scmp.ne.s32.totalorder %s40, %s43
    %p52 = scmp.eq.s32.totalorder %s14, 1
    %p53 = por %p51, %p52
    %p54 = scmp.ne.s32.totalorder %s43, %s44
    %p55 = scmp.eq.s32.totalorder %s14, 0
    %p56 = por %p54, %p55
    %p57 = scmp.ne.s32.totalorder %s43, %s44
    %p58 = scmp.eq.s32.totalorder %s15, 1
    %p59 = por %p57, %p58
    %p61 = scmp.ne.s32.totalorder %s44, %s60
    %p62 = scmp.eq.s32.totalorder %s15, 0
    %p63 = por %p61, %p62
    %s64 = ssub.s32 %s17, %s31
    %p65 = scmp.eq.s32.totalorder %s64, 0
    %s67 = sadd.s32 %s66, 1
    %s68 = scalar_select %p65, %s66, %s67
    %p71 = pneg %p65
    %p72 = scmp.eq.s32.totalorder %s9, 1
    %p73 = por %p71, %p72
    %p74 = scmp.ne.s32.totalorder %s66, %s69
    %p75 = scmp.eq.s32.totalorder %s9, 0
    %p76 = por %p74, %p75
    %p77 = scmp.ne.s32.totalorder %s66, %s69
    %p78 = scmp.eq.s32.totalorder %s14, 1
    %p79 = por %p77, %p78
    %p80 = scmp.ne.s32.totalorder %s69, %s70
    %p81 = scmp.eq.s32.totalorder %s14, 0
    %p82 = por %p80, %p81
    %p83 = scmp.ne.s32.totalorder %s69, %s70
    %p84 = scmp.eq.s32.totalorder %s15, 1
    %p85 = por %p83, %p84
    %p87 = scmp.ne.s32.totalorder %s70, %s86
    %p88 = scmp.eq.s32.totalorder %s15, 0
    %p89 = por %p87, %p88
    %s90 = ssub.s32 %s17, %s31
    %p91 = scmp.eq.s32.totalorder %s90, 0
    %s93 = sadd.s32 %s92, 1
    %s94 = scalar_select %p91, %s92, %s93
    %p97 = pneg %p91
    %p98 = scmp.eq.s32.totalorder %s9, 1
    %p99 = por %p97, %p98
    %p100 = scmp.ne.s32.totalorder %s92, %s95
    %p101 = scmp.eq.s32.totalorder %s9, 0
    %p102 = por %p100, %p101
    %p103 = scmp.ne.s32.totalorder %s92, %s95
    %p104 = scmp.eq.s32.totalorder %s14, 1
    %p105 = por %p103, %p104
    %p106 = scmp.ne.s32.totalorder %s95, %s96
    %p107 = scmp.eq.s32.totalorder %s14, 0
    %p108 = por %p106, %p107
    %p109 = scmp.ne.s32.totalorder %s95, %s96
    %p110 = scmp.eq.s32.totalorder %s15, 1
    %p111 = por %p109, %p110
    %p113 = scmp.ne.s32.totalorder %s96, %s112
    %p114 = scmp.eq.s32.totalorder %s15, 0
    %p115 = por %p113, %p114
    %s116 = ssub.s32 %s16, %s35
    %s117 = ssub.s32 %s18, %s27
    %s118 = sor.u32 %s116, %s117
    %s119 = ssub.s32 %s17, %s31
    %s120 = sor.u32 %s118, %s119
    %p121 = scmp.eq.s32.totalorder %s120, 0
    %s123 = sadd.s32 %s122, 1
    %s124 = scalar_select %p121, %s122, %s123
    %p127 = pneg %p121
    %p128 = scmp.eq.s32.totalorder %s9, 1
    %p129 = por %p127, %p128
    %p130 = scmp.ne.s32.totalorder %s122, %s125
    %p131 = scmp.eq.s32.totalorder %s9, 0
    %p132 = por %p130, %p131
    %p133 = scmp.ne.s32.totalorder %s122, %s125
    %p134 = scmp.eq.s32.totalorder %s14, 1
    %p135 = por %p133, %p134
    %p136 = scmp.ne.s32.totalorder %s125, %s126
    %p137 = scmp.eq.s32.totalorder %s14, 0
    %p138 = por %p136, %p137
    %p139 = scmp.ne.s32.totalorder %s125, %s126
    %p140 = scmp.eq.s32.totalorder %s15, 1
    %p141 = por %p139, %p140
    %p143 = scmp.ne.s32.totalorder %s126, %s142
    %p144 = scmp.eq.s32.totalorder %s15, 0
    %p145 = por %p143, %p144
    %p146 = scmp.le.s32.totalorder 1, %s9
    %p147 = scmp.lt.s32.totalorder %s9, 3
    %p148 = pnand %p146, %p147
    %p149 = pneg %p148
    // Predicated region
    $region9: #{_lambda_.5} parent=5 // pred_check
      _
    $region10: #{_lambda_.5} parent=5 // pred_check_branch
      %151 = sbr.rel (%p148) target = $region12
    $region11: #{_lambda_.5} parent=5 // pred_region
      %s152 = ssub.s32 %s9, 1
      // Predicated region
      $region13: #{_lambda_.5} parent=11 // pred_check
        %p153 = pneg %p82
      $region14: #{_lambda_.5} parent=11 // pred_check_branch
        %155 = sbr.rel (%p153) target = $region16
      $region15: #{_lambda_.5} parent=11 // pred_region
        %p156 = scmp.lt.s32.totalorder %s20, 0
        %s157 = scalar_select %p156, %s20, 0
        %s158 = smul.addr %s157, 4
        %s159 = scalar_lea.vmem %s1, %s158
      $region16: #{_lambda_.5} parent=11 // pred_fallthru
        _
      // Predicated region
      $region17: #{_lambda_.5} parent=11 // pred_check
        %p160 = pneg %p108
      $region18: #{_lambda_.5} parent=11 // pred_check_branch
        %162 = sbr.rel (%p160) target = $region20
      $region19: #{_lambda_.5} parent=11 // pred_region
        %p163 = scmp.lt.s32.totalorder %s20, 0
        %s164 = scalar_select %p163, %s20, 0
        %s165 = scalar_lea.vmem %s2, %s164
      $region20: #{_lambda_.5} parent=11 // pred_fallthru
        _
    $region12: #{_lambda_.5} parent=5 // pred_fallthru
      _
    %p166 = scmp.lt.s32.totalorder %s9, 2
    // Predicated region
    $region21: #{_lambda_.5} parent=5 // pred_check
      %p167 = pneg %p166
    $region22: #{_lambda_.5} parent=5 // pred_check_branch
      %169 = sbr.rel (%p167) target = $region24
    $region23: #{_lambda_.5} parent=5 // pred_region
      // Predicated region
      $region25: #{_lambda_.5} parent=23 // pred_check
        %p170 = pneg %p50
      $region26: #{_lambda_.5} parent=23 // pred_check_branch
        %172 = sbr.rel (%p170) target = $region28
      $region27: #{_lambda_.5} parent=23 // pred_region
        %s173 = smul.u32 32, %s18
        %p174 = scmp.lt.s32.totalorder %s16, 1
        %s175 = scalar_select %p174, %s16, 1
        %p176 = scmp.lt.s32.totalorder %s173, 31
        %s177 = scalar_select %p176, %s173, 31
        %s178 = smul.addr %s175, 32
        %s179 = sadd.s32 %s177, %s178
        %s180 = smul.addr %s179, 4
        %s181 = scalar_lea.vmem %s0, %s180
        %s182 = smul.u32 32, %s18
      $region28: #{_lambda_.5} parent=23 // pred_fallthru
        _
    $region24: #{_lambda_.5} parent=5 // pred_fallthru
      _
    %p183 = scmp.le.s32.totalorder 1, %s9
    %p184 = scmp.lt.s32.totalorder %s9, 3
    %p185 = pnand %p183, %p184
    %p186 = pneg %p185
    // Predicated region
    $region29: #{_lambda_.5} parent=5 // pred_check
      _
    $region30: #{_lambda_.5} parent=5 // pred_check_branch
      %188 = sbr.rel (%p185) target = $region32
    $region31: #{_lambda_.5} parent=5 // pred_region
      %s189 = ssub.s32 %s9, 1
      %s190 = smul.u32 32, %s21
      %p191 = scmp.lt.s32.totalorder %s19, 1
      %s192 = scalar_select %p191, %s19, 1
      %p193 = scmp.lt.s32.totalorder %s190, 31
      %s194 = scalar_select %p193, %s190, 31
      %s195 = smul.addr %s192, 32
      %s196 = sadd.s32 %s194, %s195
      %s197 = smul.addr %s196, 4
      %s198 = scalar_lea.vmem %s0, %s197
      %p199 = pneg %p56
      %p200 = pneg %p53
      %p201 = scmp.lt.s32.totalorder %s20, 0
      %s202 = scalar_select %p201, %s20, 0
      %s203 = smul.addr %s202, 4
      %s204 = scalar_lea.vmem %s1, %s203
      %p205 = pneg %p82
      %p206 = pneg %p79
      %p207 = scmp.lt.s32.totalorder %s20, 0
      %s208 = scalar_select %p207, %s20, 0
      %s209 = scalar_lea.vmem %s2, %s208
      %p210 = pneg %p108
      %p211 = pneg %p105
      %p212 = pneg %p138
      %p213 = pneg %p135
      %s214 = smul.u32 32, %s21
      %p215 = scmp.lt.s32.totalorder %s19, 1
      %s216 = scalar_select %p215, %s19, 1
      %p217 = scmp.lt.s32.totalorder %s214, 31
      %s218 = scalar_select %p217, %s214, 31
      %p219 = scmp.lt.s32.totalorder %s20, 0
      %s220 = scalar_select %p219, %s20, 0
      %s221 = sadd.s32 %s220, %s218
      %s222 = smul.addr %s216, 32
      %s223 = sadd.s32 %s221, %s222
      %s224 = smul.addr %s223, 4
      %s225 = scalar_lea.vmem %s3, %s224
      %s226 = smul.u32 32, %s21
      %p227 = scmp.lt.s32.totalorder %s19, 1
      %s228 = scalar_select %p227, %s19, 1
      %p229 = scmp.lt.s32.totalorder %s226, 31
      %s230 = scalar_select %p229, %s226, 31
      %s231 = smul.addr %s228, 32
      %s232 = sadd.s32 %s230, %s231
      %s233 = smul.addr %s232, 4
      %s234 = scalar_lea.vmem %s0, %s233
      %s235 = smul.u32 32, %s21
      %p236 = scmp.lt.s32.totalorder %s20, 0
      %s237 = scalar_select %p236, %s20, 0
      %s238 = smul.addr %s237, 4
      %s239 = scalar_lea.vmem %s1, %s238
      %p240 = scmp.lt.s32.totalorder %s20, 0
      %s241 = scalar_select %p240, %s20, 0
      %s242 = scalar_lea.vmem %s2, %s241
      %s243 = smul.u32 32, %s21
      %p244 = scmp.lt.s32.totalorder %s19, 1
      %s245 = scalar_select %p244, %s19, 1
      %p246 = scmp.lt.s32.totalorder %s243, 31
      %s247 = scalar_select %p246, %s243, 31
      %p248 = scmp.lt.s32.totalorder %s20, 0
      %s249 = scalar_select %p248, %s20, 0
      %s250 = sadd.s32 %s249, %s247
      %s251 = smul.addr %s245, 32
      %s252 = sadd.s32 %s250, %s251
      %s253 = smul.addr %s252, 4
      %s254 = scalar_lea.vmem %s3, %s253
      %s255 = smul.u32 32, %s21
      %v257 = vld [vmem:[%s234] sm:$0xf]
      %v258 = vld [vmem:[%s234 + $0x4] sm:$0xf]
      %v259 = vld [vmem:[%s234 + $0x8] sm:$0xf]
      %v260 = vld [vmem:[%s234 + $0xc] sm:$0xf]
      %v261 = vld [vmem:[%s234 + $0x10] sm:$0xf]
      %v262 = vld [vmem:[%s234 + $0x14] sm:$0xf]
      %v263 = vld [vmem:[%s234 + $0x18] sm:$0xf]
      %v264 = vld [vmem:[%s234 + $0x1c] sm:$0xf]
      %v265 = vld [vmem:[%s234 + $0x20] sm:$0xf]
      %v266 = vld [vmem:[%s234 + $0x24] sm:$0xf]
      %v267 = vld [vmem:[%s234 + $0x28] sm:$0xf]
      %v268 = vld [vmem:[%s234 + $0x2c] sm:$0xf]
      %v269 = vld [vmem:[%s234 + $0x30] sm:$0xf]
      %v270 = vld [vmem:[%s234 + $0x34] sm:$0xf]
      %v271 = vld [vmem:[%s234 + $0x38] sm:$0xf]
      %v272 = vld [vmem:[%s234 + $0x3c] sm:$0xf]
      %v273 = vld [vmem:[%s234 + $0x40] sm:$0xf]
      %v274 = vld [vmem:[%s234 + $0x44] sm:$0xf]
      %v275 = vld [vmem:[%s234 + $0x48] sm:$0xf]
      %v276 = vld [vmem:[%s234 + $0x4c] sm:$0xf]
      %v277 = vld [vmem:[%s234 + $0x50] sm:$0xf]
      %v278 = vld [vmem:[%s234 + $0x54] sm:$0xf]
      %v279 = vld [vmem:[%s234 + $0x58] sm:$0xf]
      %v280 = vld [vmem:[%s234 + $0x5c] sm:$0xf]
      %v281 = vld [vmem:[%s234 + $0x60] sm:$0xf]
      %v282 = vld [vmem:[%s234 + $0x64] sm:$0xf]
      %v283 = vld [vmem:[%s234 + $0x68] sm:$0xf]
      %v284 = vld [vmem:[%s234 + $0x6c] sm:$0xf]
      %v285 = vld [vmem:[%s234 + $0x70] sm:$0xf]
      %v286 = vld [vmem:[%s234 + $0x74] sm:$0xf]
      %v287 = vld [vmem:[%s234 + $0x78] sm:$0xf]
      %v288 = vld [vmem:[%s234 + $0x7c] sm:$0xf]
      %v289 = vld [vmem:[%s239] sm:$0xf]
      %v290 = vld [vmem:[%s239 + $0x4] sm:$0xf]
      %v291 = vld [vmem:[%s239 + $0x8] sm:$0xf]
      %v292 = vld [vmem:[%s239 + $0xc] sm:$0xf]
      %v293 = vld [vmem:[%s239 + $0x10] sm:$0xf]
      %v294 = vld [vmem:[%s239 + $0x14] sm:$0xf]
      %v295 = vld [vmem:[%s239 + $0x18] sm:$0xf]
      %v296 = vld [vmem:[%s239 + $0x1c] sm:$0xf]
      %v297 = vld [vmem:[%s239 + $0x20] sm:$0xf]
      %v298 = vld [vmem:[%s239 + $0x24] sm:$0xf]
      %v299 = vld [vmem:[%s239 + $0x28] sm:$0xf]
      %v300 = vld [vmem:[%s239 + $0x2c] sm:$0xf]
      %v301 = vld [vmem:[%s239 + $0x30] sm:$0xf]
      %v302 = vld [vmem:[%s239 + $0x34] sm:$0xf]
      %v303 = vld [vmem:[%s239 + $0x38] sm:$0xf]
      %v304 = vld [vmem:[%s239 + $0x3c] sm:$0xf]
      %v305 = vld [vmem:[%s242] sm:$0x1]
      %v307 = vlaneseq
      %v308 = vshrl.u32 %v307, 7
      %v309 = vsub.s32 0, %v308
      %v310 = vrot.slane %v305, %v309
      %v344 = vunpack.c.l.b16 %v257
      %v345 = vunpack.c.l.b16 %v258
      %v346 = vunpack.c.l.b16 %v259
      %v347 = vunpack.c.l.b16 %v260
      %v348 = vunpack.c.l.b16 %v261
      %v349 = vunpack.c.l.b16 %v262
      %v350 = vunpack.c.l.b16 %v263
      %v351 = vunpack.c.l.b16 %v264
      %v352 = vunpack.c.l.b16 %v265
      %v353 = vunpack.c.l.b16 %v266
      %v354 = vunpack.c.l.b16 %v267
      %v355 = vunpack.c.l.b16 %v268
      %v356 = vunpack.c.l.b16 %v269
      %v357 = vunpack.c.l.b16 %v270
      %v358 = vunpack.c.l.b16 %v271
      %v359 = vunpack.c.l.b16 %v272
      %v360 = vunpack.c.l.b16 %v273
      %v361 = vunpack.c.l.b16 %v274
      %v362 = vunpack.c.l.b16 %v275
      %v363 = vunpack.c.l.b16 %v276
      %v364 = vunpack.c.l.b16 %v277
      %v365 = vunpack.c.l.b16 %v278
      %v366 = vunpack.c.l.b16 %v279
      %v367 = vunpack.c.l.b16 %v280
      %v368 = vunpack.c.l.b16 %v281
      %v369 = vunpack.c.l.b16 %v282
      %v370 = vunpack.c.l.b16 %v283
      %v371 = vunpack.c.l.b16 %v284
      %v372 = vunpack.c.l.b16 %v285
      %v373 = vunpack.c.l.b16 %v286
      %v374 = vunpack.c.l.b16 %v287
      %v375 = vunpack.c.l.b16 %v288
      %v376 = vpack.c.b16 %v345, %v344
      %v377 = vpack.c.b16 %v347, %v346
      %v378 = vpack.c.b16 %v349, %v348
      %v379 = vpack.c.b16 %v351, %v350
      %v380 = vpack.c.b16 %v353, %v352
      %v381 = vpack.c.b16 %v355, %v354
      %v382 = vpack.c.b16 %v357, %v356
      %v383 = vpack.c.b16 %v359, %v358
      %v384 = vpack.c.b16 %v361, %v360
      %v385 = vpack.c.b16 %v363, %v362
      %v386 = vpack.c.b16 %v365, %v364
      %v387 = vpack.c.b16 %v367, %v366
      %v388 = vpack.c.b16 %v369, %v368
      %v389 = vpack.c.b16 %v371, %v370
      %v390 = vpack.c.b16 %v373, %v372
      %v391 = vpack.c.b16 %v375, %v374
      %v424 = vunpack.c.l.b16 %v289
      %v425 = vunpack.c.l.b16 %v290
      %v426 = vunpack.c.l.b16 %v291
      %v427 = vunpack.c.l.b16 %v292
      %v428 = vunpack.c.l.b16 %v293
      %v429 = vunpack.c.l.b16 %v294
      %v430 = vunpack.c.l.b16 %v295
      %v431 = vunpack.c.l.b16 %v296
      %v432 = vunpack.c.l.b16 %v297
      %v433 = vunpack.c.l.b16 %v298
      %v434 = vunpack.c.l.b16 %v299
      %v435 = vunpack.c.l.b16 %v300
      %v436 = vunpack.c.l.b16 %v301
      %v437 = vunpack.c.l.b16 %v302
      %v438 = vunpack.c.l.b16 %v303
      %v439 = vunpack.c.l.b16 %v304
      %v440 = vpack.c.b16 %v425, %v424
      %v441 = vpack.c.b16 %v427, %v426
      %v442 = vpack.c.b16 %v429, %v428
      %v443 = vpack.c.b16 %v431, %v430
      %v444 = vpack.c.b16 %v433, %v432
      %v445 = vpack.c.b16 %v435, %v434
      %v446 = vpack.c.b16 %v437, %v436
      %v447 = vpack.c.b16 %v439, %v438
      %456 = vmatprep.subr.bf16.mxu0 0
      %457 = vmatpush1.bf16.msra.mxu0 %v440
      %458 = vmatprep.subr.bf16.mxu0 0
      %459 = vmatpush1.bf16.msra.mxu0 %v441
      %460 = vmatprep.subr.bf16.mxu0 0
      %461 = vmatpush1.bf16.msra.mxu0 %v442
      %462 = vmatprep.subr.bf16.mxu0 0
      %463 = vmatpush1.bf16.msra.mxu0 %v443
      %464 = vmatprep.subr.bf16.mxu0 0
      %465 = vmatpush1.bf16.msra.mxu0 %v444
      %466 = vmatprep.subr.bf16.mxu0 0
      %467 = vmatpush1.bf16.msra.mxu0 %v445
      %468 = vmatprep.subr.bf16.mxu0 0
      %469 = vmatpush1.bf16.msra.mxu0 %v446
      %470 = vmatprep.subr.bf16.mxu0 0
      %471 = vmatpush1.bf16.msra.mxu0 %v447
      %472 = vmatprep.subr.bf16.mxu0 0
      %473 = vmatpush1.bf16.msra.mxu0 0
      %474 = vmatprep.subr.bf16.mxu0 0
      %475 = vmatpush1.bf16.msra.mxu0 0
      %476 = vmatprep.subr.bf16.mxu0 0
      %477 = vmatpush1.bf16.msra.mxu0 0
      %478 = vmatprep.subr.bf16.mxu0 0
      %479 = vmatpush1.bf16.msra.mxu0 0
      %480 = vmatprep.subr.bf16.mxu0 0
      %481 = vmatpush1.bf16.msra.mxu0 0
      %482 = vmatprep.subr.bf16.mxu0 0
      %483 = vmatpush1.bf16.msra.mxu0 0
      %484 = vmatprep.subr.bf16.mxu0 0
      %485 = vmatpush1.bf16.msra.mxu0 0
      %486 = vmatprep.subr.bf16.mxu0 0
      %487 = vmatpush1.bf16.msra.mxu0 0
      %488 = vmatprep.mubr.bf16.mxu0 0
      %489 = vmatmul.mubr.bf16.gmra.mrb[0].mxu0 %v376
      %v490 = vpop.f32.mrb[0].mxu0
      %v491 = vadd.f32 %v310, %v490
      %v492 = vpop.f32.mrb[0].mxu0
      %v493 = vpop.f32.mrb[0].mxu0
      %v494 = vadd.f32 %v310, %v493
      %v495 = vpop.f32.mrb[0].mxu0
      %496 = vmatprep.mubr.bf16.mxu0 0
      %497 = vmatmul.mubr.bf16.gmra.mrb[0].mxu0 %v377
      %v498 = vpop.f32.mrb[0].mxu0
      %v499 = vadd.f32 %v310, %v498
      %v500 = vpop.f32.mrb[0].mxu0
      %v501 = vpop.f32.mrb[0].mxu0
      %v502 = vadd.f32 %v310, %v501
      %v503 = vpop.f32.mrb[0].mxu0
      %504 = vmatprep.mubr.bf16.mxu0 0
      %505 = vmatmul.mubr.bf16.gmra.mrb[0].mxu0 %v378
      %v506 = vpop.f32.mrb[0].mxu0
      %v507 = vadd.f32 %v310, %v506
      %v508 = vpop.f32.mrb[0].mxu0
      %v509 = vpop.f32.mrb[0].mxu0
      %v510 = vadd.f32 %v310, %v509
      %v511 = vpop.f32.mrb[0].mxu0
      %512 = vmatprep.mubr.bf16.mxu0 0
      %513 = vmatmul.mubr.bf16.gmra.mrb[0].mxu0 %v379
      %v514 = vpop.f32.mrb[0].mxu0
      %v515 = vadd.f32 %v310, %v514
      %v516 = vpop.f32.mrb[0].mxu0
      %v517 = vpop.f32.mrb[0].mxu0
      %v518 = vadd.f32 %v310, %v517
      %v519 = vpop.f32.mrb[0].mxu0
      %520 = vmatprep.mubr.bf16.mxu0 0
      %521 = vmatmul.mubr.bf16.gmra.mrb[0].mxu0 %v380
      %v522 = vpop.f32.mrb[0].mxu0
      %v523 = vadd.f32 %v310, %v522
      %v524 = vpop.f32.mrb[0].mxu0
      %v525 = vpop.f32.mrb[0].mxu0
      %v526 = vadd.f32 %v310, %v525
      %v527 = vpop.f32.mrb[0].mxu0
      %528 = vmatprep.mubr.bf16.mxu0 0
      %529 = vmatmul.mubr.bf16.gmra.mrb[0].mxu0 %v381
      %v530 = vpop.f32.mrb[0].mxu0
      %v531 = vadd.f32 %v310, %v530
      %v532 = vpop.f32.mrb[0].mxu0
      %v533 = vpop.f32.mrb[0].mxu0
      %v534 = vadd.f32 %v310, %v533
      %v535 = vpop.f32.mrb[0].mxu0
      %536 = vmatprep.mubr.bf16.mxu0 0
      %537 = vmatmul.mubr.bf16.gmra.mrb[0].mxu0 %v382
      %v538 = vpop.f32.mrb[0].mxu0
      %v539 = vadd.f32 %v310, %v538
      %v540 = vpop.f32.mrb[0].mxu0
      %v541 = vpop.f32.mrb[0].mxu0
      %v542 = vadd.f32 %v310, %v541
      %v543 = vpop.f32.mrb[0].mxu0
      %544 = vmatprep.mubr.bf16.mxu0 0
      %545 = vmatmul.mubr.bf16.gmra.mrb[0].mxu0 %v383
      %v546 = vpop.f32.mrb[0].mxu0
      %v547 = vadd.f32 %v310, %v546
      %v548 = vpop.f32.mrb[0].mxu0
      %v549 = vpop.f32.mrb[0].mxu0
      %v550 = vadd.f32 %v310, %v549
      %v551 = vpop.f32.mrb[0].mxu0
      %552 = vmatprep.mubr.bf16.mxu0 0
      %553 = vmatmul.mubr.bf16.gmra.mrb[0].mxu0 %v384
      %v554 = vpop.f32.mrb[0].mxu0
      %v555 = vadd.f32 %v310, %v554
      %v556 = vpop.f32.mrb[0].mxu0
      %v557 = vpop.f32.mrb[0].mxu0
      %v558 = vadd.f32 %v310, %v557
      %v559 = vpop.f32.mrb[0].mxu0
      %560 = vmatprep.mubr.bf16.mxu0 0
      %561 = vmatmul.mubr.bf16.gmra.mrb[0].mxu0 %v385
      %v562 = vpop.f32.mrb[0].mxu0
      %v563 = vadd.f32 %v310, %v562
      %v564 = vpop.f32.mrb[0].mxu0
      %v565 = vpop.f32.mrb[0].mxu0
      %v566 = vadd.f32 %v310, %v565
      %v567 = vpop.f32.mrb[0].mxu0
      %568 = vmatprep.mubr.bf16.mxu0 0
      %569 = vmatmul.mubr.bf16.gmra.mrb[0].mxu0 %v386
      %v570 = vpop.f32.mrb[0].mxu0
      %v571 = vadd.f32 %v310, %v570
      %v572 = vpop.f32.mrb[0].mxu0
      %v573 = vpop.f32.mrb[0].mxu0
      %v574 = vadd.f32 %v310, %v573
      %v575 = vpop.f32.mrb[0].mxu0
      %576 = vmatprep.mubr.bf16.mxu0 0
      %577 = vmatmul.mubr.bf16.gmra.mrb[0].mxu0 %v387
      %v578 = vpop.f32.mrb[0].mxu0
      %v579 = vadd.f32 %v310, %v578
      %v580 = vpop.f32.mrb[0].mxu0
      %v581 = vpop.f32.mrb[0].mxu0
      %v582 = vadd.f32 %v310, %v581
      %v583 = vpop.f32.mrb[0].mxu0
      %584 = vmatprep.mubr.bf16.mxu0 0
      %585 = vmatmul.mubr.bf16.gmra.mrb[0].mxu0 %v388
      %v586 = vpop.f32.mrb[0].mxu0
      %v587 = vadd.f32 %v310, %v586
      %v588 = vpop.f32.mrb[0].mxu0
      %v589 = vpop.f32.mrb[0].mxu0
      %v590 = vadd.f32 %v310, %v589
      %v591 = vpop.f32.mrb[0].mxu0
      %592 = vmatprep.mubr.bf16.mxu0 0
      %593 = vmatmul.mubr.bf16.gmra.mrb[0].mxu0 %v389
      %v594 = vpop.f32.mrb[0].mxu0
      %v595 = vadd.f32 %v310, %v594
      %v596 = vpop.f32.mrb[0].mxu0
      %v597 = vpop.f32.mrb[0].mxu0
      %v598 = vadd.f32 %v310, %v597
      %v599 = vpop.f32.mrb[0].mxu0
      %600 = vmatprep.mubr.bf16.mxu0 0
      %601 = vmatmul.mubr.bf16.gmra.mrb[0].mxu0 %v390
      %v602 = vpop.f32.mrb[0].mxu0
      %v603 = vadd.f32 %v310, %v602
      %v604 = vpop.f32.mrb[0].mxu0
      %v605 = vpop.f32.mrb[0].mxu0
      %v606 = vadd.f32 %v310, %v605
      %v607 = vpop.f32.mrb[0].mxu0
      %608 = vmatprep.mubr.bf16.mxu0 0
      %609 = vmatmul.mubr.bf16.gmra.mrb[0].mxu0 %v391
      %v610 = vpop.f32.mrb[0].mxu0
      %v611 = vadd.f32 %v310, %v610
      %v612 = vpop.f32.mrb[0].mxu0
      %v613 = vpop.f32.mrb[0].mxu0
      %v614 = vadd.f32 %v310, %v613
      %v615 = vpop.f32.mrb[0].mxu0
      %616 = vdwg.mxu0
      %vm617 = vcmp.ge.f32.partialorder %v491, 0.0
      %vm618 = vcmp.ge.f32.partialorder %v494, 0.0
      %vm619 = vcmp.ge.f32.partialorder %v499, 0.0
      %vm620 = vcmp.ge.f32.partialorder %v502, 0.0
      %vm621 = vcmp.ge.f32.partialorder %v507, 0.0
      %vm622 = vcmp.ge.f32.partialorder %v510, 0.0
      %vm623 = vcmp.ge.f32.partialorder %v515, 0.0
      %vm624 = vcmp.ge.f32.partialorder %v518, 0.0
      %vm625 = vcmp.ge.f32.partialorder %v523, 0.0
      %vm626 = vcmp.ge.f32.partialorder %v526, 0.0
      %vm627 = vcmp.ge.f32.partialorder %v531, 0.0
      %vm628 = vcmp.ge.f32.partialorder %v534, 0.0
      %vm629 = vcmp.ge.f32.partialorder %v539, 0.0
      %vm630 = vcmp.ge.f32.partialorder %v542, 0.0
      %vm631 = vcmp.ge.f32.partialorder %v547, 0.0
      %vm632 = vcmp.ge.f32.partialorder %v550, 0.0
      %vm633 = vcmp.ge.f32.partialorder %v555, 0.0
      %vm634 = vcmp.ge.f32.partialorder %v558, 0.0
      %vm635 = vcmp.ge.f32.partialorder %v563, 0.0
      %vm636 = vcmp.ge.f32.partialorder %v566, 0.0
      %vm637 = vcmp.ge.f32.partialorder %v571, 0.0
      %vm638 = vcmp.ge.f32.partialorder %v574, 0.0
      %vm639 = vcmp.ge.f32.partialorder %v579, 0.0
      %vm640 = vcmp.ge.f32.partialorder %v582, 0.0
      %vm641 = vcmp.ge.f32.partialorder %v587, 0.0
      %vm642 = vcmp.ge.f32.partialorder %v590, 0.0
      %vm643 = vcmp.ge.f32.partialorder %v595, 0.0
      %vm644 = vcmp.ge.f32.partialorder %v598, 0.0
      %vm645 = vcmp.ge.f32.partialorder %v603, 0.0
      %vm646 = vcmp.ge.f32.partialorder %v606, 0.0
      %vm647 = vcmp.ge.f32.partialorder %v611, 0.0
      %vm648 = vcmp.ge.f32.partialorder %v614, 0.0
      %v649 = vmul.f32 %v491, 0.2
      %v650 = vmul.f32 %v494, 0.2
      %v651 = vmul.f32 %v499, 0.2
      %v652 = vmul.f32 %v502, 0.2
      %v653 = vmul.f32 %v507, 0.2
      %v654 = vmul.f32 %v510, 0.2
      %v655 = vmul.f32 %v515, 0.2
      %v656 = vmul.f32 %v518, 0.2
      %v657 = vmul.f32 %v523, 0.2
      %v658 = vmul.f32 %v526, 0.2
      %v659 = vmul.f32 %v531, 0.2
      %v660 = vmul.f32 %v534, 0.2
      %v661 = vmul.f32 %v539, 0.2
      %v662 = vmul.f32 %v542, 0.2
      %v663 = vmul.f32 %v547, 0.2
      %v664 = vmul.f32 %v550, 0.2
      %v665 = vmul.f32 %v555, 0.2
      %v666 = vmul.f32 %v558, 0.2
      %v667 = vmul.f32 %v563, 0.2
      %v668 = vmul.f32 %v566, 0.2
      %v669 = vmul.f32 %v571, 0.2
      %v670 = vmul.f32 %v574, 0.2
      %v671 = vmul.f32 %v579, 0.2
      %v672 = vmul.f32 %v582, 0.2
      %v673 = vmul.f32 %v587, 0.2
      %v674 = vmul.f32 %v590, 0.2
      %v675 = vmul.f32 %v595, 0.2
      %v676 = vmul.f32 %v598, 0.2
      %v677 = vmul.f32 %v603, 0.2
      %v678 = vmul.f32 %v606, 0.2
      %v679 = vmul.f32 %v611, 0.2
      %v680 = vmul.f32 %v614, 0.2
      %v681 = vsel %vm617, %v491, %v649
      %v682 = vsel %vm618, %v494, %v650
      %v683 = vsel %vm619, %v499, %v651
      %v684 = vsel %vm620, %v502, %v652
      %v685 = vsel %vm621, %v507, %v653
      %v686 = vsel %vm622, %v510, %v654
      %v687 = vsel %vm623, %v515, %v655
      %v688 = vsel %vm624, %v518, %v656
      %v689 = vsel %vm625, %v523, %v657
      %v690 = vsel %vm626, %v526, %v658
      %v691 = vsel %vm627, %v531, %v659
      %v692 = vsel %vm628, %v534, %v660
      %v693 = vsel %vm629, %v539, %v661
      %v694 = vsel %vm630, %v542, %v662
      %v695 = vsel %vm631, %v547, %v663
      %v696 = vsel %vm632, %v550, %v664
      %v697 = vsel %vm633, %v555, %v665
      %v698 = vsel %vm634, %v558, %v666
      %v699 = vsel %vm635, %v563, %v667
      %v700 = vsel %vm636, %v566, %v668
      %v701 = vsel %vm637, %v571, %v669
      %v702 = vsel %vm638, %v574, %v670
      %v703 = vsel %vm639, %v579, %v671
      %v704 = vsel %vm640, %v582, %v672
      %v705 = vsel %vm641, %v587, %v673
      %v706 = vsel %vm642, %v590, %v674
      %v707 = vsel %vm643, %v595, %v675
      %v708 = vsel %vm644, %v598, %v676
      %v709 = vsel %vm645, %v603, %v677
      %v710 = vsel %vm646, %v606, %v678
      %v711 = vsel %vm647, %v611, %v679
      %v712 = vsel %vm648, %v614, %v680
      %v713 = vpack.c.bf16 %v682, %v681
      %v714 = vpack.c.bf16 %v684, %v683
      %v715 = vpack.c.bf16 %v686, %v685
      %v716 = vpack.c.bf16 %v688, %v687
      %v717 = vpack.c.bf16 %v690, %v689
      %v718 = vpack.c.bf16 %v692, %v691
      %v719 = vpack.c.bf16 %v694, %v693
      %v720 = vpack.c.bf16 %v696, %v695
      %v721 = vpack.c.bf16 %v698, %v697
      %v722 = vpack.c.bf16 %v700, %v699
      %v723 = vpack.c.bf16 %v702, %v701
      %v724 = vpack.c.bf16 %v704, %v703
      %v725 = vpack.c.bf16 %v706, %v705
      %v726 = vpack.c.bf16 %v708, %v707
      %v727 = vpack.c.bf16 %v710, %v709
      %v728 = vpack.c.bf16 %v712, %v711
      %v745 = vunpack.c.l.b16 %v713
      %v746 = vunpack.c.h.b16 %v713
      %v747 = vunpack.c.l.b16 %v714
      %v748 = vunpack.c.h.b16 %v714
      %v749 = vunpack.c.l.b16 %v715
      %v750 = vunpack.c.h.b16 %v715
      %v751 = vunpack.c.l.b16 %v716
      %v752 = vunpack.c.h.b16 %v716
      %v753 = vunpack.c.l.b16 %v717
      %v754 = vunpack.c.h.b16 %v717
      %v755 = vunpack.c.l.b16 %v718
      %v756 = vunpack.c.h.b16 %v718
      %v757 = vunpack.c.l.b16 %v719
      %v758 = vunpack.c.h.b16 %v719
      %v759 = vunpack.c.l.b16 %v720
      %v760 = vunpack.c.h.b16 %v720
      %v761 = vunpack.c.l.b16 %v721
      %v762 = vunpack.c.h.b16 %v721
      %v763 = vunpack.c.l.b16 %v722
      %v764 = vunpack.c.h.b16 %v722
      %v765 = vunpack.c.l.b16 %v723
      %v766 = vunpack.c.h.b16 %v723
      %v767 = vunpack.c.l.b16 %v724
      %v768 = vunpack.c.h.b16 %v724
      %v769 = vunpack.c.l.b16 %v725
      %v770 = vunpack.c.h.b16 %v725
      %v771 = vunpack.c.l.b16 %v726
      %v772 = vunpack.c.h.b16 %v726
      %v773 = vunpack.c.l.b16 %v727
      %v774 = vunpack.c.h.b16 %v727
      %v775 = vunpack.c.l.b16 %v728
      %v776 = vunpack.c.h.b16 %v728
      %v777 = vpack.c.b16 %v745, %v745
      %v778 = vpack.c.b16 %v746, %v746
      %v779 = vpack.c.b16 %v747, %v747
      %v780 = vpack.c.b16 %v748, %v748
      %v781 = vpack.c.b16 %v749, %v749
      %v782 = vpack.c.b16 %v750, %v750
      %v783 = vpack.c.b16 %v751, %v751
      %v784 = vpack.c.b16 %v752, %v752
      %v785 = vpack.c.b16 %v753, %v753
      %v786 = vpack.c.b16 %v754, %v754
      %v787 = vpack.c.b16 %v755, %v755
      %v788 = vpack.c.b16 %v756, %v756
      %v789 = vpack.c.b16 %v757, %v757
      %v790 = vpack.c.b16 %v758, %v758
      %v791 = vpack.c.b16 %v759, %v759
      %v792 = vpack.c.b16 %v760, %v760
      %v793 = vpack.c.b16 %v761, %v761
      %v794 = vpack.c.b16 %v762, %v762
      %v795 = vpack.c.b16 %v763, %v763
      %v796 = vpack.c.b16 %v764, %v764
      %v797 = vpack.c.b16 %v765, %v765
      %v798 = vpack.c.b16 %v766, %v766
      %v799 = vpack.c.b16 %v767, %v767
      %v800 = vpack.c.b16 %v768, %v768
      %v801 = vpack.c.b16 %v769, %v769
      %v802 = vpack.c.b16 %v770, %v770
      %v803 = vpack.c.b16 %v771, %v771
      %v804 = vpack.c.b16 %v772, %v772
      %v805 = vpack.c.b16 %v773, %v773
      %v806 = vpack.c.b16 %v774, %v774
      %v807 = vpack.c.b16 %v775, %v775
      %v808 = vpack.c.b16 %v776, %v776
      %841 = vst [vmem:[%s254] sm:$0xf] %v777
      %842 = vst [vmem:[%s254 + $0x4] sm:$0xf] %v778
      %843 = vst [vmem:[%s254 + $0x8] sm:$0xf] %v779
      %844 = vst [vmem:[%s254 + $0xc] sm:$0xf] %v780
      %845 = vst [vmem:[%s254 + $0x10] sm:$0xf] %v781
      %846 = vst [vmem:[%s254 + $0x14] sm:$0xf] %v782
      %847 = vst [vmem:[%s254 + $0x18] sm:$0xf] %v783
      %848 = vst [vmem:[%s254 + $0x1c] sm:$0xf] %v784
      %849 = vst [vmem:[%s254 + $0x20] sm:$0xf] %v785
      %850 = vst [vmem:[%s254 + $0x24] sm:$0xf] %v786
      %851 = vst [vmem:[%s254 + $0x28] sm:$0xf] %v787
      %852 = vst [vmem:[%s254 + $0x2c] sm:$0xf] %v788
      %853 = vst [vmem:[%s254 + $0x30] sm:$0xf] %v789
      %854 = vst [vmem:[%s254 + $0x34] sm:$0xf] %v790
      %855 = vst [vmem:[%s254 + $0x38] sm:$0xf] %v791
      %856 = vst [vmem:[%s254 + $0x3c] sm:$0xf] %v792
      %857 = vst [vmem:[%s254 + $0x40] sm:$0xf] %v793
      %858 = vst [vmem:[%s254 + $0x44] sm:$0xf] %v794
      %859 = vst [vmem:[%s254 + $0x48] sm:$0xf] %v795
      %860 = vst [vmem:[%s254 + $0x4c] sm:$0xf] %v796
      %861 = vst [vmem:[%s254 + $0x50] sm:$0xf] %v797
      %862 = vst [vmem:[%s254 + $0x54] sm:$0xf] %v798
      %863 = vst [vmem:[%s254 + $0x58] sm:$0xf] %v799
      %864 = vst [vmem:[%s254 + $0x5c] sm:$0xf] %v800
      %865 = vst [vmem:[%s254 + $0x60] sm:$0xf] %v801
      %866 = vst [vmem:[%s254 + $0x64] sm:$0xf] %v802
      %867 = vst [vmem:[%s254 + $0x68] sm:$0xf] %v803
      %868 = vst [vmem:[%s254 + $0x6c] sm:$0xf] %v804
      %869 = vst [vmem:[%s254 + $0x70] sm:$0xf] %v805
      %870 = vst [vmem:[%s254 + $0x74] sm:$0xf] %v806
      %871 = vst [vmem:[%s254 + $0x78] sm:$0xf] %v807
      %872 = vst [vmem:[%s254 + $0x7c] sm:$0xf] %v808
      %s873 = smul.u32 32, %s21
      %p874 = scmp.lt.s32.totalorder %s19, 1
      %s875 = scalar_select %p874, %s19, 1
      %p876 = scmp.lt.s32.totalorder %s873, 31
      %s877 = scalar_select %p876, %s873, 31
      %p878 = scmp.lt.s32.totalorder %s20, 0
      %s879 = scalar_select %p878, %s20, 0
      %s880 = sadd.s32 %s879, %s877
      %s881 = smul.addr %s875, 32
      %s882 = sadd.s32 %s880, %s881
      %s883 = smul.addr %s882, 4
      %s884 = scalar_lea.vmem %s3, %s883
      // Predicated region
      $region33: #{_lambda_.5} parent=31 // pred_check
        %p885 = pneg %p135
      $region34: #{_lambda_.5} parent=31 // pred_check_branch
        %887 = sbr.rel (%p885) target = $region36
      $region35: #{_lambda_.5} parent=31 // pred_region
        %s888 = smul.u32 32, %s21
      $region36: #{_lambda_.5} parent=31 // pred_fallthru
        _
    $region32: #{_lambda_.5} parent=5 // pred_fallthru
      _
    %p889 = scmp.le.s32.totalorder 2, %s9
    // Predicated region
    $region37: #{_lambda_.5} parent=5 // pred_check
      %p890 = pneg %p889
    $region38: #{_lambda_.5} parent=5 // pred_check_branch
      %892 = sbr.rel (%p890) target = $region40
    $region39: #{_lambda_.5} parent=5 // pred_region
      %s893 = ssub.s32 %s9, 2
      // Predicated region
      $region41: #{_lambda_.5} parent=39 // pred_check
        %p894 = pneg %p141
      $region42: #{_lambda_.5} parent=39 // pred_check_branch
        %896 = sbr.rel (%p894) target = $region44
      $region43: #{_lambda_.5} parent=39 // pred_region
        %s897 = smul.u32 32, %s24
        %p898 = scmp.lt.s32.totalorder %s22, 1
        %s899 = scalar_select %p898, %s22, 1
        %p900 = scmp.lt.s32.totalorder %s897, 31
        %s901 = scalar_select %p900, %s897, 31
        %p902 = scmp.lt.s32.totalorder %s23, 0
        %s903 = scalar_select %p902, %s23, 0
        %s904 = sadd.s32 %s903, %s901
        %s905 = smul.addr %s899, 32
        %s906 = sadd.s32 %s904, %s905
        %s907 = smul.addr %s906, 4
        %s908 = scalar_lea.vmem %s3, %s907
      $region44: #{_lambda_.5} parent=39 // pred_fallthru
        _
    $region40: #{_lambda_.5} parent=5 // pred_fallthru
      _
  $region6: #{_lambda_.5} parent=0 // loop_footer
    %s13 = sadd.s32 1, %s9
  $region7: #{_lambda_.5} parent=0 // loop_footer_branch
    %8 = sbr.rel target = $region3
  $region8: #{_lambda_.5} parent=0 // loop_exit
    _

// kernel: _lambda_.6
$region0: #{_lambda_.6}
  #allocation0 [shape = 'u32[]', space=smem, size = 0x4, offset = 0x4, fixed_abs, tag = 'smem constant byte address 0x4 - core index']
  #allocation1 [shape = 'u32[144,128]{1,0:T(1,128)}', space=vmem, size = 0x12000, scoped, tag = 'internal scratch']
  %s0 = inlined_call_operand.vmem [shape: bf16[2,64,128], index: 0, kind: input, shape index: {}]
  %s1 = inlined_call_operand.vmem [shape: bf16[128,128], index: 1, kind: input, shape index: {}]
  %s2 = inlined_call_operand.vmem [shape: f32[1,128], index: 2, kind: input, shape index: {}]
  %s3 = inlined_call_operand.vmem [shape: bf16[2,64,128], index: 3, kind: output, shape index: {}]
  %s4 = sld [smem:[#allocation0]]
  $region45: #{_lambda_.6} parent=0
    _
  %s6 = ssub.s32 1, %s4
  %s7 = scalar_select 0, %s6, %s4
  loop: start=0, step=1, limit=4
  $region2: #{_lambda_.6} parent=0 // loop_pre_header
    _
  $region3: #{_lambda_.6} parent=0 // loop_header
    %s9 = sphi 0, %s13
    %p10 = scmp.ge.s32.totalorder %s9, 4
    %s16 = sphi 0, %s28
    %s17 = sphi 0, %s24
    %s18 = sphi 0, %s16
    %s19 = sphi 0, %s17
    %s20 = sphi 0, %s18
    %s21 = sphi 0, %s19
    %s31 = sphi 0, %s33
    %s34 = sphi 0, %s31
    %s35 = sphi 0, %s34
    %s51 = sphi 0, %s35
    %s57 = sphi 0, %s59
    %s60 = sphi 0, %s57
    %s61 = sphi 0, %s60
    %s77 = sphi 0, %s61
    %s83 = sphi 0, %s85
    %s86 = sphi 0, %s83
    %s87 = sphi 0, %s86
    %s103 = sphi 0, %s87
    %s111 = sphi 0, %s113
    %s114 = sphi 0, %s111
    %s115 = sphi 0, %s114
    %s131 = sphi 0, %s115
  $region4: #{_lambda_.6} parent=0 // loop_header_branch
    %12 = sbr.rel (%p10) target = $region8
  $region5: #{_lambda_.6} parent=0 // loop_body
    %s14 = ssub.s32 %s9, 1
    %s15 = ssub.s32 %s9, 2
    %s22 = sadd.s32 1, %s17
    %p23 = scmp.ge.s32.totalorder %s22, 1
    %s24 = scalar_select %p23, 0, %s22
    %s25 = sadd.s32 1, %s16
    %s26 = scalar_select %p23, %s25, %s16
    %p27 = scmp.ge.s32.totalorder %s26, 2
    %s28 = scalar_select %p27, 0, %s26
    %s29 = ssub.s32 %s16, %s28
    %p30 = scmp.eq.s32.totalorder %s29, 0
    %s32 = sadd.s32 %s31, 1
    %s33 = scalar_select %p30, %s31, %s32
    %p36 = pneg %p30
    %p37 = scmp.eq.s32.totalorder %s9, 1
    %p38 = por %p36, %p37
    %p39 = scmp.ne.s32.totalorder %s31, %s34
    %p40 = scmp.eq.s32.totalorder %s9, 0
    %p41 = por %p39, %p40
    %p42 = scmp.ne.s32.totalorder %s31, %s34
    %p43 = scmp.eq.s32.totalorder %s14, 1
    %p44 = por %p42, %p43
    %p45 = scmp.ne.s32.totalorder %s34, %s35
    %p46 = scmp.eq.s32.totalorder %s14, 0
    %p47 = por %p45, %p46
    %p48 = scmp.ne.s32.totalorder %s34, %s35
    %p49 = scmp.eq.s32.totalorder %s15, 1
    %p50 = por %p48, %p49
    %p52 = scmp.ne.s32.totalorder %s35, %s51
    %p53 = scmp.eq.s32.totalorder %s15, 0
    %p54 = por %p52, %p53
    %s55 = ssub.s32 %s17, %s24
    %p56 = scmp.eq.s32.totalorder %s55, 0
    %s58 = sadd.s32 %s57, 1
    %s59 = scalar_select %p56, %s57, %s58
    %p62 = pneg %p56
    %p63 = scmp.eq.s32.totalorder %s9, 1
    %p64 = por %p62, %p63
    %p65 = scmp.ne.s32.totalorder %s57, %s60
    %p66 = scmp.eq.s32.totalorder %s9, 0
    %p67 = por %p65, %p66
    %p68 = scmp.ne.s32.totalorder %s57, %s60
    %p69 = scmp.eq.s32.totalorder %s14, 1
    %p70 = por %p68, %p69
    %p71 = scmp.ne.s32.totalorder %s60, %s61
    %p72 = scmp.eq.s32.totalorder %s14, 0
    %p73 = por %p71, %p72
    %p74 = scmp.ne.s32.totalorder %s60, %s61
    %p75 = scmp.eq.s32.totalorder %s15, 1
    %p76 = por %p74, %p75
    %p78 = scmp.ne.s32.totalorder %s61, %s77
    %p79 = scmp.eq.s32.totalorder %s15, 0
    %p80 = por %p78, %p79
    %s81 = ssub.s32 %s17, %s24
    %p82 = scmp.eq.s32.totalorder %s81, 0
    %s84 = sadd.s32 %s83, 1
    %s85 = scalar_select %p82, %s83, %s84
    %p88 = pneg %p82
    %p89 = scmp.eq.s32.totalorder %s9, 1
    %p90 = por %p88, %p89
    %p91 = scmp.ne.s32.totalorder %s83, %s86
    %p92 = scmp.eq.s32.totalorder %s9, 0
    %p93 = por %p91, %p92
    %p94 = scmp.ne.s32.totalorder %s83, %s86
    %p95 = scmp.eq.s32.totalorder %s14, 1
    %p96 = por %p94, %p95
    %p97 = scmp.ne.s32.totalorder %s86, %s87
    %p98 = scmp.eq.s32.totalorder %s14, 0
    %p99 = por %p97, %p98
    %p100 = scmp.ne.s32.totalorder %s86, %s87
    %p101 = scmp.eq.s32.totalorder %s15, 1
    %p102 = por %p100, %p101
    %p104 = scmp.ne.s32.totalorder %s87, %s103
    %p105 = scmp.eq.s32.totalorder %s15, 0
    %p106 = por %p104, %p105
    %s107 = ssub.s32 %s16, %s28
    %s108 = ssub.s32 %s17, %s24
    %s109 = sor.u32 %s107, %s108
    %p110 = scmp.eq.s32.totalorder %s109, 0
    %s112 = sadd.s32 %s111, 1
    %s113 = scalar_select %p110, %s111, %s112
    %p116 = pneg %p110
    %p117 = scmp.eq.s32.totalorder %s9, 1
    %p118 = por %p116, %p117
    %p119 = scmp.ne.s32.totalorder %s111, %s114
    %p120 = scmp.eq.s32.totalorder %s9, 0
    %p121 = por %p119, %p120
    %p122 = scmp.ne.s32.totalorder %s111, %s114
    %p123 = scmp.eq.s32.totalorder %s14, 1
    %p124 = por %p122, %p123
    %p125 = scmp.ne.s32.totalorder %s114, %s115
    %p126 = scmp.eq.s32.totalorder %s14, 0
    %p127 = por %p125, %p126
    %p128 = scmp.ne.s32.totalorder %s114, %s115
    %p129 = scmp.eq.s32.totalorder %s15, 1
    %p130 = por %p128, %p129
    %p132 = scmp.ne.s32.totalorder %s115, %s131
    %p133 = scmp.eq.s32.totalorder %s15, 0
    %p134 = por %p132, %p133
    %p135 = scmp.le.s32.totalorder 1, %s9
    %p136 = scmp.lt.s32.totalorder %s9, 3
    %p137 = pnand %p135, %p136
    %p138 = pneg %p137
    // Predicated region
    $region9: #{_lambda_.6} parent=5 // pred_check
      _
    $region10: #{_lambda_.6} parent=5 // pred_check_branch
      %140 = sbr.rel (%p137) target = $region12
    $region11: #{_lambda_.6} parent=5 // pred_region
      %s141 = ssub.s32 %s9, 1
      // Predicated region
      $region13: #{_lambda_.6} parent=11 // pred_check
        %p142 = pneg %p73
      $region14: #{_lambda_.6} parent=11 // pred_check_branch
        %144 = sbr.rel (%p142) target = $region16
      $region15: #{_lambda_.6} parent=11 // pred_region
        %p145 = scmp.lt.s32.totalorder %s19, 0
        %s146 = scalar_select %p145, %s19, 0
        %s147 = smul.addr %s146, 4
        %s148 = scalar_lea.vmem %s1, %s147
      $region16: #{_lambda_.6} parent=11 // pred_fallthru
        _
      // Predicated region
      $region17: #{_lambda_.6} parent=11 // pred_check
        %p149 = pneg %p99
      $region18: #{_lambda_.6} parent=11 // pred_check_branch
        %151 = sbr.rel (%p149) target = $region20
      $region19: #{_lambda_.6} parent=11 // pred_region
        %p152 = scmp.lt.s32.totalorder %s19, 0
        %s153 = scalar_select %p152, %s19, 0
        %s154 = scalar_lea.vmem %s2, %s153
      $region20: #{_lambda_.6} parent=11 // pred_fallthru
        _
    $region12: #{_lambda_.6} parent=5 // pred_fallthru
      _
    %p155 = scmp.lt.s32.totalorder %s9, 2
    // Predicated region
    $region21: #{_lambda_.6} parent=5 // pred_check
      %p156 = pneg %p155
    $region22: #{_lambda_.6} parent=5 // pred_check_branch
      %158 = sbr.rel (%p156) target = $region24
    $region23: #{_lambda_.6} parent=5 // pred_region
      // Predicated region
      $region25: #{_lambda_.6} parent=23 // pred_check
        %p159 = pneg %p41
      $region26: #{_lambda_.6} parent=23 // pred_check_branch
        %161 = sbr.rel (%p159) target = $region28
      $region27: #{_lambda_.6} parent=23 // pred_region
        %p162 = scmp.lt.s32.totalorder %s16, 1
        %s163 = scalar_select %p162, %s16, 1
        %s164 = smul.addr %s163, 8
        %s165 = smul.addr %s164, 4
        %s166 = scalar_lea.vmem %s0, %s165
      $region28: #{_lambda_.6} parent=23 // pred_fallthru
        _
    $region24: #{_lambda_.6} parent=5 // pred_fallthru
      _
    %p167 = scmp.le.s32.totalorder 1, %s9
    %p168 = scmp.lt.s32.totalorder %s9, 3
    %p169 = pnand %p167, %p168
    %p170 = pneg %p169
    // Predicated region
    $region29: #{_lambda_.6} parent=5 // pred_check
      _
    $region30: #{_lambda_.6} parent=5 // pred_check_branch
      %172 = sbr.rel (%p169) target = $region32
    $region31: #{_lambda_.6} parent=5 // pred_region
      %s173 = ssub.s32 %s9, 1
      %p174 = scmp.lt.s32.totalorder %s18, 1
      %s175 = scalar_select %p174, %s18, 1
      %s176 = smul.addr %s175, 8
      %s177 = smul.addr %s176, 4
      %s178 = scalar_lea.vmem %s0, %s177
      %p179 = pneg %p47
      %p180 = pneg %p44
      %p181 = scmp.lt.s32.totalorder %s19, 0
      %s182 = scalar_select %p181, %s19, 0
      %s183 = smul.addr %s182, 4
      %s184 = scalar_lea.vmem %s1, %s183
      %p185 = pneg %p73
      %p186 = pneg %p70
      %p187 = scmp.lt.s32.totalorder %s19, 0
      %s188 = scalar_select %p187, %s19, 0
      %s189 = scalar_lea.vmem %s2, %s188
      %p190 = pneg %p99
      %p191 = pneg %p96
      %p192 = pneg %p127
      %p193 = pneg %p124
      %p194 = scmp.lt.s32.totalorder %s18, 1
      %s195 = scalar_select %p194, %s18, 1
      %p196 = scmp.lt.s32.totalorder %s19, 0
      %s197 = scalar_select %p196, %s19, 0
      %s198 = smul.addr %s195, 8
      %s199 = sadd.s32 %s197, %s198
      %s200 = smul.addr %s199, 4
      %s201 = scalar_lea.vmem %s3, %s200
      %p202 = scmp.lt.s32.totalorder %s18, 1
      %s203 = scalar_select %p202, %s18, 1
      %s204 = smul.addr %s203, 8
      %s205 = smul.addr %s204, 4
      %s206 = scalar_lea.vmem %s0, %s205
      %p207 = scmp.lt.s32.totalorder %s19, 0
      %s208 = scalar_select %p207, %s19, 0
      %s209 = smul.addr %s208, 4
      %s210 = scalar_lea.vmem %s1, %s209
      %p211 = scmp.lt.s32.totalorder %s19, 0
      %s212 = scalar_select %p211, %s19, 0
      %s213 = scalar_lea.vmem %s2, %s212
      %p214 = scmp.lt.s32.totalorder %s18, 1
      %s215 = scalar_select %p214, %s18, 1
      %p216 = scmp.lt.s32.totalorder %s19, 0
      %s217 = scalar_select %p216, %s19, 0
      %s218 = smul.addr %s215, 8
      %s219 = sadd.s32 %s217, %s218
      %s220 = smul.addr %s219, 4
      %s221 = scalar_lea.vmem %s3, %s220
      %v223 = vld [vmem:[%s206] sm:$0xf]
      %v224 = vld [vmem:[%s206 + $0x4] sm:$0xf]
      %v225 = vld [vmem:[%s206 + $0x8] sm:$0xf]
      %v226 = vld [vmem:[%s206 + $0xc] sm:$0xf]
      %v227 = vld [vmem:[%s206 + $0x10] sm:$0xf]
      %v228 = vld [vmem:[%s206 + $0x14] sm:$0xf]
      %v229 = vld [vmem:[%s206 + $0x18] sm:$0xf]
      %v230 = vld [vmem:[%s206 + $0x1c] sm:$0xf]
      %v231 = vld [vmem:[%s210] sm:$0xf]
      %v232 = vld [vmem:[%s210 + $0x4] sm:$0xf]
      %v233 = vld [vmem:[%s210 + $0x8] sm:$0xf]
      %v234 = vld [vmem:[%s210 + $0xc] sm:$0xf]
      %v235 = vld [vmem:[%s210 + $0x10] sm:$0xf]
      %v236 = vld [vmem:[%s210 + $0x14] sm:$0xf]
      %v237 = vld [vmem:[%s210 + $0x18] sm:$0xf]
      %v238 = vld [vmem:[%s210 + $0x1c] sm:$0xf]
      %v239 = vld [vmem:[%s210 + $0x20] sm:$0xf]
      %v240 = vld [vmem:[%s210 + $0x24] sm:$0xf]
      %v241 = vld [vmem:[%s210 + $0x28] sm:$0xf]
      %v242 = vld [vmem:[%s210 + $0x2c] sm:$0xf]
      %v243 = vld [vmem:[%s210 + $0x30] sm:$0xf]
      %v244 = vld [vmem:[%s210 + $0x34] sm:$0xf]
      %v245 = vld [vmem:[%s210 + $0x38] sm:$0xf]
      %v246 = vld [vmem:[%s210 + $0x3c] sm:$0xf]
      %v247 = vld [vmem:[%s213] sm:$0x1]
      %v249 = vlaneseq
      %v250 = vshrl.u32 %v249, 7
      %v251 = vsub.s32 0, %v250
      %v252 = vrot.slane %v247, %v251
      %v262 = vunpack.c.l.b16 %v223
      %v263 = vunpack.c.l.b16 %v224
      %v264 = vunpack.c.l.b16 %v225
      %v265 = vunpack.c.l.b16 %v226
      %v266 = vunpack.c.l.b16 %v227
      %v267 = vunpack.c.l.b16 %v228
      %v268 = vunpack.c.l.b16 %v229
      %v269 = vunpack.c.l.b16 %v230
      %v270 = vpack.c.b16 %v263, %v262
      %v271 = vpack.c.b16 %v265, %v264
      %v272 = vpack.c.b16 %v267, %v266
      %v273 = vpack.c.b16 %v269, %v268
      %v294 = vunpack.c.l.b16 %v231
      %v295 = vunpack.c.l.b16 %v232
      %v296 = vunpack.c.l.b16 %v233
      %v297 = vunpack.c.l.b16 %v234
      %v298 = vunpack.c.l.b16 %v235
      %v299 = vunpack.c.l.b16 %v236
      %v300 = vunpack.c.l.b16 %v237
      %v301 = vunpack.c.l.b16 %v238
      %v302 = vunpack.c.l.b16 %v239
      %v303 = vunpack.c.l.b16 %v240
      %v304 = vunpack.c.l.b16 %v241
      %v305 = vunpack.c.l.b16 %v242
      %v306 = vunpack.c.l.b16 %v243
      %v307 = vunpack.c.l.b16 %v244
      %v308 = vunpack.c.l.b16 %v245
      %v309 = vunpack.c.l.b16 %v246
      %v310 = vpack.c.b16 %v295, %v294
      %v311 = vpack.c.b16 %v297, %v296
      %v312 = vpack.c.b16 %v299, %v298
      %v313 = vpack.c.b16 %v301, %v300
      %v314 = vpack.c.b16 %v303, %v302
      %v315 = vpack.c.b16 %v305, %v304
      %v316 = vpack.c.b16 %v307, %v306
      %v317 = vpack.c.b16 %v309, %v308
      %326 = vmatprep.subr.bf16.mxu0 0
      %327 = vmatpush1.bf16.msra.mxu0 %v310
      %328 = vmatprep.subr.bf16.mxu0 0
      %329 = vmatpush1.bf16.msra.mxu0 %v311
      %330 = vmatprep.subr.bf16.mxu0 0
      %331 = vmatpush1.bf16.msra.mxu0 %v312
      %332 = vmatprep.subr.bf16.mxu0 0
      %333 = vmatpush1.bf16.msra.mxu0 %v313
      %334 = vmatprep.subr.bf16.mxu0 0
      %335 = vmatpush1.bf16.msra.mxu0 %v314
      %336 = vmatprep.subr.bf16.mxu0 0
      %337 = vmatpush1.bf16.msra.mxu0 %v315
      %338 = vmatprep.subr.bf16.mxu0 0
      %339 = vmatpush1.bf16.msra.mxu0 %v316
      %340 = vmatprep.subr.bf16.mxu0 0
      %341 = vmatpush1.bf16.msra.mxu0 %v317
      %342 = vmatprep.subr.bf16.mxu0 0
      %343 = vmatpush1.bf16.msra.mxu0 0
      %344 = vmatprep.subr.bf16.mxu0 0
      %345 = vmatpush1.bf16.msra.mxu0 0
      %346 = vmatprep.subr.bf16.mxu0 0
      %347 = vmatpush1.bf16.msra.mxu0 0
      %348 = vmatprep.subr.bf16.mxu0 0
      %349 = vmatpush1.bf16.msra.mxu0 0
      %350 = vmatprep.subr.bf16.mxu0 0
      %351 = vmatpush1.bf16.msra.mxu0 0
      %352 = vmatprep.subr.bf16.mxu0 0
      %353 = vmatpush1.bf16.msra.mxu0 0
      %354 = vmatprep.subr.bf16.mxu0 0
      %355 = vmatpush1.bf16.msra.mxu0 0
      %356 = vmatprep.subr.bf16.mxu0 0
      %357 = vmatpush1.bf16.msra.mxu0 0
      %358 = vmatprep.mubr.bf16.mxu0 0
      %359 = vmatmul.mubr.bf16.gmra.mrb[0].mxu0 %v270
      %v360 = vpop.f32.mrb[0].mxu0
      %v361 = vadd.f32 %v252, %v360
      %v362 = vpop.f32.mrb[0].mxu0
      %v363 = vpop.f32.mrb[0].mxu0
      %v364 = vadd.f32 %v252, %v363
      %v365 = vpop.f32.mrb[0].mxu0
      %366 = vmatprep.mubr.bf16.mxu0 0
      %367 = vmatmul.mubr.bf16.gmra.mrb[0].mxu0 %v271
      %v368 = vpop.f32.mrb[0].mxu0
      %v369 = vadd.f32 %v252, %v368
      %v370 = vpop.f32.mrb[0].mxu0
      %v371 = vpop.f32.mrb[0].mxu0
      %v372 = vadd.f32 %v252, %v371
      %v373 = vpop.f32.mrb[0].mxu0
      %374 = vmatprep.mubr.bf16.mxu0 0
      %375 = vmatmul.mubr.bf16.gmra.mrb[0].mxu0 %v272
      %v376 = vpop.f32.mrb[0].mxu0
      %v377 = vadd.f32 %v252, %v376
      %v378 = vpop.f32.mrb[0].mxu0
      %v379 = vpop.f32.mrb[0].mxu0
      %v380 = vadd.f32 %v252, %v379
      %v381 = vpop.f32.mrb[0].mxu0
      %382 = vmatprep.mubr.bf16.mxu0 0
      %383 = vmatmul.mubr.bf16.gmra.mrb[0].mxu0 %v273
      %v384 = vpop.f32.mrb[0].mxu0
      %v385 = vadd.f32 %v252, %v384
      %v386 = vpop.f32.mrb[0].mxu0
      %v387 = vpop.f32.mrb[0].mxu0
      %v388 = vadd.f32 %v252, %v387
      %v389 = vpop.f32.mrb[0].mxu0
      %390 = vdwg.mxu0
      %v391 = vadd.f32 %v361, %v364
      %v392 = vadd.f32 %v391, %v369
      %v393 = vadd.f32 %v392, %v372
      %v394 = vadd.f32 %v393, %v377
      %v395 = vadd.f32 %v394, %v380
      %v396 = vadd.f32 %v395, %v385
      %v397 = vadd.f32 %v396, %v388
      %v398 = vrot.slane %v397, 4
      %v399 = vadd.f32 %v397, %v398
      %v400 = vrot.slane %v399, 2
      %v401 = vadd.f32 %v399, %v400
      %v402 = vrot.slane %v401, 1
      %v403 = vadd.f32 %v401, %v402
      %v404 = vmul.f32 %v403, 0.015625
      %v405 = vmul.f32 %v361, %v361
      %v406 = vmul.f32 %v364, %v364
      %v407 = vmul.f32 %v369, %v369
      %v408 = vmul.f32 %v372, %v372
      %v409 = vmul.f32 %v377, %v377
      %v410 = vmul.f32 %v380, %v380
      %v411 = vmul.f32 %v385, %v385
      %v412 = vmul.f32 %v388, %v388
      %v413 = vadd.f32 %v405, %v406
      %v414 = vadd.f32 %v413, %v407
      %v415 = vadd.f32 %v414, %v408
      %v416 = vadd.f32 %v415, %v409
      %v417 = vadd.f32 %v416, %v410
      %v418 = vadd.f32 %v417, %v411
      %v419 = vadd.f32 %v418, %v412
      %v420 = vrot.slane %v419, 4
      %v421 = vadd.f32 %v419, %v420
      %v422 = vrot.slane %v421, 2
      %v423 = vadd.f32 %v421, %v422
      %v424 = vrot.slane %v423, 1
      %v425 = vadd.f32 %v423, %v424
      %v426 = vmul.f32 %v425, 0.015625
      %v427 = vmul.f32 %v404, %v404
      %v428 = vsub.f32 %v426, %v427
      %v429 = vmax.f32 %v428, 0.0
      %v430 = vsub.f32 %v361, %v404
      %v431 = vsub.f32 %v364, %v404
      %v432 = vsub.f32 %v369, %v404
      %v433 = vsub.f32 %v372, %v404
      %v434 = vsub.f32 %v377, %v404
      %v435 = vsub.f32 %v380, %v404
      %v436 = vsub.f32 %v385, %v404
      %v437 = vsub.f32 %v388, %v404
      %v438 = vadd.f32 %v429, 1e-05
      %v439 = vrsqrt.pop %v438
      %v440 = vmul.f32 %v430, %v439
      %v441 = vmul.f32 %v431, %v439
      %v442 = vmul.f32 %v432, %v439
      %v443 = vmul.f32 %v433, %v439
      %v444 = vmul.f32 %v434, %v439
      %v445 = vmul.f32 %v435, %v439
      %v446 = vmul.f32 %v436, %v439
      %v447 = vmul.f32 %v437, %v439
      %vm448 = vcmp.ge.f32.partialorder %v440, 0.0
      %vm449 = vcmp.ge.f32.partialorder %v441, 0.0
      %vm450 = vcmp.ge.f32.partialorder %v442, 0.0
      %vm451 = vcmp.ge.f32.partialorder %v443, 0.0
      %vm452 = vcmp.ge.f32.partialorder %v444, 0.0
      %vm453 = vcmp.ge.f32.partialorder %v445, 0.0
      %vm454 = vcmp.ge.f32.partialorder %v446, 0.0
      %vm455 = vcmp.ge.f32.partialorder %v447, 0.0
      %v456 = vmul.f32 %v440, 0.2
      %v457 = vmul.f32 %v441, 0.2
      %v458 = vmul.f32 %v442, 0.2
      %v459 = vmul.f32 %v443, 0.2
      %v460 = vmul.f32 %v444, 0.2
      %v461 = vmul.f32 %v445, 0.2
      %v462 = vmul.f32 %v446, 0.2
      %v463 = vmul.f32 %v447, 0.2
      %v464 = vsel %vm448, %v440, %v456
      %v465 = vsel %vm449, %v441, %v457
      %v466 = vsel %vm450, %v442, %v458
      %v467 = vsel %vm451, %v443, %v459
      %v468 = vsel %vm452, %v444, %v460
      %v469 = vsel %vm453, %v445, %v461
      %v470 = vsel %vm454, %v446, %v462
      %v471 = vsel %vm455, %v447, %v463
      %v472 = vpack.c.bf16 %v465, %v464
      %v473 = vpack.c.bf16 %v467, %v466
      %v474 = vpack.c.bf16 %v469, %v468
      %v475 = vpack.c.bf16 %v471, %v470
      %v480 = vunpack.c.l.b16 %v472
      %v481 = vunpack.c.h.b16 %v472
      %v482 = vunpack.c.l.b16 %v473
      %v483 = vunpack.c.h.b16 %v473
      %v484 = vunpack.c.l.b16 %v474
      %v485 = vunpack.c.h.b16 %v474
      %v486 = vunpack.c.l.b16 %v475
      %v487 = vunpack.c.h.b16 %v475
      %v488 = vpack.c.b16 %v480, %v480
      %v489 = vpack.c.b16 %v481, %v481
      %v490 = vpack.c.b16 %v482, %v482
      %v491 = vpack.c.b16 %v483, %v483
      %v492 = vpack.c.b16 %v484, %v484
      %v493 = vpack.c.b16 %v485, %v485
      %v494 = vpack.c.b16 %v486, %v486
      %v495 = vpack.c.b16 %v487, %v487
      %504 = vst [vmem:[%s221] sm:$0xf] %v488
      %505 = vst [vmem:[%s221 + $0x4] sm:$0xf] %v489
      %506 = vst [vmem:[%s221 + $0x8] sm:$0xf] %v490
      %507 = vst [vmem:[%s221 + $0xc] sm:$0xf] %v491
      %508 = vst [vmem:[%s221 + $0x10] sm:$0xf] %v492
      %509 = vst [vmem:[%s221 + $0x14] sm:$0xf] %v493
      %510 = vst [vmem:[%s221 + $0x18] sm:$0xf] %v494
      %511 = vst [vmem:[%s221 + $0x1c] sm:$0xf] %v495
      %p512 = scmp.lt.s32.totalorder %s18, 1
      %s513 = scalar_select %p512, %s18, 1
      %p514 = scmp.lt.s32.totalorder %s19, 0
      %s515 = scalar_select %p514, %s19, 0
      %s516 = smul.addr %s513, 8
      %s517 = sadd.s32 %s515, %s516
      %s518 = smul.addr %s517, 4
      %s519 = scalar_lea.vmem %s3, %s518
      // Predicated region
      $region33: #{_lambda_.6} parent=31 // pred_check
        %p520 = pneg %p124
      $region34: #{_lambda_.6} parent=31 // pred_check_branch
        %522 = sbr.rel (%p520) target = $region36
      $region35: #{_lambda_.6} parent=31 // pred_region
        _
      $region36: #{_lambda_.6} parent=31 // pred_fallthru
        _
    $region32: #{_lambda_.6} parent=5 // pred_fallthru
      _
    %p523 = scmp.le.s32.totalorder 2, %s9
    // Predicated region
    $region37: #{_lambda_.6} parent=5 // pred_check
      %p524 = pneg %p523
    $region38: #{_lambda_.6} parent=5 // pred_check_branch
      %526 = sbr.rel (%p524) target = $region40
    $region39: #{_lambda_.6} parent=5 // pred_region
      %s527 = ssub.s32 %s9, 2
      // Predicated region
      $region41: #{_lambda_.6} parent=39 // pred_check
        %p528 = pneg %p130
      $region42: #{_lambda_.6} parent=39 // pred_check_branch
        %530 = sbr.rel (%p528) target = $region44
      $region43: #{_lambda_.6} parent=39 // pred_region
        %p531 = scmp.lt.s32.totalorder %s20, 1
        %s532 = scalar_select %p531, %s20, 1
        %p533 = scmp.lt.s32.totalorder %s21, 0
        %s534 = scalar_select %p533, %s21, 0
        %s535 = smul.addr %s532, 8
        %s536 = sadd.s32 %s534, %s535
        %s537 = smul.addr %s536, 4
        %s538 = scalar_lea.vmem %s3, %s537
      $region44: #{_lambda_.6} parent=39 // pred_fallthru
        _
    $region40: #{_lambda_.6} parent=5 // pred_fallthru
      _
  $region6: #{_lambda_.6} parent=0 // loop_footer
    %s13 = sadd.s32 1, %s9
  $region7: #{_lambda_.6} parent=0 // loop_footer_branch
    %8 = sbr.rel target = $region3
  $region8: #{_lambda_.6} parent=0 // loop_exit
    _

// kernel: _lambda_.7
$region0: #{_lambda_.7}
  #allocation0 [shape = 'u32[]', space=smem, size = 0x4, offset = 0x4, fixed_abs, tag = 'smem constant byte address 0x4 - core index']
  #allocation1 [shape = 'u32[144,128]{1,0:T(1,128)}', space=vmem, size = 0x12000, scoped, tag = 'internal scratch']
  %s0 = inlined_call_operand.vmem [shape: bf16[2,16,256], index: 0, kind: input, shape index: {}]
  %s1 = inlined_call_operand.vmem [shape: bf16[256,128], index: 1, kind: input, shape index: {}]
  %s2 = inlined_call_operand.vmem [shape: f32[1,128], index: 2, kind: input, shape index: {}]
  %s3 = inlined_call_operand.vmem [shape: bf16[2,16,128], index: 3, kind: output, shape index: {}]
  %s4 = sld [smem:[#allocation0]]
  $region45: #{_lambda_.7} parent=0
    _
  %s6 = ssub.s32 1, %s4
  %s7 = scalar_select 0, %s6, %s4
  loop: start=0, step=1, limit=4
  $region2: #{_lambda_.7} parent=0 // loop_pre_header
    _
  $region3: #{_lambda_.7} parent=0 // loop_header
    %s9 = sphi 0, %s13
    %p10 = scmp.ge.s32.totalorder %s9, 4
    %s16 = sphi 0, %s28
    %s17 = sphi 0, %s24
    %s18 = sphi 0, %s16
    %s19 = sphi 0, %s17
    %s20 = sphi 0, %s18
    %s21 = sphi 0, %s19
    %s31 = sphi 0, %s33
    %s34 = sphi 0, %s31
    %s35 = sphi 0, %s34
    %s51 = sphi 0, %s35
    %s57 = sphi 0, %s59
    %s60 = sphi 0, %s57
    %s61 = sphi 0, %s60
    %s77 = sphi 0, %s61
    %s83 = sphi 0, %s85
    %s86 = sphi 0, %s83
    %s87 = sphi 0, %s86
    %s103 = sphi 0, %s87
    %s111 = sphi 0, %s113
    %s114 = sphi 0, %s111
    %s115 = sphi 0, %s114
    %s131 = sphi 0, %s115
  $region4: #{_lambda_.7} parent=0 // loop_header_branch
    %12 = sbr.rel (%p10) target = $region8
  $region5: #{_lambda_.7} parent=0 // loop_body
    %s14 = ssub.s32 %s9, 1
    %s15 = ssub.s32 %s9, 2
    %s22 = sadd.s32 1, %s17
    %p23 = scmp.ge.s32.totalorder %s22, 1
    %s24 = scalar_select %p23, 0, %s22
    %s25 = sadd.s32 1, %s16
    %s26 = scalar_select %p23, %s25, %s16
    %p27 = scmp.ge.s32.totalorder %s26, 2
    %s28 = scalar_select %p27, 0, %s26
    %s29 = ssub.s32 %s16, %s28
    %p30 = scmp.eq.s32.totalorder %s29, 0
    %s32 = sadd.s32 %s31, 1
    %s33 = scalar_select %p30, %s31, %s32
    %p36 = pneg %p30
    %p37 = scmp.eq.s32.totalorder %s9, 1
    %p38 = por %p36, %p37
    %p39 = scmp.ne.s32.totalorder %s31, %s34
    %p40 = scmp.eq.s32.totalorder %s9, 0
    %p41 = por %p39, %p40
    %p42 = scmp.ne.s32.totalorder %s31, %s34
    %p43 = scmp.eq.s32.totalorder %s14, 1
    %p44 = por %p42, %p43
    %p45 = scmp.ne.s32.totalorder %s34, %s35
    %p46 = scmp.eq.s32.totalorder %s14, 0
    %p47 = por %p45, %p46
    %p48 = scmp.ne.s32.totalorder %s34, %s35
    %p49 = scmp.eq.s32.totalorder %s15, 1
    %p50 = por %p48, %p49
    %p52 = scmp.ne.s32.totalorder %s35, %s51
    %p53 = scmp.eq.s32.totalorder %s15, 0
    %p54 = por %p52, %p53
    %s55 = ssub.s32 %s17, %s24
    %p56 = scmp.eq.s32.totalorder %s55, 0
    %s58 = sadd.s32 %s57, 1
    %s59 = scalar_select %p56, %s57, %s58
    %p62 = pneg %p56
    %p63 = scmp.eq.s32.totalorder %s9, 1
    %p64 = por %p62, %p63
    %p65 = scmp.ne.s32.totalorder %s57, %s60
    %p66 = scmp.eq.s32.totalorder %s9, 0
    %p67 = por %p65, %p66
    %p68 = scmp.ne.s32.totalorder %s57, %s60
    %p69 = scmp.eq.s32.totalorder %s14, 1
    %p70 = por %p68, %p69
    %p71 = scmp.ne.s32.totalorder %s60, %s61
    %p72 = scmp.eq.s32.totalorder %s14, 0
    %p73 = por %p71, %p72
    %p74 = scmp.ne.s32.totalorder %s60, %s61
    %p75 = scmp.eq.s32.totalorder %s15, 1
    %p76 = por %p74, %p75
    %p78 = scmp.ne.s32.totalorder %s61, %s77
    %p79 = scmp.eq.s32.totalorder %s15, 0
    %p80 = por %p78, %p79
    %s81 = ssub.s32 %s17, %s24
    %p82 = scmp.eq.s32.totalorder %s81, 0
    %s84 = sadd.s32 %s83, 1
    %s85 = scalar_select %p82, %s83, %s84
    %p88 = pneg %p82
    %p89 = scmp.eq.s32.totalorder %s9, 1
    %p90 = por %p88, %p89
    %p91 = scmp.ne.s32.totalorder %s83, %s86
    %p92 = scmp.eq.s32.totalorder %s9, 0
    %p93 = por %p91, %p92
    %p94 = scmp.ne.s32.totalorder %s83, %s86
    %p95 = scmp.eq.s32.totalorder %s14, 1
    %p96 = por %p94, %p95
    %p97 = scmp.ne.s32.totalorder %s86, %s87
    %p98 = scmp.eq.s32.totalorder %s14, 0
    %p99 = por %p97, %p98
    %p100 = scmp.ne.s32.totalorder %s86, %s87
    %p101 = scmp.eq.s32.totalorder %s15, 1
    %p102 = por %p100, %p101
    %p104 = scmp.ne.s32.totalorder %s87, %s103
    %p105 = scmp.eq.s32.totalorder %s15, 0
    %p106 = por %p104, %p105
    %s107 = ssub.s32 %s16, %s28
    %s108 = ssub.s32 %s17, %s24
    %s109 = sor.u32 %s107, %s108
    %p110 = scmp.eq.s32.totalorder %s109, 0
    %s112 = sadd.s32 %s111, 1
    %s113 = scalar_select %p110, %s111, %s112
    %p116 = pneg %p110
    %p117 = scmp.eq.s32.totalorder %s9, 1
    %p118 = por %p116, %p117
    %p119 = scmp.ne.s32.totalorder %s111, %s114
    %p120 = scmp.eq.s32.totalorder %s9, 0
    %p121 = por %p119, %p120
    %p122 = scmp.ne.s32.totalorder %s111, %s114
    %p123 = scmp.eq.s32.totalorder %s14, 1
    %p124 = por %p122, %p123
    %p125 = scmp.ne.s32.totalorder %s114, %s115
    %p126 = scmp.eq.s32.totalorder %s14, 0
    %p127 = por %p125, %p126
    %p128 = scmp.ne.s32.totalorder %s114, %s115
    %p129 = scmp.eq.s32.totalorder %s15, 1
    %p130 = por %p128, %p129
    %p132 = scmp.ne.s32.totalorder %s115, %s131
    %p133 = scmp.eq.s32.totalorder %s15, 0
    %p134 = por %p132, %p133
    %p135 = scmp.le.s32.totalorder 1, %s9
    %p136 = scmp.lt.s32.totalorder %s9, 3
    %p137 = pnand %p135, %p136
    %p138 = pneg %p137
    // Predicated region
    $region9: #{_lambda_.7} parent=5 // pred_check
      _
    $region10: #{_lambda_.7} parent=5 // pred_check_branch
      %140 = sbr.rel (%p137) target = $region12
    $region11: #{_lambda_.7} parent=5 // pred_region
      %s141 = ssub.s32 %s9, 1
      // Predicated region
      $region13: #{_lambda_.7} parent=11 // pred_check
        %p142 = pneg %p73
      $region14: #{_lambda_.7} parent=11 // pred_check_branch
        %144 = sbr.rel (%p142) target = $region16
      $region15: #{_lambda_.7} parent=11 // pred_region
        %p145 = scmp.lt.s32.totalorder %s19, 0
        %s146 = scalar_select %p145, %s19, 0
        %s147 = smul.addr %s146, 4
        %s148 = scalar_lea.vmem %s1, %s147
      $region16: #{_lambda_.7} parent=11 // pred_fallthru
        _
      // Predicated region
      $region17: #{_lambda_.7} parent=11 // pred_check
        %p149 = pneg %p99
      $region18: #{_lambda_.7} parent=11 // pred_check_branch
        %151 = sbr.rel (%p149) target = $region20
      $region19: #{_lambda_.7} parent=11 // pred_region
        %p152 = scmp.lt.s32.totalorder %s19, 0
        %s153 = scalar_select %p152, %s19, 0
        %s154 = scalar_lea.vmem %s2, %s153
      $region20: #{_lambda_.7} parent=11 // pred_fallthru
        _
    $region12: #{_lambda_.7} parent=5 // pred_fallthru
      _
    %p155 = scmp.lt.s32.totalorder %s9, 2
    // Predicated region
    $region21: #{_lambda_.7} parent=5 // pred_check
      %p156 = pneg %p155
    $region22: #{_lambda_.7} parent=5 // pred_check_branch
      %158 = sbr.rel (%p156) target = $region24
    $region23: #{_lambda_.7} parent=5 // pred_region
      // Predicated region
      $region25: #{_lambda_.7} parent=23 // pred_check
        %p159 = pneg %p41
      $region26: #{_lambda_.7} parent=23 // pred_check_branch
        %161 = sbr.rel (%p159) target = $region28
      $region27: #{_lambda_.7} parent=23 // pred_region
        %p162 = scmp.lt.s32.totalorder %s16, 1
        %s163 = scalar_select %p162, %s16, 1
        %s164 = smul.addr %s163, 4
        %s165 = smul.addr %s164, 4
        %s166 = scalar_lea.vmem %s0, %s165
      $region28: #{_lambda_.7} parent=23 // pred_fallthru
        _
    $region24: #{_lambda_.7} parent=5 // pred_fallthru
      _
    %p167 = scmp.le.s32.totalorder 1, %s9
    %p168 = scmp.lt.s32.totalorder %s9, 3
    %p169 = pnand %p167, %p168
    %p170 = pneg %p169
    // Predicated region
    $region29: #{_lambda_.7} parent=5 // pred_check
      _
    $region30: #{_lambda_.7} parent=5 // pred_check_branch
      %172 = sbr.rel (%p169) target = $region32
    $region31: #{_lambda_.7} parent=5 // pred_region
      %s173 = ssub.s32 %s9, 1
      %p174 = scmp.lt.s32.totalorder %s18, 1
      %s175 = scalar_select %p174, %s18, 1
      %s176 = smul.addr %s175, 4
      %s177 = smul.addr %s176, 4
      %s178 = scalar_lea.vmem %s0, %s177
      %p179 = pneg %p47
      %p180 = pneg %p44
      %p181 = scmp.lt.s32.totalorder %s19, 0
      %s182 = scalar_select %p181, %s19, 0
      %s183 = smul.addr %s182, 4
      %s184 = scalar_lea.vmem %s1, %s183
      %p185 = pneg %p73
      %p186 = pneg %p70
      %p187 = scmp.lt.s32.totalorder %s19, 0
      %s188 = scalar_select %p187, %s19, 0
      %s189 = scalar_lea.vmem %s2, %s188
      %p190 = pneg %p99
      %p191 = pneg %p96
      %p192 = pneg %p127
      %p193 = pneg %p124
      %p194 = scmp.lt.s32.totalorder %s18, 1
      %s195 = scalar_select %p194, %s18, 1
      %p196 = scmp.lt.s32.totalorder %s19, 0
      %s197 = scalar_select %p196, %s19, 0
      %s198 = smul.addr %s195, 2
      %s199 = sadd.s32 %s197, %s198
      %s200 = smul.addr %s199, 4
      %s201 = scalar_lea.vmem %s3, %s200
      %p202 = scmp.lt.s32.totalorder %s18, 1
      %s203 = scalar_select %p202, %s18, 1
      %s204 = smul.addr %s203, 4
      %s205 = smul.addr %s204, 4
      %s206 = scalar_lea.vmem %s0, %s205
      %p207 = scmp.lt.s32.totalorder %s19, 0
      %s208 = scalar_select %p207, %s19, 0
      %s209 = smul.addr %s208, 4
      %s210 = scalar_lea.vmem %s1, %s209
      %p211 = scmp.lt.s32.totalorder %s19, 0
      %s212 = scalar_select %p211, %s19, 0
      %s213 = scalar_lea.vmem %s2, %s212
      %p214 = scmp.lt.s32.totalorder %s18, 1
      %s215 = scalar_select %p214, %s18, 1
      %p216 = scmp.lt.s32.totalorder %s19, 0
      %s217 = scalar_select %p216, %s19, 0
      %s218 = smul.addr %s215, 2
      %s219 = sadd.s32 %s217, %s218
      %s220 = smul.addr %s219, 4
      %s221 = scalar_lea.vmem %s3, %s220
      %v223 = vld [vmem:[%s206] sm:$0xff]
      %v224 = vld [vmem:[%s206 + $0x8] sm:$0xff]
      %v225 = vld [vmem:[%s210] sm:$0xf]
      %v226 = vld [vmem:[%s210 + $0x4] sm:$0xf]
      %v227 = vld [vmem:[%s210 + $0x8] sm:$0xf]
      %v228 = vld [vmem:[%s210 + $0xc] sm:$0xf]
      %v229 = vld [vmem:[%s210 + $0x10] sm:$0xf]
      %v230 = vld [vmem:[%s210 + $0x14] sm:$0xf]
      %v231 = vld [vmem:[%s210 + $0x18] sm:$0xf]
      %v232 = vld [vmem:[%s210 + $0x1c] sm:$0xf]
      %v233 = vld [vmem:[%s210 + $0x20] sm:$0xf]
      %v234 = vld [vmem:[%s210 + $0x24] sm:$0xf]
      %v235 = vld [vmem:[%s210 + $0x28] sm:$0xf]
      %v236 = vld [vmem:[%s210 + $0x2c] sm:$0xf]
      %v237 = vld [vmem:[%s210 + $0x30] sm:$0xf]
      %v238 = vld [vmem:[%s210 + $0x34] sm:$0xf]
      %v239 = vld [vmem:[%s210 + $0x38] sm:$0xf]
      %v240 = vld [vmem:[%s210 + $0x3c] sm:$0xf]
      %v241 = vld [vmem:[%s210 + $0x40] sm:$0xf]
      %v242 = vld [vmem:[%s210 + $0x44] sm:$0xf]
      %v243 = vld [vmem:[%s210 + $0x48] sm:$0xf]
      %v244 = vld [vmem:[%s210 + $0x4c] sm:$0xf]
      %v245 = vld [vmem:[%s210 + $0x50] sm:$0xf]
      %v246 = vld [vmem:[%s210 + $0x54] sm:$0xf]
      %v247 = vld [vmem:[%s210 + $0x58] sm:$0xf]
      %v248 = vld [vmem:[%s210 + $0x5c] sm:$0xf]
      %v249 = vld [vmem:[%s210 + $0x60] sm:$0xf]
      %v250 = vld [vmem:[%s210 + $0x64] sm:$0xf]
      %v251 = vld [vmem:[%s210 + $0x68] sm:$0xf]
      %v252 = vld [vmem:[%s210 + $0x6c] sm:$0xf]
      %v253 = vld [vmem:[%s210 + $0x70] sm:$0xf]
      %v254 = vld [vmem:[%s210 + $0x74] sm:$0xf]
      %v255 = vld [vmem:[%s210 + $0x78] sm:$0xf]
      %v256 = vld [vmem:[%s210 + $0x7c] sm:$0xf]
      %v257 = vld [vmem:[%s213] sm:$0x1]
      %v259 = vlaneseq
      %v260 = vshrl.u32 %v259, 7
      %v261 = vsub.s32 0, %v260
      %v262 = vrot.slane %v257, %v261
      %v266 = vunpack.c.l.b16 %v223
      %v267 = vunpack.c.h.b16 %v223
      %v268 = vunpack.c.l.b16 %v224
      %v269 = vunpack.c.h.b16 %v224
      %v270 = vpack.c.b16 %v268, %v266
      %v271 = vpack.c.b16 %v269, %v267
      %v306 = vunpack.c.l.b16 %v225
      %v307 = vunpack.c.l.b16 %v226
      %v308 = vunpack.c.l.b16 %v227
      %v309 = vunpack.c.l.b16 %v228
      %v310 = vunpack.c.l.b16 %v229
      %v311 = vunpack.c.l.b16 %v230
      %v312 = vunpack.c.l.b16 %v231
      %v313 = vunpack.c.l.b16 %v232
      %v314 = vunpack.c.l.b16 %v233
      %v315 = vunpack.c.l.b16 %v234
      %v316 = vunpack.c.l.b16 %v235
      %v317 = vunpack.c.l.b16 %v236
      %v318 = vunpack.c.l.b16 %v237
      %v319 = vunpack.c.l.b16 %v238
      %v320 = vunpack.c.l.b16 %v239
      %v321 = vunpack.c.l.b16 %v240
      %v322 = vunpack.c.l.b16 %v241
      %v323 = vunpack.c.l.b16 %v242
      %v324 = vunpack.c.l.b16 %v243
      %v325 = vunpack.c.l.b16 %v244
      %v326 = vunpack.c.l.b16 %v245
      %v327 = vunpack.c.l.b16 %v246
      %v328 = vunpack.c.l.b16 %v247
      %v329 = vunpack.c.l.b16 %v248
      %v330 = vunpack.c.l.b16 %v249
      %v331 = vunpack.c.l.b16 %v250
      %v332 = vunpack.c.l.b16 %v251
      %v333 = vunpack.c.l.b16 %v252
      %v334 = vunpack.c.l.b16 %v253
      %v335 = vunpack.c.l.b16 %v254
      %v336 = vunpack.c.l.b16 %v255
      %v337 = vunpack.c.l.b16 %v256
      %v338 = vpack.c.b16 %v307, %v306
      %v339 = vpack.c.b16 %v309, %v308
      %v340 = vpack.c.b16 %v311, %v310
      %v341 = vpack.c.b16 %v313, %v312
      %v342 = vpack.c.b16 %v315, %v314
      %v343 = vpack.c.b16 %v317, %v316
      %v344 = vpack.c.b16 %v319, %v318
      %v345 = vpack.c.b16 %v321, %v320
      %v346 = vpack.c.b16 %v323, %v322
      %v347 = vpack.c.b16 %v325, %v324
      %v348 = vpack.c.b16 %v327, %v326
      %v349 = vpack.c.b16 %v329, %v328
      %v350 = vpack.c.b16 %v331, %v330
      %v351 = vpack.c.b16 %v333, %v332
      %v352 = vpack.c.b16 %v335, %v334
      %v353 = vpack.c.b16 %v337, %v336
      %370 = vmatprep.subr.bf16.mxu0 0
      %371 = vmatpush1.bf16.msra.mxu0 %v338
      %372 = vmatprep.subr.bf16.mxu0 0
      %373 = vmatpush1.bf16.msra.mxu0 %v339
      %374 = vmatprep.subr.bf16.mxu0 0
      %375 = vmatpush1.bf16.msra.mxu0 %v340
      %376 = vmatprep.subr.bf16.mxu0 0
      %377 = vmatpush1.bf16.msra.mxu0 %v341
      %378 = vmatprep.subr.bf16.mxu0 0
      %379 = vmatpush1.bf16.msra.mxu0 %v342
      %380 = vmatprep.subr.bf16.mxu0 0
      %381 = vmatpush1.bf16.msra.mxu0 %v343
      %382 = vmatprep.subr.bf16.mxu0 0
      %383 = vmatpush1.bf16.msra.mxu0 %v344
      %384 = vmatprep.subr.bf16.mxu0 0
      %385 = vmatpush1.bf16.msra.mxu0 %v345
      %386 = vmatprep.subr.bf16.mxu0 0
      %387 = vmatpush1.bf16.msra.mxu0 %v346
      %388 = vmatprep.subr.bf16.mxu0 0
      %389 = vmatpush1.bf16.msra.mxu0 %v347
      %390 = vmatprep.subr.bf16.mxu0 0
      %391 = vmatpush1.bf16.msra.mxu0 %v348
      %392 = vmatprep.subr.bf16.mxu0 0
      %393 = vmatpush1.bf16.msra.mxu0 %v349
      %394 = vmatprep.subr.bf16.mxu0 0
      %395 = vmatpush1.bf16.msra.mxu0 %v350
      %396 = vmatprep.subr.bf16.mxu0 0
      %397 = vmatpush1.bf16.msra.mxu0 %v351
      %398 = vmatprep.subr.bf16.mxu0 0
      %399 = vmatpush1.bf16.msra.mxu0 %v352
      %400 = vmatprep.subr.bf16.mxu0 0
      %401 = vmatpush1.bf16.msra.mxu0 %v353
      %402 = vmatprep.mubr.bf16.mxu0 %v271
      %403 = vmatmul.mubr.bf16.gmra.mrb[0].mxu0 %v270
      %v404 = vpop.f32.mrb[0].mxu0
      %v405 = vadd.f32 %v262, %v404
      %v406 = vpop.f32.mrb[0].mxu0
      %v407 = vpop.f32.mrb[0].mxu0
      %v408 = vadd.f32 %v262, %v407
      %v409 = vpop.f32.mrb[0].mxu0
      %410 = vdwg.mxu0
      %v411 = vadd.f32 %v405, %v408
      %v412 = vrot.slane %v411, 4
      %v413 = vadd.f32 %v411, %v412
      %v414 = vrot.slane %v413, 2
      %v415 = vadd.f32 %v413, %v414
      %v416 = vrot.slane %v415, 1
      %v417 = vadd.f32 %v415, %v416
      %v418 = vmul.f32 %v417, 0.0625
      %v419 = vmul.f32 %v405, %v405
      %v420 = vmul.f32 %v408, %v408
      %v421 = vadd.f32 %v419, %v420
      %v422 = vrot.slane %v421, 4
      %v423 = vadd.f32 %v421, %v422
      %v424 = vrot.slane %v423, 2
      %v425 = vadd.f32 %v423, %v424
      %v426 = vrot.slane %v425, 1
      %v427 = vadd.f32 %v425, %v426
      %v428 = vmul.f32 %v427, 0.0625
      %v429 = vmul.f32 %v418, %v418
      %v430 = vsub.f32 %v428, %v429
      %v431 = vmax.f32 %v430, 0.0
      %v432 = vsub.f32 %v405, %v418
      %v433 = vsub.f32 %v408, %v418
      %v434 = vadd.f32 %v431, 1e-05
      %v435 = vrsqrt.pop %v434
      %v436 = vmul.f32 %v432, %v435
      %v437 = vmul.f32 %v433, %v435
      %vm438 = vcmp.ge.f32.partialorder %v436, 0.0
      %vm439 = vcmp.ge.f32.partialorder %v437, 0.0
      %v440 = vmul.f32 %v436, 0.2
      %v441 = vmul.f32 %v437, 0.2
      %v442 = vsel %vm438, %v436, %v440
      %v443 = vsel %vm439, %v437, %v441
      %v444 = vpack.c.bf16 %v443, %v442
      %v446 = vunpack.c.l.b16 %v444
      %v447 = vunpack.c.h.b16 %v444
      %v448 = vpack.c.b16 %v446, %v446
      %v449 = vpack.c.b16 %v447, %v447
      %452 = vst [vmem:[%s221] sm:$0xf] %v448
      %453 = vst [vmem:[%s221 + $0x4] sm:$0xf] %v449
      %p454 = scmp.lt.s32.totalorder %s18, 1
      %s455 = scalar_select %p454, %s18, 1
      %p456 = scmp.lt.s32.totalorder %s19, 0
      %s457 = scalar_select %p456, %s19, 0
      %s458 = smul.addr %s455, 2
      %s459 = sadd.s32 %s457, %s458
      %s460 = smul.addr %s459, 4
      %s461 = scalar_lea.vmem %s3, %s460
      // Predicated region
      $region33: #{_lambda_.7} parent=31 // pred_check
        %p462 = pneg %p124
      $region34: #{_lambda_.7} parent=31 // pred_check_branch
        %464 = sbr.rel (%p462) target = $region36
      $region35: #{_lambda_.7} parent=31 // pred_region
        _
      $region36: #{_lambda_.7} parent=31 // pred_fallthru
        _
    $region32: #{_lambda_.7} parent=5 // pred_fallthru
      _
    %p465 = scmp.le.s32.totalorder 2, %s9
    // Predicated region
    $region37: #{_lambda_.7} parent=5 // pred_check
      %p466 = pneg %p465
    $region38: #{_lambda_.7} parent=5 // pred_check_branch
      %468 = sbr.rel (%p466) target = $region40
    $region39: #{_lambda_.7} parent=5 // pred_region
      %s469 = ssub.s32 %s9, 2
      // Predicated region
      $region41: #{_lambda_.7} parent=39 // pred_check
        %p470 = pneg %p130
      $region42: #{_lambda_.7} parent=39 // pred_check_branch
        %472 = sbr.rel (%p470) target = $region44
      $region43: #{_lambda_.7} parent=39 // pred_region
        %p473 = scmp.lt.s32.totalorder %s20, 1
        %s474 = scalar_select %p473, %s20, 1
        %p475 = scmp.lt.s32.totalorder %s21, 0
        %s476 = scalar_select %p475, %s21, 0
        %s477 = smul.addr %s474, 2
        %s478 = sadd.s32 %s476, %s477
        %s479 = smul.addr %s478, 4
        %s480 = scalar_lea.vmem %s3, %s479
      $region44: #{_lambda_.7} parent=39 // pred_fallthru
        _
    $region40: #{_lambda_.7} parent=5 // pred_fallthru
      _
  $region6: #{_lambda_.7} parent=0 // loop_footer
    %s13 = sadd.s32 1, %s9
  $region7: #{_lambda_.7} parent=0 // loop_footer_branch
    %8 = sbr.rel target = $region3
  $region8: #{_lambda_.7} parent=0 // loop_exit
    _

// kernel: _lambda_.8
$region0: #{_lambda_.8}
  #allocation0 [shape = 'u32[]', space=smem, size = 0x4, offset = 0x4, fixed_abs, tag = 'smem constant byte address 0x4 - core index']
  #allocation1 [shape = 'u32[144,128]{1,0:T(1,128)}', space=vmem, size = 0x12000, scoped, tag = 'internal scratch']
  %s0 = inlined_call_operand.vmem [shape: bf16[2,16,512], index: 0, kind: input, shape index: {}]
  %s1 = inlined_call_operand.vmem [shape: bf16[512,128], index: 1, kind: input, shape index: {}]
  %s2 = inlined_call_operand.vmem [shape: f32[1,128], index: 2, kind: input, shape index: {}]
  %s3 = inlined_call_operand.vmem [shape: bf16[2,16,128], index: 3, kind: output, shape index: {}]
  %s4 = sld [smem:[#allocation0]]
  $region45: #{_lambda_.8} parent=0
    _
  %s6 = ssub.s32 1, %s4
  %s7 = scalar_select 0, %s6, %s4
  loop: start=0, step=1, limit=4
  $region2: #{_lambda_.8} parent=0 // loop_pre_header
    _
  $region3: #{_lambda_.8} parent=0 // loop_header
    %s9 = sphi 0, %s13
    %p10 = scmp.ge.s32.totalorder %s9, 4
    %s16 = sphi 0, %s28
    %s17 = sphi 0, %s24
    %s18 = sphi 0, %s16
    %s19 = sphi 0, %s17
    %s20 = sphi 0, %s18
    %s21 = sphi 0, %s19
    %s31 = sphi 0, %s33
    %s34 = sphi 0, %s31
    %s35 = sphi 0, %s34
    %s51 = sphi 0, %s35
    %s57 = sphi 0, %s59
    %s60 = sphi 0, %s57
    %s61 = sphi 0, %s60
    %s77 = sphi 0, %s61
    %s83 = sphi 0, %s85
    %s86 = sphi 0, %s83
    %s87 = sphi 0, %s86
    %s103 = sphi 0, %s87
    %s111 = sphi 0, %s113
    %s114 = sphi 0, %s111
    %s115 = sphi 0, %s114
    %s131 = sphi 0, %s115
  $region4: #{_lambda_.8} parent=0 // loop_header_branch
    %12 = sbr.rel (%p10) target = $region8
  $region5: #{_lambda_.8} parent=0 // loop_body
    %s14 = ssub.s32 %s9, 1
    %s15 = ssub.s32 %s9, 2
    %s22 = sadd.s32 1, %s17
    %p23 = scmp.ge.s32.totalorder %s22, 1
    %s24 = scalar_select %p23, 0, %s22
    %s25 = sadd.s32 1, %s16
    %s26 = scalar_select %p23, %s25, %s16
    %p27 = scmp.ge.s32.totalorder %s26, 2
    %s28 = scalar_select %p27, 0, %s26
    %s29 = ssub.s32 %s16, %s28
    %p30 = scmp.eq.s32.totalorder %s29, 0
    %s32 = sadd.s32 %s31, 1
    %s33 = scalar_select %p30, %s31, %s32
    %p36 = pneg %p30
    %p37 = scmp.eq.s32.totalorder %s9, 1
    %p38 = por %p36, %p37
    %p39 = scmp.ne.s32.totalorder %s31, %s34
    %p40 = scmp.eq.s32.totalorder %s9, 0
    %p41 = por %p39, %p40
    %p42 = scmp.ne.s32.totalorder %s31, %s34
    %p43 = scmp.eq.s32.totalorder %s14, 1
    %p44 = por %p42, %p43
    %p45 = scmp.ne.s32.totalorder %s34, %s35
    %p46 = scmp.eq.s32.totalorder %s14, 0
    %p47 = por %p45, %p46
    %p48 = scmp.ne.s32.totalorder %s34, %s35
    %p49 = scmp.eq.s32.totalorder %s15, 1
    %p50 = por %p48, %p49
    %p52 = scmp.ne.s32.totalorder %s35, %s51
    %p53 = scmp.eq.s32.totalorder %s15, 0
    %p54 = por %p52, %p53
    %s55 = ssub.s32 %s17, %s24
    %p56 = scmp.eq.s32.totalorder %s55, 0
    %s58 = sadd.s32 %s57, 1
    %s59 = scalar_select %p56, %s57, %s58
    %p62 = pneg %p56
    %p63 = scmp.eq.s32.totalorder %s9, 1
    %p64 = por %p62, %p63
    %p65 = scmp.ne.s32.totalorder %s57, %s60
    %p66 = scmp.eq.s32.totalorder %s9, 0
    %p67 = por %p65, %p66
    %p68 = scmp.ne.s32.totalorder %s57, %s60
    %p69 = scmp.eq.s32.totalorder %s14, 1
    %p70 = por %p68, %p69
    %p71 = scmp.ne.s32.totalorder %s60, %s61
    %p72 = scmp.eq.s32.totalorder %s14, 0
    %p73 = por %p71, %p72
    %p74 = scmp.ne.s32.totalorder %s60, %s61
    %p75 = scmp.eq.s32.totalorder %s15, 1
    %p76 = por %p74, %p75
    %p78 = scmp.ne.s32.totalorder %s61, %s77
    %p79 = scmp.eq.s32.totalorder %s15, 0
    %p80 = por %p78, %p79
    %s81 = ssub.s32 %s17, %s24
    %p82 = scmp.eq.s32.totalorder %s81, 0
    %s84 = sadd.s32 %s83, 1
    %s85 = scalar_select %p82, %s83, %s84
    %p88 = pneg %p82
    %p89 = scmp.eq.s32.totalorder %s9, 1
    %p90 = por %p88, %p89
    %p91 = scmp.ne.s32.totalorder %s83, %s86
    %p92 = scmp.eq.s32.totalorder %s9, 0
    %p93 = por %p91, %p92
    %p94 = scmp.ne.s32.totalorder %s83, %s86
    %p95 = scmp.eq.s32.totalorder %s14, 1
    %p96 = por %p94, %p95
    %p97 = scmp.ne.s32.totalorder %s86, %s87
    %p98 = scmp.eq.s32.totalorder %s14, 0
    %p99 = por %p97, %p98
    %p100 = scmp.ne.s32.totalorder %s86, %s87
    %p101 = scmp.eq.s32.totalorder %s15, 1
    %p102 = por %p100, %p101
    %p104 = scmp.ne.s32.totalorder %s87, %s103
    %p105 = scmp.eq.s32.totalorder %s15, 0
    %p106 = por %p104, %p105
    %s107 = ssub.s32 %s16, %s28
    %s108 = ssub.s32 %s17, %s24
    %s109 = sor.u32 %s107, %s108
    %p110 = scmp.eq.s32.totalorder %s109, 0
    %s112 = sadd.s32 %s111, 1
    %s113 = scalar_select %p110, %s111, %s112
    %p116 = pneg %p110
    %p117 = scmp.eq.s32.totalorder %s9, 1
    %p118 = por %p116, %p117
    %p119 = scmp.ne.s32.totalorder %s111, %s114
    %p120 = scmp.eq.s32.totalorder %s9, 0
    %p121 = por %p119, %p120
    %p122 = scmp.ne.s32.totalorder %s111, %s114
    %p123 = scmp.eq.s32.totalorder %s14, 1
    %p124 = por %p122, %p123
    %p125 = scmp.ne.s32.totalorder %s114, %s115
    %p126 = scmp.eq.s32.totalorder %s14, 0
    %p127 = por %p125, %p126
    %p128 = scmp.ne.s32.totalorder %s114, %s115
    %p129 = scmp.eq.s32.totalorder %s15, 1
    %p130 = por %p128, %p129
    %p132 = scmp.ne.s32.totalorder %s115, %s131
    %p133 = scmp.eq.s32.totalorder %s15, 0
    %p134 = por %p132, %p133
    %p135 = scmp.le.s32.totalorder 1, %s9
    %p136 = scmp.lt.s32.totalorder %s9, 3
    %p137 = pnand %p135, %p136
    %p138 = pneg %p137
    // Predicated region
    $region9: #{_lambda_.8} parent=5 // pred_check
      _
    $region10: #{_lambda_.8} parent=5 // pred_check_branch
      %140 = sbr.rel (%p137) target = $region12
    $region11: #{_lambda_.8} parent=5 // pred_region
      %s141 = ssub.s32 %s9, 1
      // Predicated region
      $region13: #{_lambda_.8} parent=11 // pred_check
        %p142 = pneg %p73
      $region14: #{_lambda_.8} parent=11 // pred_check_branch
        %144 = sbr.rel (%p142) target = $region16
      $region15: #{_lambda_.8} parent=11 // pred_region
        %p145 = scmp.lt.s32.totalorder %s19, 0
        %s146 = scalar_select %p145, %s19, 0
        %s147 = smul.addr %s146, 4
        %s148 = scalar_lea.vmem %s1, %s147
      $region16: #{_lambda_.8} parent=11 // pred_fallthru
        _
      // Predicated region
      $region17: #{_lambda_.8} parent=11 // pred_check
        %p149 = pneg %p99
      $region18: #{_lambda_.8} parent=11 // pred_check_branch
        %151 = sbr.rel (%p149) target = $region20
      $region19: #{_lambda_.8} parent=11 // pred_region
        %p152 = scmp.lt.s32.totalorder %s19, 0
        %s153 = scalar_select %p152, %s19, 0
        %s154 = scalar_lea.vmem %s2, %s153
      $region20: #{_lambda_.8} parent=11 // pred_fallthru
        _
    $region12: #{_lambda_.8} parent=5 // pred_fallthru
      _
    %p155 = scmp.lt.s32.totalorder %s9, 2
    // Predicated region
    $region21: #{_lambda_.8} parent=5 // pred_check
      %p156 = pneg %p155
    $region22: #{_lambda_.8} parent=5 // pred_check_branch
      %158 = sbr.rel (%p156) target = $region24
    $region23: #{_lambda_.8} parent=5 // pred_region
      // Predicated region
      $region25: #{_lambda_.8} parent=23 // pred_check
        %p159 = pneg %p41
      $region26: #{_lambda_.8} parent=23 // pred_check_branch
        %161 = sbr.rel (%p159) target = $region28
      $region27: #{_lambda_.8} parent=23 // pred_region
        %p162 = scmp.lt.s32.totalorder %s16, 1
        %s163 = scalar_select %p162, %s16, 1
        %s164 = smul.addr %s163, 8
        %s165 = smul.addr %s164, 4
        %s166 = scalar_lea.vmem %s0, %s165
      $region28: #{_lambda_.8} parent=23 // pred_fallthru
        _
    $region24: #{_lambda_.8} parent=5 // pred_fallthru
      _
    %p167 = scmp.le.s32.totalorder 1, %s9
    %p168 = scmp.lt.s32.totalorder %s9, 3
    %p169 = pnand %p167, %p168
    %p170 = pneg %p169
    // Predicated region
    $region29: #{_lambda_.8} parent=5 // pred_check
      _
    $region30: #{_lambda_.8} parent=5 // pred_check_branch
      %172 = sbr.rel (%p169) target = $region32
    $region31: #{_lambda_.8} parent=5 // pred_region
      %s173 = ssub.s32 %s9, 1
      %p174 = scmp.lt.s32.totalorder %s18, 1
      %s175 = scalar_select %p174, %s18, 1
      %s176 = smul.addr %s175, 8
      %s177 = smul.addr %s176, 4
      %s178 = scalar_lea.vmem %s0, %s177
      %p179 = pneg %p47
      %p180 = pneg %p44
      %p181 = scmp.lt.s32.totalorder %s19, 0
      %s182 = scalar_select %p181, %s19, 0
      %s183 = smul.addr %s182, 4
      %s184 = scalar_lea.vmem %s1, %s183
      %p185 = pneg %p73
      %p186 = pneg %p70
      %p187 = scmp.lt.s32.totalorder %s19, 0
      %s188 = scalar_select %p187, %s19, 0
      %s189 = scalar_lea.vmem %s2, %s188
      %p190 = pneg %p99
      %p191 = pneg %p96
      %p192 = pneg %p127
      %p193 = pneg %p124
      %p194 = scmp.lt.s32.totalorder %s18, 1
      %s195 = scalar_select %p194, %s18, 1
      %p196 = scmp.lt.s32.totalorder %s19, 0
      %s197 = scalar_select %p196, %s19, 0
      %s198 = smul.addr %s195, 2
      %s199 = sadd.s32 %s197, %s198
      %s200 = smul.addr %s199, 4
      %s201 = scalar_lea.vmem %s3, %s200
      %p202 = scmp.lt.s32.totalorder %s18, 1
      %s203 = scalar_select %p202, %s18, 1
      %s204 = smul.addr %s203, 8
      %s205 = smul.addr %s204, 4
      %s206 = scalar_lea.vmem %s0, %s205
      %p207 = scmp.lt.s32.totalorder %s19, 0
      %s208 = scalar_select %p207, %s19, 0
      %s209 = smul.addr %s208, 4
      %s210 = scalar_lea.vmem %s1, %s209
      %p211 = scmp.lt.s32.totalorder %s19, 0
      %s212 = scalar_select %p211, %s19, 0
      %s213 = scalar_lea.vmem %s2, %s212
      %p214 = scmp.lt.s32.totalorder %s18, 1
      %s215 = scalar_select %p214, %s18, 1
      %p216 = scmp.lt.s32.totalorder %s19, 0
      %s217 = scalar_select %p216, %s19, 0
      %s218 = smul.addr %s215, 2
      %s219 = sadd.s32 %s217, %s218
      %s220 = smul.addr %s219, 4
      %s221 = scalar_lea.vmem %s3, %s220
      %v223 = vld [vmem:[%s206] sm:$0xff]
      %v224 = vld [vmem:[%s206 + $0x8] sm:$0xff]
      %v225 = vld [vmem:[%s206 + $0x10] sm:$0xff]
      %v226 = vld [vmem:[%s206 + $0x18] sm:$0xff]
      %v227 = vld [vmem:[%s210] sm:$0xf]
      %v228 = vld [vmem:[%s210 + $0x4] sm:$0xf]
      %v229 = vld [vmem:[%s210 + $0x8] sm:$0xf]
      %v230 = vld [vmem:[%s210 + $0xc] sm:$0xf]
      %v231 = vld [vmem:[%s210 + $0x10] sm:$0xf]
      %v232 = vld [vmem:[%s210 + $0x14] sm:$0xf]
      %v233 = vld [vmem:[%s210 + $0x18] sm:$0xf]
      %v234 = vld [vmem:[%s210 + $0x1c] sm:$0xf]
      %v235 = vld [vmem:[%s210 + $0x20] sm:$0xf]
      %v236 = vld [vmem:[%s210 + $0x24] sm:$0xf]
      %v237 = vld [vmem:[%s210 + $0x28] sm:$0xf]
      %v238 = vld [vmem:[%s210 + $0x2c] sm:$0xf]
      %v239 = vld [vmem:[%s210 + $0x30] sm:$0xf]
      %v240 = vld [vmem:[%s210 + $0x34] sm:$0xf]
      %v241 = vld [vmem:[%s210 + $0x38] sm:$0xf]
      %v242 = vld [vmem:[%s210 + $0x3c] sm:$0xf]
      %v243 = vld [vmem:[%s210 + $0x40] sm:$0xf]
      %v244 = vld [vmem:[%s210 + $0x44] sm:$0xf]
      %v245 = vld [vmem:[%s210 + $0x48] sm:$0xf]
      %v246 = vld [vmem:[%s210 + $0x4c] sm:$0xf]
      %v247 = vld [vmem:[%s210 + $0x50] sm:$0xf]
      %v248 = vld [vmem:[%s210 + $0x54] sm:$0xf]
      %v249 = vld [vmem:[%s210 + $0x58] sm:$0xf]
      %v250 = vld [vmem:[%s210 + $0x5c] sm:$0xf]
      %v251 = vld [vmem:[%s210 + $0x60] sm:$0xf]
      %v252 = vld [vmem:[%s210 + $0x64] sm:$0xf]
      %v253 = vld [vmem:[%s210 + $0x68] sm:$0xf]
      %v254 = vld [vmem:[%s210 + $0x6c] sm:$0xf]
      %v255 = vld [vmem:[%s210 + $0x70] sm:$0xf]
      %v256 = vld [vmem:[%s210 + $0x74] sm:$0xf]
      %v257 = vld [vmem:[%s210 + $0x78] sm:$0xf]
      %v258 = vld [vmem:[%s210 + $0x7c] sm:$0xf]
      %v259 = vld [vmem:[%s210 + $0x80] sm:$0xf]
      %v260 = vld [vmem:[%s210 + $0x84] sm:$0xf]
      %v261 = vld [vmem:[%s210 + $0x88] sm:$0xf]
      %v262 = vld [vmem:[%s210 + $0x8c] sm:$0xf]
      %v263 = vld [vmem:[%s210 + $0x90] sm:$0xf]
      %v264 = vld [vmem:[%s210 + $0x94] sm:$0xf]
      %v265 = vld [vmem:[%s210 + $0x98] sm:$0xf]
      %v266 = vld [vmem:[%s210 + $0x9c] sm:$0xf]
      %v267 = vld [vmem:[%s210 + $0xa0] sm:$0xf]
      %v268 = vld [vmem:[%s210 + $0xa4] sm:$0xf]
      %v269 = vld [vmem:[%s210 + $0xa8] sm:$0xf]
      %v270 = vld [vmem:[%s210 + $0xac] sm:$0xf]
      %v271 = vld [vmem:[%s210 + $0xb0] sm:$0xf]
      %v272 = vld [vmem:[%s210 + $0xb4] sm:$0xf]
      %v273 = vld [vmem:[%s210 + $0xb8] sm:$0xf]
      %v274 = vld [vmem:[%s210 + $0xbc] sm:$0xf]
      %v275 = vld [vmem:[%s210 + $0xc0] sm:$0xf]
      %v276 = vld [vmem:[%s210 + $0xc4] sm:$0xf]
      %v277 = vld [vmem:[%s210 + $0xc8] sm:$0xf]
      %v278 = vld [vmem:[%s210 + $0xcc] sm:$0xf]
      %v279 = vld [vmem:[%s210 + $0xd0] sm:$0xf]
      %v280 = vld [vmem:[%s210 + $0xd4] sm:$0xf]
      %v281 = vld [vmem:[%s210 + $0xd8] sm:$0xf]
      %v282 = vld [vmem:[%s210 + $0xdc] sm:$0xf]
      %v283 = vld [vmem:[%s210 + $0xe0] sm:$0xf]
      %v284 = vld [vmem:[%s210 + $0xe4] sm:$0xf]
      %v285 = vld [vmem:[%s210 + $0xe8] sm:$0xf]
      %v286 = vld [vmem:[%s210 + $0xec] sm:$0xf]
      %v287 = vld [vmem:[%s210 + $0xf0] sm:$0xf]
      %v288 = vld [vmem:[%s210 + $0xf4] sm:$0xf]
      %v289 = vld [vmem:[%s210 + $0xf8] sm:$0xf]
      %v290 = vld [vmem:[%s210 + $0xfc] sm:$0xf]
      %v291 = vld [vmem:[%s213] sm:$0x1]
      %v293 = vlaneseq
      %v294 = vshrl.u32 %v293, 7
      %v295 = vsub.s32 0, %v294
      %v296 = vrot.slane %v291, %v295
      %v302 = vunpack.c.l.b16 %v223
      %v303 = vunpack.c.h.b16 %v223
      %v304 = vunpack.c.l.b16 %v224
      %v305 = vunpack.c.h.b16 %v224
      %v306 = vunpack.c.l.b16 %v225
      %v307 = vunpack.c.h.b16 %v225
      %v308 = vunpack.c.l.b16 %v226
      %v309 = vunpack.c.h.b16 %v226
      %v310 = vpack.c.b16 %v306, %v302
      %v311 = vpack.c.b16 %v307, %v303
      %v312 = vpack.c.b16 %v308, %v304
      %v313 = vpack.c.b16 %v309, %v305
      %v382 = vunpack.c.l.b16 %v227
      %v383 = vunpack.c.l.b16 %v228
      %v384 = vunpack.c.l.b16 %v229
      %v385 = vunpack.c.l.b16 %v230
      %v386 = vunpack.c.l.b16 %v231
      %v387 = vunpack.c.l.b16 %v232
      %v388 = vunpack.c.l.b16 %v233
      %v389 = vunpack.c.l.b16 %v234
      %v390 = vunpack.c.l.b16 %v235
      %v391 = vunpack.c.l.b16 %v236
      %v392 = vunpack.c.l.b16 %v237
      %v393 = vunpack.c.l.b16 %v238
      %v394 = vunpack.c.l.b16 %v239
      %v395 = vunpack.c.l.b16 %v240
      %v396 = vunpack.c.l.b16 %v241
      %v397 = vunpack.c.l.b16 %v242
      %v398 = vunpack.c.l.b16 %v243
      %v399 = vunpack.c.l.b16 %v244
      %v400 = vunpack.c.l.b16 %v245
      %v401 = vunpack.c.l.b16 %v246
      %v402 = vunpack.c.l.b16 %v247
      %v403 = vunpack.c.l.b16 %v248
      %v404 = vunpack.c.l.b16 %v249
      %v405 = vunpack.c.l.b16 %v250
      %v406 = vunpack.c.l.b16 %v251
      %v407 = vunpack.c.l.b16 %v252
      %v408 = vunpack.c.l.b16 %v253
      %v409 = vunpack.c.l.b16 %v254
      %v410 = vunpack.c.l.b16 %v255
      %v411 = vunpack.c.l.b16 %v256
      %v412 = vunpack.c.l.b16 %v257
      %v413 = vunpack.c.l.b16 %v258
      %v414 = vunpack.c.l.b16 %v259
      %v415 = vunpack.c.l.b16 %v260
      %v416 = vunpack.c.l.b16 %v261
      %v417 = vunpack.c.l.b16 %v262
      %v418 = vunpack.c.l.b16 %v263
      %v419 = vunpack.c.l.b16 %v264
      %v420 = vunpack.c.l.b16 %v265
      %v421 = vunpack.c.l.b16 %v266
      %v422 = vunpack.c.l.b16 %v267
      %v423 = vunpack.c.l.b16 %v268
      %v424 = vunpack.c.l.b16 %v269
      %v425 = vunpack.c.l.b16 %v270
      %v426 = vunpack.c.l.b16 %v271
      %v427 = vunpack.c.l.b16 %v272
      %v428 = vunpack.c.l.b16 %v273
      %v429 = vunpack.c.l.b16 %v274
      %v430 = vunpack.c.l.b16 %v275
      %v431 = vunpack.c.l.b16 %v276
      %v432 = vunpack.c.l.b16 %v277
      %v433 = vunpack.c.l.b16 %v278
      %v434 = vunpack.c.l.b16 %v279
      %v435 = vunpack.c.l.b16 %v280
      %v436 = vunpack.c.l.b16 %v281
      %v437 = vunpack.c.l.b16 %v282
      %v438 = vunpack.c.l.b16 %v283
      %v439 = vunpack.c.l.b16 %v284
      %v440 = vunpack.c.l.b16 %v285
      %v441 = vunpack.c.l.b16 %v286
      %v442 = vunpack.c.l.b16 %v287
      %v443 = vunpack.c.l.b16 %v288
      %v444 = vunpack.c.l.b16 %v289
      %v445 = vunpack.c.l.b16 %v290
      %v446 = vpack.c.b16 %v383, %v382
      %v447 = vpack.c.b16 %v385, %v384
      %v448 = vpack.c.b16 %v387, %v386
      %v449 = vpack.c.b16 %v389, %v388
      %v450 = vpack.c.b16 %v391, %v390
      %v451 = vpack.c.b16 %v393, %v392
      %v452 = vpack.c.b16 %v395, %v394
      %v453 = vpack.c.b16 %v397, %v396
      %v454 = vpack.c.b16 %v399, %v398
      %v455 = vpack.c.b16 %v401, %v400
      %v456 = vpack.c.b16 %v403, %v402
      %v457 = vpack.c.b16 %v405, %v404
      %v458 = vpack.c.b16 %v407, %v406
      %v459 = vpack.c.b16 %v409, %v408
      %v460 = vpack.c.b16 %v411, %v410
      %v461 = vpack.c.b16 %v413, %v412
      %v462 = vpack.c.b16 %v415, %v414
      %v463 = vpack.c.b16 %v417, %v416
      %v464 = vpack.c.b16 %v419, %v418
      %v465 = vpack.c.b16 %v421, %v420
      %v466 = vpack.c.b16 %v423, %v422
      %v467 = vpack.c.b16 %v425, %v424
      %v468 = vpack.c.b16 %v427, %v426
      %v469 = vpack.c.b16 %v429, %v428
      %v470 = vpack.c.b16 %v431, %v430
      %v471 = vpack.c.b16 %v433, %v432
      %v472 = vpack.c.b16 %v435, %v434
      %v473 = vpack.c.b16 %v437, %v436
      %v474 = vpack.c.b16 %v439, %v438
      %v475 = vpack.c.b16 %v441, %v440
      %v476 = vpack.c.b16 %v443, %v442
      %v477 = vpack.c.b16 %v445, %v444
      %510 = vmatprep.subr.bf16.mxu0 0
      %511 = vmatpush1.bf16.msra.mxu0 %v446
      %512 = vmatprep.subr.bf16.mxu0 0
      %513 = vmatpush1.bf16.msra.mxu0 %v447
      %514 = vmatprep.subr.bf16.mxu0 0
      %515 = vmatpush1.bf16.msra.mxu0 %v448
      %516 = vmatprep.subr.bf16.mxu0 0
      %517 = vmatpush1.bf16.msra.mxu0 %v449
      %518 = vmatprep.subr.bf16.mxu0 0
      %519 = vmatpush1.bf16.msra.mxu0 %v450
      %520 = vmatprep.subr.bf16.mxu0 0
      %521 = vmatpush1.bf16.msra.mxu0 %v451
      %522 = vmatprep.subr.bf16.mxu0 0
      %523 = vmatpush1.bf16.msra.mxu0 %v452
      %524 = vmatprep.subr.bf16.mxu0 0
      %525 = vmatpush1.bf16.msra.mxu0 %v453
      %526 = vmatprep.subr.bf16.mxu0 0
      %527 = vmatpush1.bf16.msra.mxu0 %v454
      %528 = vmatprep.subr.bf16.mxu0 0
      %529 = vmatpush1.bf16.msra.mxu0 %v455
      %530 = vmatprep.subr.bf16.mxu0 0
      %531 = vmatpush1.bf16.msra.mxu0 %v456
      %532 = vmatprep.subr.bf16.mxu0 0
      %533 = vmatpush1.bf16.msra.mxu0 %v457
      %534 = vmatprep.subr.bf16.mxu0 0
      %535 = vmatpush1.bf16.msra.mxu0 %v458
      %536 = vmatprep.subr.bf16.mxu0 0
      %537 = vmatpush1.bf16.msra.mxu0 %v459
      %538 = vmatprep.subr.bf16.mxu0 0
      %539 = vmatpush1.bf16.msra.mxu0 %v460
      %540 = vmatprep.subr.bf16.mxu0 0
      %541 = vmatpush1.bf16.msra.mxu0 %v461
      %542 = vmatprep.mubr.bf16.mxu0 %v311
      %543 = vmatmul.mubr.bf16.gmra.mrb[0].mxu0 %v310
      %v544 = vpop.f32.mrb[0].mxu0
      %v545 = vadd.f32 %v296, %v544
      %v546 = vpop.f32.mrb[0].mxu0
      %v547 = vpop.f32.mrb[0].mxu0
      %v548 = vadd.f32 %v296, %v547
      %v549 = vpop.f32.mrb[0].mxu0
      %550 = vdwg.mxu0
      %551 = vmatprep.subr.bf16.mxu0 0
      %552 = vmatpush1.bf16.msra.mxu0 %v462
      %553 = vmatprep.subr.bf16.mxu0 0
      %554 = vmatpush1.bf16.msra.mxu0 %v463
      %555 = vmatprep.subr.bf16.mxu0 0
      %556 = vmatpush1.bf16.msra.mxu0 %v464
      %557 = vmatprep.subr.bf16.mxu0 0
      %558 = vmatpush1.bf16.msra.mxu0 %v465
      %559 = vmatprep.subr.bf16.mxu0 0
      %560 = vmatpush1.bf16.msra.mxu0 %v466
      %561 = vmatprep.subr.bf16.mxu0 0
      %562 = vmatpush1.bf16.msra.mxu0 %v467
      %563 = vmatprep.subr.bf16.mxu0 0
      %564 = vmatpush1.bf16.msra.mxu0 %v468
      %565 = vmatprep.subr.bf16.mxu0 0
      %566 = vmatpush1.bf16.msra.mxu0 %v469
      %567 = vmatprep.subr.bf16.mxu0 0
      %568 = vmatpush1.bf16.msra.mxu0 %v470
      %569 = vmatprep.subr.bf16.mxu0 0
      %570 = vmatpush1.bf16.msra.mxu0 %v471
      %571 = vmatprep.subr.bf16.mxu0 0
      %572 = vmatpush1.bf16.msra.mxu0 %v472
      %573 = vmatprep.subr.bf16.mxu0 0
      %574 = vmatpush1.bf16.msra.mxu0 %v473
      %575 = vmatprep.subr.bf16.mxu0 0
      %576 = vmatpush1.bf16.msra.mxu0 %v474
      %577 = vmatprep.subr.bf16.mxu0 0
      %578 = vmatpush1.bf16.msra.mxu0 %v475
      %579 = vmatprep.subr.bf16.mxu0 0
      %580 = vmatpush1.bf16.msra.mxu0 %v476
      %581 = vmatprep.subr.bf16.mxu0 0
      %582 = vmatpush1.bf16.msra.mxu0 %v477
      %583 = vmatprep.mubr.bf16.mxu0 %v313
      %584 = vmatmul.mubr.bf16.gmra.mrb[0].mxu0 %v312
      %v585 = vpop.f32.mrb[0].mxu0
      %v586 = vadd.f32 %v545, %v585
      %v587 = vpop.f32.mrb[0].mxu0
      %v588 = vpop.f32.mrb[0].mxu0
      %v589 = vadd.f32 %v548, %v588
      %v590 = vpop.f32.mrb[0].mxu0
      %591 = vdwg.mxu0
      %v592 = vlaneseq
      %v593 = vshrl.u32 %v592, 7
      %v594 = vadd.s32 %v593, 8
      %vm595 = vcmp.lt.s32.totalorder %v593, 9
      %vm596 = vcmp.lt.s32.totalorder %v594, 9
      %v597 = vsel %vm595, %v586, 0.0
      %v598 = vsel %vm596, %v589, 0.0
      %v599 = vadd.f32 %v597, %v598
      %v600 = vrot.slane %v599, 4
      %v601 = vadd.f32 %v599, %v600
      %v602 = vrot.slane %v601, 2
      %v603 = vadd.f32 %v601, %v602
      %v604 = vrot.slane %v603, 1
      %v605 = vadd.f32 %v603, %v604
      %v606 = vmul.f32 %v605, 0.11111111
      %v607 = vmul.f32 %v597, %v597
      %v608 = vmul.f32 %v598, %v598
      %v609 = vadd.f32 %v607, %v608
      %v610 = vrot.slane %v609, 4
      %v611 = vadd.f32 %v609, %v610
      %v612 = vrot.slane %v611, 2
      %v613 = vadd.f32 %v611, %v612
      %v614 = vrot.slane %v613, 1
      %v615 = vadd.f32 %v613, %v614
      %v616 = vmul.f32 %v615, 0.11111111
      %v617 = vmul.f32 %v606, %v606
      %v618 = vsub.f32 %v616, %v617
      %v619 = vmax.f32 %v618, 0.0
      %v620 = vsub.f32 %v586, %v606
      %v621 = vsub.f32 %v589, %v606
      %v622 = vadd.f32 %v619, 1e-05
      %v623 = vrsqrt.pop %v622
      %v624 = vmul.f32 %v620, %v623
      %v625 = vmul.f32 %v621, %v623
      %vm626 = vcmp.ge.f32.partialorder %v624, 0.0
      %vm627 = vcmp.ge.f32.partialorder %v625, 0.0
      %v628 = vmul.f32 %v624, 0.2
      %v629 = vmul.f32 %v625, 0.2
      %v630 = vsel %vm626, %v624, %v628
      %v631 = vsel %vm627, %v625, %v629
      %v632 = vpack.c.bf16 %v631, %v630
      %v634 = vunpack.c.l.b16 %v632
      %v635 = vunpack.c.h.b16 %v632
      %v636 = vpack.c.b16 %v634, %v634
      %v637 = vpack.c.b16 %v635, %v635
      %640 = vst [vmem:[%s221] sm:$0xf] %v636
      %641 = vst [vmem:[%s221 + $0x4] sm:$0xf] %v637
      %p642 = scmp.lt.s32.totalorder %s18, 1
      %s643 = scalar_select %p642, %s18, 1
      %p644 = scmp.lt.s32.totalorder %s19, 0
      %s645 = scalar_select %p644, %s19, 0
      %s646 = smul.addr %s643, 2
      %s647 = sadd.s32 %s645, %s646
      %s648 = smul.addr %s647, 4
      %s649 = scalar_lea.vmem %s3, %s648
      // Predicated region
      $region33: #{_lambda_.8} parent=31 // pred_check
        %p650 = pneg %p124
      $region34: #{_lambda_.8} parent=31 // pred_check_branch
        %652 = sbr.rel (%p650) target = $region36
      $region35: #{_lambda_.8} parent=31 // pred_region
        _
      $region36: #{_lambda_.8} parent=31 // pred_fallthru
        _
    $region32: #{_lambda_.8} parent=5 // pred_fallthru
      _
    %p653 = scmp.le.s32.totalorder 2, %s9
    // Predicated region
    $region37: #{_lambda_.8} parent=5 // pred_check
      %p654 = pneg %p653
    $region38: #{_lambda_.8} parent=5 // pred_check_branch
      %656 = sbr.rel (%p654) target = $region40
    $region39: #{_lambda_.8} parent=5 // pred_region
      %s657 = ssub.s32 %s9, 2
      // Predicated region
      $region41: #{_lambda_.8} parent=39 // pred_check
        %p658 = pneg %p130
      $region42: #{_lambda_.8} parent=39 // pred_check_branch
        %660 = sbr.rel (%p658) target = $region44
      $region43: #{_lambda_.8} parent=39 // pred_region
        %p661 = scmp.lt.s32.totalorder %s20, 1
        %s662 = scalar_select %p661, %s20, 1
        %p663 = scmp.lt.s32.totalorder %s21, 0
        %s664 = scalar_select %p663, %s21, 0
        %s665 = smul.addr %s662, 2
        %s666 = sadd.s32 %s664, %s665
        %s667 = smul.addr %s666, 4
        %s668 = scalar_lea.vmem %s3, %s667
      $region44: #{_lambda_.8} parent=39 // pred_fallthru
        _
    $region40: #{_lambda_.8} parent=5 // pred_fallthru
      _
  $region6: #{_lambda_.8} parent=0 // loop_footer
    %s13 = sadd.s32 1, %s9
  $region7: #{_lambda_.8} parent=0 // loop_footer_branch
    %8 = sbr.rel target = $region3
  $region8: #{_lambda_.8} parent=0 // loop_exit
    _

// kernel: _lambda_.9
$region0: #{_lambda_.9}
  #allocation0 [shape = 'u32[]', space=smem, size = 0x4, offset = 0x4, fixed_abs, tag = 'smem constant byte address 0x4 - core index']
  #allocation1 [shape = 'u32[144,128]{1,0:T(1,128)}', space=vmem, size = 0x12000, scoped, tag = 'internal scratch']
  %s0 = inlined_call_operand.vmem [shape: bf16[2,16,1024], index: 0, kind: input, shape index: {}]
  %s1 = inlined_call_operand.vmem [shape: bf16[1024,128], index: 1, kind: input, shape index: {}]
  %s2 = inlined_call_operand.vmem [shape: f32[1,128], index: 2, kind: input, shape index: {}]
  %s3 = inlined_call_operand.vmem [shape: f32[2,16,128], index: 3, kind: output, shape index: {}]
  %s4 = sld [smem:[#allocation0]]
  $region45: #{_lambda_.9} parent=0
    _
  %s6 = ssub.s32 1, %s4
  %s7 = scalar_select 0, %s6, %s4
  loop: start=0, step=1, limit=4
  $region2: #{_lambda_.9} parent=0 // loop_pre_header
    _
  $region3: #{_lambda_.9} parent=0 // loop_header
    %s9 = sphi 0, %s13
    %p10 = scmp.ge.s32.totalorder %s9, 4
    %s16 = sphi 0, %s35
    %s17 = sphi 0, %s31
    %s18 = sphi 0, %s27
    %s19 = sphi 0, %s16
    %s20 = sphi 0, %s17
    %s21 = sphi 0, %s18
    %s22 = sphi 0, %s19
    %s23 = sphi 0, %s20
    %s24 = sphi 0, %s21
    %s40 = sphi 0, %s42
    %s43 = sphi 0, %s40
    %s44 = sphi 0, %s43
    %s60 = sphi 0, %s44
    %s66 = sphi 0, %s68
    %s69 = sphi 0, %s66
    %s70 = sphi 0, %s69
    %s86 = sphi 0, %s70
    %s92 = sphi 0, %s94
    %s95 = sphi 0, %s92
    %s96 = sphi 0, %s95
    %s112 = sphi 0, %s96
    %s122 = sphi 0, %s124
    %s125 = sphi 0, %s122
    %s126 = sphi 0, %s125
    %s142 = sphi 0, %s126
  $region4: #{_lambda_.9} parent=0 // loop_header_branch
    %12 = sbr.rel (%p10) target = $region8
  $region5: #{_lambda_.9} parent=0 // loop_body
    %s14 = ssub.s32 %s9, 1
    %s15 = ssub.s32 %s9, 2
    %s25 = sadd.s32 1, %s18
    %p26 = scmp.ge.s32.totalorder %s25, 1
    %s27 = scalar_select %p26, 0, %s25
    %s28 = sadd.s32 1, %s17
    %s29 = scalar_select %p26, %s28, %s17
    %p30 = scmp.ge.s32.totalorder %s29, 1
    %s31 = scalar_select %p30, 0, %s29
    %s32 = sadd.s32 1, %s16
    %s33 = scalar_select %p30, %s32, %s16
    %p34 = scmp.ge.s32.totalorder %s33, 2
    %s35 = scalar_select %p34, 0, %s33
    %s36 = ssub.s32 %s16, %s35
    %s37 = ssub.s32 %s18, %s27
    %s38 = sor.u32 %s36, %s37
    %p39 = scmp.eq.s32.totalorder %s38, 0
    %s41 = sadd.s32 %s40, 1
    %s42 = scalar_select %p39, %s40, %s41
    %p45 = pneg %p39
    %p46 = scmp.eq.s32.totalorder %s9, 1
    %p47 = por %p45, %p46
    %p48 = scmp.ne.s32.totalorder %s40, %s43
    %p49 = scmp.eq.s32.totalorder %s9, 0
    %p50 = por %p48, %p49
    %p51 = scmp.ne.s32.totalorder %s40, %s43
    %p52 = scmp.eq.s32.totalorder %s14, 1
    %p53 = por %p51, %p52
    %p54 = scmp.ne.s32.totalorder %s43, %s44
    %p55 = scmp.eq.s32.totalorder %s14, 0
    %p56 = por %p54, %p55
    %p57 = scmp.ne.s32.totalorder %s43, %s44
    %p58 = scmp.eq.s32.totalorder %s15, 1
    %p59 = por %p57, %p58
    %p61 = scmp.ne.s32.totalorder %s44, %s60
    %p62 = scmp.eq.s32.totalorder %s15, 0
    %p63 = por %p61, %p62
    %s64 = ssub.s32 %s17, %s31
    %p65 = scmp.eq.s32.totalorder %s64, 0
    %s67 = sadd.s32 %s66, 1
    %s68 = scalar_select %p65, %s66, %s67
    %p71 = pneg %p65
    %p72 = scmp.eq.s32.totalorder %s9, 1
    %p73 = por %p71, %p72
    %p74 = scmp.ne.s32.totalorder %s66, %s69
    %p75 = scmp.eq.s32.totalorder %s9, 0
    %p76 = por %p74, %p75
    %p77 = scmp.ne.s32.totalorder %s66, %s69
    %p78 = scmp.eq.s32.totalorder %s14, 1
    %p79 = por %p77, %p78
    %p80 = scmp.ne.s32.totalorder %s69, %s70
    %p81 = scmp.eq.s32.totalorder %s14, 0
    %p82 = por %p80, %p81
    %p83 = scmp.ne.s32.totalorder %s69, %s70
    %p84 = scmp.eq.s32.totalorder %s15, 1
    %p85 = por %p83, %p84
    %p87 = scmp.ne.s32.totalorder %s70, %s86
    %p88 = scmp.eq.s32.totalorder %s15, 0
    %p89 = por %p87, %p88
    %s90 = ssub.s32 %s17, %s31
    %p91 = scmp.eq.s32.totalorder %s90, 0
    %s93 = sadd.s32 %s92, 1
    %s94 = scalar_select %p91, %s92, %s93
    %p97 = pneg %p91
    %p98 = scmp.eq.s32.totalorder %s9, 1
    %p99 = por %p97, %p98
    %p100 = scmp.ne.s32.totalorder %s92, %s95
    %p101 = scmp.eq.s32.totalorder %s9, 0
    %p102 = por %p100, %p101
    %p103 = scmp.ne.s32.totalorder %s92, %s95
    %p104 = scmp.eq.s32.totalorder %s14, 1
    %p105 = por %p103, %p104
    %p106 = scmp.ne.s32.totalorder %s95, %s96
    %p107 = scmp.eq.s32.totalorder %s14, 0
    %p108 = por %p106, %p107
    %p109 = scmp.ne.s32.totalorder %s95, %s96
    %p110 = scmp.eq.s32.totalorder %s15, 1
    %p111 = por %p109, %p110
    %p113 = scmp.ne.s32.totalorder %s96, %s112
    %p114 = scmp.eq.s32.totalorder %s15, 0
    %p115 = por %p113, %p114
    %s116 = ssub.s32 %s16, %s35
    %s117 = ssub.s32 %s18, %s27
    %s118 = sor.u32 %s116, %s117
    %s119 = ssub.s32 %s17, %s31
    %s120 = sor.u32 %s118, %s119
    %p121 = scmp.eq.s32.totalorder %s120, 0
    %s123 = sadd.s32 %s122, 1
    %s124 = scalar_select %p121, %s122, %s123
    %p127 = pneg %p121
    %p128 = scmp.eq.s32.totalorder %s9, 1
    %p129 = por %p127, %p128
    %p130 = scmp.ne.s32.totalorder %s122, %s125
    %p131 = scmp.eq.s32.totalorder %s9, 0
    %p132 = por %p130, %p131
    %p133 = scmp.ne.s32.totalorder %s122, %s125
    %p134 = scmp.eq.s32.totalorder %s14, 1
    %p135 = por %p133, %p134
    %p136 = scmp.ne.s32.totalorder %s125, %s126
    %p137 = scmp.eq.s32.totalorder %s14, 0
    %p138 = por %p136, %p137
    %p139 = scmp.ne.s32.totalorder %s125, %s126
    %p140 = scmp.eq.s32.totalorder %s15, 1
    %p141 = por %p139, %p140
    %p143 = scmp.ne.s32.totalorder %s126, %s142
    %p144 = scmp.eq.s32.totalorder %s15, 0
    %p145 = por %p143, %p144
    %p146 = scmp.le.s32.totalorder 1, %s9
    %p147 = scmp.lt.s32.totalorder %s9, 3
    %p148 = pnand %p146, %p147
    %p149 = pneg %p148
    // Predicated region
    $region9: #{_lambda_.9} parent=5 // pred_check
      _
    $region10: #{_lambda_.9} parent=5 // pred_check_branch
      %151 = sbr.rel (%p148) target = $region12
    $region11: #{_lambda_.9} parent=5 // pred_region
      %s152 = ssub.s32 %s9, 1
      // Predicated region
      $region13: #{_lambda_.9} parent=11 // pred_check
        %p153 = pneg %p82
      $region14: #{_lambda_.9} parent=11 // pred_check_branch
        %155 = sbr.rel (%p153) target = $region16
      $region15: #{_lambda_.9} parent=11 // pred_region
        %p156 = scmp.lt.s32.totalorder %s20, 0
        %s157 = scalar_select %p156, %s20, 0
        %s158 = smul.addr %s157, 4
        %s159 = scalar_lea.vmem %s1, %s158
      $region16: #{_lambda_.9} parent=11 // pred_fallthru
        _
      // Predicated region
      $region17: #{_lambda_.9} parent=11 // pred_check
        %p160 = pneg %p108
      $region18: #{_lambda_.9} parent=11 // pred_check_branch
        %162 = sbr.rel (%p160) target = $region20
      $region19: #{_lambda_.9} parent=11 // pred_region
        %p163 = scmp.lt.s32.totalorder %s20, 0
        %s164 = scalar_select %p163, %s20, 0
        %s165 = scalar_lea.vmem %s2, %s164
      $region20: #{_lambda_.9} parent=11 // pred_fallthru
        _
    $region12: #{_lambda_.9} parent=5 // pred_fallthru
      _
    %p166 = scmp.lt.s32.totalorder %s9, 2
    // Predicated region
    $region21: #{_lambda_.9} parent=5 // pred_check
      %p167 = pneg %p166
    $region22: #{_lambda_.9} parent=5 // pred_check_branch
      %169 = sbr.rel (%p167) target = $region24
    $region23: #{_lambda_.9} parent=5 // pred_region
      // Predicated region
      $region25: #{_lambda_.9} parent=23 // pred_check
        %p170 = pneg %p50
      $region26: #{_lambda_.9} parent=23 // pred_check_branch
        %172 = sbr.rel (%p170) target = $region28
      $region27: #{_lambda_.9} parent=23 // pred_region
        %s173 = smul.u32 2, %s18
        %p174 = scmp.lt.s32.totalorder %s16, 1
        %s175 = scalar_select %p174, %s16, 1
        %p176 = scmp.lt.s32.totalorder %s173, 1
        %s177 = scalar_select %p176, %s173, 1
        %s178 = smul.addr %s177, 8
        %s179 = smul.addr %s175, 16
        %s180 = sadd.s32 %s178, %s179
        %s181 = smul.addr %s180, 4
        %s182 = scalar_lea.vmem %s0, %s181
        %s183 = smul.u32 2, %s18
      $region28: #{_lambda_.9} parent=23 // pred_fallthru
        _
    $region24: #{_lambda_.9} parent=5 // pred_fallthru
      _
    %p184 = scmp.le.s32.totalorder 1, %s9
    %p185 = scmp.lt.s32.totalorder %s9, 3
    %p186 = pnand %p184, %p185
    %p187 = pneg %p186
    // Predicated region
    $region29: #{_lambda_.9} parent=5 // pred_check
      _
    $region30: #{_lambda_.9} parent=5 // pred_check_branch
      %189 = sbr.rel (%p186) target = $region32
    $region31: #{_lambda_.9} parent=5 // pred_region
      %s190 = ssub.s32 %s9, 1
      %s191 = smul.u32 2, %s21
      %p192 = scmp.lt.s32.totalorder %s19, 1
      %s193 = scalar_select %p192, %s19, 1
      %p194 = scmp.lt.s32.totalorder %s191, 1
      %s195 = scalar_select %p194, %s191, 1
      %s196 = smul.addr %s195, 8
      %s197 = smul.addr %s193, 16
      %s198 = sadd.s32 %s196, %s197
      %s199 = smul.addr %s198, 4
      %s200 = scalar_lea.vmem %s0, %s199
      %p201 = pneg %p56
      %p202 = pneg %p53
      %p203 = scmp.lt.s32.totalorder %s20, 0
      %s204 = scalar_select %p203, %s20, 0
      %s205 = smul.addr %s204, 4
      %s206 = scalar_lea.vmem %s1, %s205
      %p207 = pneg %p82
      %p208 = pneg %p79
      %p209 = scmp.lt.s32.totalorder %s20, 0
      %s210 = scalar_select %p209, %s20, 0
      %s211 = scalar_lea.vmem %s2, %s210
      %p212 = pneg %p108
      %p213 = pneg %p105
      %p214 = pneg %p138
      %p215 = pneg %p135
      %s216 = smul.u32 2, %s21
      %p217 = scmp.lt.s32.totalorder %s19, 1
      %s218 = scalar_select %p217, %s19, 1
      %p219 = scmp.lt.s32.totalorder %s216, 1
      %s220 = scalar_select %p219, %s216, 1
      %p221 = scmp.lt.s32.totalorder %s20, 0
      %s222 = scalar_select %p221, %s20, 0
      %s223 = sadd.s32 %s222, %s220
      %s224 = smul.addr %s218, 2
      %s225 = sadd.s32 %s223, %s224
      %s226 = smul.addr %s225, 8
      %s227 = scalar_lea.vmem %s3, %s226
      %s228 = smul.u32 2, %s21
      %p229 = scmp.lt.s32.totalorder %s19, 1
      %s230 = scalar_select %p229, %s19, 1
      %p231 = scmp.lt.s32.totalorder %s228, 1
      %s232 = scalar_select %p231, %s228, 1
      %s233 = smul.addr %s232, 8
      %s234 = smul.addr %s230, 16
      %s235 = sadd.s32 %s233, %s234
      %s236 = smul.addr %s235, 4
      %s237 = scalar_lea.vmem %s0, %s236
      %s238 = smul.u32 2, %s21
      %p239 = scmp.lt.s32.totalorder %s20, 0
      %s240 = scalar_select %p239, %s20, 0
      %s241 = smul.addr %s240, 4
      %s242 = scalar_lea.vmem %s1, %s241
      %p243 = scmp.lt.s32.totalorder %s20, 0
      %s244 = scalar_select %p243, %s20, 0
      %s245 = scalar_lea.vmem %s2, %s244
      %s246 = smul.u32 2, %s21
      %p247 = scmp.lt.s32.totalorder %s19, 1
      %s248 = scalar_select %p247, %s19, 1
      %p249 = scmp.lt.s32.totalorder %s246, 1
      %s250 = scalar_select %p249, %s246, 1
      %p251 = scmp.lt.s32.totalorder %s20, 0
      %s252 = scalar_select %p251, %s20, 0
      %s253 = sadd.s32 %s252, %s250
      %s254 = smul.addr %s248, 2
      %s255 = sadd.s32 %s253, %s254
      %s256 = smul.addr %s255, 8
      %s257 = scalar_lea.vmem %s3, %s256
      %s258 = smul.u32 2, %s21
      %v260 = vld [vmem:[%s237] sm:$0xff]
      %v261 = vld [vmem:[%s237 + $0x8] sm:$0xff]
      %v262 = vld [vmem:[%s237 + $0x10] sm:$0xff]
      %v263 = vld [vmem:[%s237 + $0x18] sm:$0xff]
      %v264 = vld [vmem:[%s237 + $0x20] sm:$0xff]
      %v265 = vld [vmem:[%s237 + $0x28] sm:$0xff]
      %v266 = vld [vmem:[%s237 + $0x30] sm:$0xff]
      %v267 = vld [vmem:[%s237 + $0x38] sm:$0xff]
      %v268 = vld [vmem:[%s242] sm:$0xf]
      %v269 = vld [vmem:[%s242 + $0x4] sm:$0xf]
      %v270 = vld [vmem:[%s242 + $0x8] sm:$0xf]
      %v271 = vld [vmem:[%s242 + $0xc] sm:$0xf]
      %v272 = vld [vmem:[%s242 + $0x10] sm:$0xf]
      %v273 = vld [vmem:[%s242 + $0x14] sm:$0xf]
      %v274 = vld [vmem:[%s242 + $0x18] sm:$0xf]
      %v275 = vld [vmem:[%s242 + $0x1c] sm:$0xf]
      %v276 = vld [vmem:[%s242 + $0x20] sm:$0xf]
      %v277 = vld [vmem:[%s242 + $0x24] sm:$0xf]
      %v278 = vld [vmem:[%s242 + $0x28] sm:$0xf]
      %v279 = vld [vmem:[%s242 + $0x2c] sm:$0xf]
      %v280 = vld [vmem:[%s242 + $0x30] sm:$0xf]
      %v281 = vld [vmem:[%s242 + $0x34] sm:$0xf]
      %v282 = vld [vmem:[%s242 + $0x38] sm:$0xf]
      %v283 = vld [vmem:[%s242 + $0x3c] sm:$0xf]
      %v284 = vld [vmem:[%s242 + $0x40] sm:$0xf]
      %v285 = vld [vmem:[%s242 + $0x44] sm:$0xf]
      %v286 = vld [vmem:[%s242 + $0x48] sm:$0xf]
      %v287 = vld [vmem:[%s242 + $0x4c] sm:$0xf]
      %v288 = vld [vmem:[%s242 + $0x50] sm:$0xf]
      %v289 = vld [vmem:[%s242 + $0x54] sm:$0xf]
      %v290 = vld [vmem:[%s242 + $0x58] sm:$0xf]
      %v291 = vld [vmem:[%s242 + $0x5c] sm:$0xf]
      %v292 = vld [vmem:[%s242 + $0x60] sm:$0xf]
      %v293 = vld [vmem:[%s242 + $0x64] sm:$0xf]
      %v294 = vld [vmem:[%s242 + $0x68] sm:$0xf]
      %v295 = vld [vmem:[%s242 + $0x6c] sm:$0xf]
      %v296 = vld [vmem:[%s242 + $0x70] sm:$0xf]
      %v297 = vld [vmem:[%s242 + $0x74] sm:$0xf]
      %v298 = vld [vmem:[%s242 + $0x78] sm:$0xf]
      %v299 = vld [vmem:[%s242 + $0x7c] sm:$0xf]
      %v300 = vld [vmem:[%s242 + $0x80] sm:$0xf]
      %v301 = vld [vmem:[%s242 + $0x84] sm:$0xf]
      %v302 = vld [vmem:[%s242 + $0x88] sm:$0xf]
      %v303 = vld [vmem:[%s242 + $0x8c] sm:$0xf]
      %v304 = vld [vmem:[%s242 + $0x90] sm:$0xf]
      %v305 = vld [vmem:[%s242 + $0x94] sm:$0xf]
      %v306 = vld [vmem:[%s242 + $0x98] sm:$0xf]
      %v307 = vld [vmem:[%s242 + $0x9c] sm:$0xf]
      %v308 = vld [vmem:[%s242 + $0xa0] sm:$0xf]
      %v309 = vld [vmem:[%s242 + $0xa4] sm:$0xf]
      %v310 = vld [vmem:[%s242 + $0xa8] sm:$0xf]
      %v311 = vld [vmem:[%s242 + $0xac] sm:$0xf]
      %v312 = vld [vmem:[%s242 + $0xb0] sm:$0xf]
      %v313 = vld [vmem:[%s242 + $0xb4] sm:$0xf]
      %v314 = vld [vmem:[%s242 + $0xb8] sm:$0xf]
      %v315 = vld [vmem:[%s242 + $0xbc] sm:$0xf]
      %v316 = vld [vmem:[%s242 + $0xc0] sm:$0xf]
      %v317 = vld [vmem:[%s242 + $0xc4] sm:$0xf]
      %v318 = vld [vmem:[%s242 + $0xc8] sm:$0xf]
      %v319 = vld [vmem:[%s242 + $0xcc] sm:$0xf]
      %v320 = vld [vmem:[%s242 + $0xd0] sm:$0xf]
      %v321 = vld [vmem:[%s242 + $0xd4] sm:$0xf]
      %v322 = vld [vmem:[%s242 + $0xd8] sm:$0xf]
      %v323 = vld [vmem:[%s242 + $0xdc] sm:$0xf]
      %v324 = vld [vmem:[%s242 + $0xe0] sm:$0xf]
      %v325 = vld [vmem:[%s242 + $0xe4] sm:$0xf]
      %v326 = vld [vmem:[%s242 + $0xe8] sm:$0xf]
      %v327 = vld [vmem:[%s242 + $0xec] sm:$0xf]
      %v328 = vld [vmem:[%s242 + $0xf0] sm:$0xf]
      %v329 = vld [vmem:[%s242 + $0xf4] sm:$0xf]
      %v330 = vld [vmem:[%s242 + $0xf8] sm:$0xf]
      %v331 = vld [vmem:[%s242 + $0xfc] sm:$0xf]
      %v332 = vld [vmem:[%s242 + $0x100] sm:$0xf]
      %v333 = vld [vmem:[%s242 + $0x104] sm:$0xf]
      %v334 = vld [vmem:[%s242 + $0x108] sm:$0xf]
      %v335 = vld [vmem:[%s242 + $0x10c] sm:$0xf]
      %v336 = vld [vmem:[%s242 + $0x110] sm:$0xf]
      %v337 = vld [vmem:[%s242 + $0x114] sm:$0xf]
      %v338 = vld [vmem:[%s242 + $0x118] sm:$0xf]
      %v339 = vld [vmem:[%s242 + $0x11c] sm:$0xf]
      %v340 = vld [vmem:[%s242 + $0x120] sm:$0xf]
      %v341 = vld [vmem:[%s242 + $0x124] sm:$0xf]
      %v342 = vld [vmem:[%s242 + $0x128] sm:$0xf]
      %v343 = vld [vmem:[%s242 + $0x12c] sm:$0xf]
      %v344 = vld [vmem:[%s242 + $0x130] sm:$0xf]
      %v345 = vld [vmem:[%s242 + $0x134] sm:$0xf]
      %v346 = vld [vmem:[%s242 + $0x138] sm:$0xf]
      %v347 = vld [vmem:[%s242 + $0x13c] sm:$0xf]
      %v348 = vld [vmem:[%s242 + $0x140] sm:$0xf]
      %v349 = vld [vmem:[%s242 + $0x144] sm:$0xf]
      %v350 = vld [vmem:[%s242 + $0x148] sm:$0xf]
      %v351 = vld [vmem:[%s242 + $0x14c] sm:$0xf]
      %v352 = vld [vmem:[%s242 + $0x150] sm:$0xf]
      %v353 = vld [vmem:[%s242 + $0x154] sm:$0xf]
      %v354 = vld [vmem:[%s242 + $0x158] sm:$0xf]
      %v355 = vld [vmem:[%s242 + $0x15c] sm:$0xf]
      %v356 = vld [vmem:[%s242 + $0x160] sm:$0xf]
      %v357 = vld [vmem:[%s242 + $0x164] sm:$0xf]
      %v358 = vld [vmem:[%s242 + $0x168] sm:$0xf]
      %v359 = vld [vmem:[%s242 + $0x16c] sm:$0xf]
      %v360 = vld [vmem:[%s242 + $0x170] sm:$0xf]
      %v361 = vld [vmem:[%s242 + $0x174] sm:$0xf]
      %v362 = vld [vmem:[%s242 + $0x178] sm:$0xf]
      %v363 = vld [vmem:[%s242 + $0x17c] sm:$0xf]
      %v364 = vld [vmem:[%s242 + $0x180] sm:$0xf]
      %v365 = vld [vmem:[%s242 + $0x184] sm:$0xf]
      %v366 = vld [vmem:[%s242 + $0x188] sm:$0xf]
      %v367 = vld [vmem:[%s242 + $0x18c] sm:$0xf]
      %v368 = vld [vmem:[%s242 + $0x190] sm:$0xf]
      %v369 = vld [vmem:[%s242 + $0x194] sm:$0xf]
      %v370 = vld [vmem:[%s242 + $0x198] sm:$0xf]
      %v371 = vld [vmem:[%s242 + $0x19c] sm:$0xf]
      %v372 = vld [vmem:[%s242 + $0x1a0] sm:$0xf]
      %v373 = vld [vmem:[%s242 + $0x1a4] sm:$0xf]
      %v374 = vld [vmem:[%s242 + $0x1a8] sm:$0xf]
      %v375 = vld [vmem:[%s242 + $0x1ac] sm:$0xf]
      %v376 = vld [vmem:[%s242 + $0x1b0] sm:$0xf]
      %v377 = vld [vmem:[%s242 + $0x1b4] sm:$0xf]
      %v378 = vld [vmem:[%s242 + $0x1b8] sm:$0xf]
      %v379 = vld [vmem:[%s242 + $0x1bc] sm:$0xf]
      %v380 = vld [vmem:[%s242 + $0x1c0] sm:$0xf]
      %v381 = vld [vmem:[%s242 + $0x1c4] sm:$0xf]
      %v382 = vld [vmem:[%s242 + $0x1c8] sm:$0xf]
      %v383 = vld [vmem:[%s242 + $0x1cc] sm:$0xf]
      %v384 = vld [vmem:[%s242 + $0x1d0] sm:$0xf]
      %v385 = vld [vmem:[%s242 + $0x1d4] sm:$0xf]
      %v386 = vld [vmem:[%s242 + $0x1d8] sm:$0xf]
      %v387 = vld [vmem:[%s242 + $0x1dc] sm:$0xf]
      %v388 = vld [vmem:[%s242 + $0x1e0] sm:$0xf]
      %v389 = vld [vmem:[%s242 + $0x1e4] sm:$0xf]
      %v390 = vld [vmem:[%s242 + $0x1e8] sm:$0xf]
      %v391 = vld [vmem:[%s242 + $0x1ec] sm:$0xf]
      %v392 = vld [vmem:[%s242 + $0x1f0] sm:$0xf]
      %v393 = vld [vmem:[%s242 + $0x1f4] sm:$0xf]
      %v394 = vld [vmem:[%s242 + $0x1f8] sm:$0xf]
      %v395 = vld [vmem:[%s242 + $0x1fc] sm:$0xf]
      %v396 = vld [vmem:[%s245] sm:$0x1]
      %v398 = vlaneseq
      %v399 = vshrl.u32 %v398, 7
      %v400 = vsub.s32 0, %v399
      %v401 = vrot.slane %v396, %v400
      %v411 = vunpack.c.l.b16 %v260
      %v412 = vunpack.c.h.b16 %v260
      %v413 = vunpack.c.l.b16 %v261
      %v414 = vunpack.c.h.b16 %v261
      %v415 = vunpack.c.l.b16 %v262
      %v416 = vunpack.c.h.b16 %v262
      %v417 = vunpack.c.l.b16 %v263
      %v418 = vunpack.c.h.b16 %v263
      %v419 = vunpack.c.l.b16 %v264
      %v420 = vunpack.c.h.b16 %v264
      %v421 = vunpack.c.l.b16 %v265
      %v422 = vunpack.c.h.b16 %v265
      %v423 = vunpack.c.l.b16 %v266
      %v424 = vunpack.c.h.b16 %v266
      %v425 = vunpack.c.l.b16 %v267
      %v426 = vunpack.c.h.b16 %v267
      %v427 = vpack.c.b16 %v419, %v411
      %v428 = vpack.c.b16 %v420, %v412
      %v429 = vpack.c.b16 %v421, %v413
      %v430 = vpack.c.b16 %v422, %v414
      %v431 = vpack.c.b16 %v423, %v415
      %v432 = vpack.c.b16 %v424, %v416
      %v433 = vpack.c.b16 %v425, %v417
      %v434 = vpack.c.b16 %v426, %v418
      %v571 = vunpack.c.l.b16 %v268
      %v572 = vunpack.c.l.b16 %v269
      %v573 = vunpack.c.l.b16 %v270
      %v574 = vunpack.c.l.b16 %v271
      %v575 = vunpack.c.l.b16 %v272
      %v576 = vunpack.c.l.b16 %v273
      %v577 = vunpack.c.l.b16 %v274
      %v578 = vunpack.c.l.b16 %v275
      %v579 = vunpack.c.l.b16 %v276
      %v580 = vunpack.c.l.b16 %v277
      %v581 = vunpack.c.l.b16 %v278
      %v582 = vunpack.c.l.b16 %v279
      %v583 = vunpack.c.l.b16 %v280
      %v584 = vunpack.c.l.b16 %v281
      %v585 = vunpack.c.l.b16 %v282
      %v586 = vunpack.c.l.b16 %v283
      %v587 = vunpack.c.l.b16 %v284
      %v588 = vunpack.c.l.b16 %v285
      %v589 = vunpack.c.l.b16 %v286
      %v590 = vunpack.c.l.b16 %v287
      %v591 = vunpack.c.l.b16 %v288
      %v592 = vunpack.c.l.b16 %v289
      %v593 = vunpack.c.l.b16 %v290
      %v594 = vunpack.c.l.b16 %v291
      %v595 = vunpack.c.l.b16 %v292
      %v596 = vunpack.c.l.b16 %v293
      %v597 = vunpack.c.l.b16 %v294
      %v598 = vunpack.c.l.b16 %v295
      %v599 = vunpack.c.l.b16 %v296
      %v600 = vunpack.c.l.b16 %v297
      %v601 = vunpack.c.l.b16 %v298
      %v602 = vunpack.c.l.b16 %v299
      %v603 = vunpack.c.l.b16 %v300
      %v604 = vunpack.c.l.b16 %v301
      %v605 = vunpack.c.l.b16 %v302
      %v606 = vunpack.c.l.b16 %v303
      %v607 = vunpack.c.l.b16 %v304
      %v608 = vunpack.c.l.b16 %v305
      %v609 = vunpack.c.l.b16 %v306
      %v610 = vunpack.c.l.b16 %v307
      %v611 = vunpack.c.l.b16 %v308
      %v612 = vunpack.c.l.b16 %v309
      %v613 = vunpack.c.l.b16 %v310
      %v614 = vunpack.c.l.b16 %v311
      %v615 = vunpack.c.l.b16 %v312
      %v616 = vunpack.c.l.b16 %v313
      %v617 = vunpack.c.l.b16 %v314
      %v618 = vunpack.c.l.b16 %v315
      %v619 = vunpack.c.l.b16 %v316
      %v620 = vunpack.c.l.b16 %v317
      %v621 = vunpack.c.l.b16 %v318
      %v622 = vunpack.c.l.b16 %v319
      %v623 = vunpack.c.l.b16 %v320
      %v624 = vunpack.c.l.b16 %v321
      %v625 = vunpack.c.l.b16 %v322
      %v626 = vunpack.c.l.b16 %v323
      %v627 = vunpack.c.l.b16 %v324
      %v628 = vunpack.c.l.b16 %v325
      %v629 = vunpack.c.l.b16 %v326
      %v630 = vunpack.c.l.b16 %v327
      %v631 = vunpack.c.l.b16 %v328
      %v632 = vunpack.c.l.b16 %v329
      %v633 = vunpack.c.l.b16 %v330
      %v634 = vunpack.c.l.b16 %v331
      %v635 = vunpack.c.l.b16 %v332
      %v636 = vunpack.c.l.b16 %v333
      %v637 = vunpack.c.l.b16 %v334
      %v638 = vunpack.c.l.b16 %v335
      %v639 = vunpack.c.l.b16 %v336
      %v640 = vunpack.c.l.b16 %v337
      %v641 = vunpack.c.l.b16 %v338
      %v642 = vunpack.c.l.b16 %v339
      %v643 = vunpack.c.l.b16 %v340
      %v644 = vunpack.c.l.b16 %v341
      %v645 = vunpack.c.l.b16 %v342
      %v646 = vunpack.c.l.b16 %v343
      %v647 = vunpack.c.l.b16 %v344
      %v648 = vunpack.c.l.b16 %v345
      %v649 = vunpack.c.l.b16 %v346
      %v650 = vunpack.c.l.b16 %v347
      %v651 = vunpack.c.l.b16 %v348
      %v652 = vunpack.c.l.b16 %v349
      %v653 = vunpack.c.l.b16 %v350
      %v654 = vunpack.c.l.b16 %v351
      %v655 = vunpack.c.l.b16 %v352
      %v656 = vunpack.c.l.b16 %v353
      %v657 = vunpack.c.l.b16 %v354
      %v658 = vunpack.c.l.b16 %v355
      %v659 = vunpack.c.l.b16 %v356
      %v660 = vunpack.c.l.b16 %v357
      %v661 = vunpack.c.l.b16 %v358
      %v662 = vunpack.c.l.b16 %v359
      %v663 = vunpack.c.l.b16 %v360
      %v664 = vunpack.c.l.b16 %v361
      %v665 = vunpack.c.l.b16 %v362
      %v666 = vunpack.c.l.b16 %v363
      %v667 = vunpack.c.l.b16 %v364
      %v668 = vunpack.c.l.b16 %v365
      %v669 = vunpack.c.l.b16 %v366
      %v670 = vunpack.c.l.b16 %v367
      %v671 = vunpack.c.l.b16 %v368
      %v672 = vunpack.c.l.b16 %v369
      %v673 = vunpack.c.l.b16 %v370
      %v674 = vunpack.c.l.b16 %v371
      %v675 = vunpack.c.l.b16 %v372
      %v676 = vunpack.c.l.b16 %v373
      %v677 = vunpack.c.l.b16 %v374
      %v678 = vunpack.c.l.b16 %v375
      %v679 = vunpack.c.l.b16 %v376
      %v680 = vunpack.c.l.b16 %v377
      %v681 = vunpack.c.l.b16 %v378
      %v682 = vunpack.c.l.b16 %v379
      %v683 = vunpack.c.l.b16 %v380
      %v684 = vunpack.c.l.b16 %v381
      %v685 = vunpack.c.l.b16 %v382
      %v686 = vunpack.c.l.b16 %v383
      %v687 = vunpack.c.l.b16 %v384
      %v688 = vunpack.c.l.b16 %v385
      %v689 = vunpack.c.l.b16 %v386
      %v690 = vunpack.c.l.b16 %v387
      %v691 = vunpack.c.l.b16 %v388
      %v692 = vunpack.c.l.b16 %v389
      %v693 = vunpack.c.l.b16 %v390
      %v694 = vunpack.c.l.b16 %v391
      %v695 = vunpack.c.l.b16 %v392
      %v696 = vunpack.c.l.b16 %v393
      %v697 = vunpack.c.l.b16 %v394
      %v698 = vunpack.c.l.b16 %v395
      %v699 = vpack.c.b16 %v572, %v571
      %v700 = vpack.c.b16 %v574, %v573
      %v701 = vpack.c.b16 %v576, %v575
      %v702 = vpack.c.b16 %v578, %v577
      %v703 = vpack.c.b16 %v580, %v579
      %v704 = vpack.c.b16 %v582, %v581
      %v705 = vpack.c.b16 %v584, %v583
      %v706 = vpack.c.b16 %v586, %v585
      %v707 = vpack.c.b16 %v588, %v587
      %v708 = vpack.c.b16 %v590, %v589
      %v709 = vpack.c.b16 %v592, %v591
      %v710 = vpack.c.b16 %v594, %v593
      %v711 = vpack.c.b16 %v596, %v595
      %v712 = vpack.c.b16 %v598, %v597
      %v713 = vpack.c.b16 %v600, %v599
      %v714 = vpack.c.b16 %v602, %v601
      %v715 = vpack.c.b16 %v604, %v603
      %v716 = vpack.c.b16 %v606, %v605
      %v717 = vpack.c.b16 %v608, %v607
      %v718 = vpack.c.b16 %v610, %v609
      %v719 = vpack.c.b16 %v612, %v611
      %v720 = vpack.c.b16 %v614, %v613
      %v721 = vpack.c.b16 %v616, %v615
      %v722 = vpack.c.b16 %v618, %v617
      %v723 = vpack.c.b16 %v620, %v619
      %v724 = vpack.c.b16 %v622, %v621
      %v725 = vpack.c.b16 %v624, %v623
      %v726 = vpack.c.b16 %v626, %v625
      %v727 = vpack.c.b16 %v628, %v627
      %v728 = vpack.c.b16 %v630, %v629
      %v729 = vpack.c.b16 %v632, %v631
      %v730 = vpack.c.b16 %v634, %v633
      %v731 = vpack.c.b16 %v636, %v635
      %v732 = vpack.c.b16 %v638, %v637
      %v733 = vpack.c.b16 %v640, %v639
      %v734 = vpack.c.b16 %v642, %v641
      %v735 = vpack.c.b16 %v644, %v643
      %v736 = vpack.c.b16 %v646, %v645
      %v737 = vpack.c.b16 %v648, %v647
      %v738 = vpack.c.b16 %v650, %v649
      %v739 = vpack.c.b16 %v652, %v651
      %v740 = vpack.c.b16 %v654, %v653
      %v741 = vpack.c.b16 %v656, %v655
      %v742 = vpack.c.b16 %v658, %v657
      %v743 = vpack.c.b16 %v660, %v659
      %v744 = vpack.c.b16 %v662, %v661
      %v745 = vpack.c.b16 %v664, %v663
      %v746 = vpack.c.b16 %v666, %v665
      %v747 = vpack.c.b16 %v668, %v667
      %v748 = vpack.c.b16 %v670, %v669
      %v749 = vpack.c.b16 %v672, %v671
      %v750 = vpack.c.b16 %v674, %v673
      %v751 = vpack.c.b16 %v676, %v675
      %v752 = vpack.c.b16 %v678, %v677
      %v753 = vpack.c.b16 %v680, %v679
      %v754 = vpack.c.b16 %v682, %v681
      %v755 = vpack.c.b16 %v684, %v683
      %v756 = vpack.c.b16 %v686, %v685
      %v757 = vpack.c.b16 %v688, %v687
      %v758 = vpack.c.b16 %v690, %v689
      %v759 = vpack.c.b16 %v692, %v691
      %v760 = vpack.c.b16 %v694, %v693
      %v761 = vpack.c.b16 %v696, %v695
      %v762 = vpack.c.b16 %v698, %v697
      %827 = vmatprep.subr.bf16.mxu0 0
      %828 = vmatpush1.bf16.msra.mxu0 %v699
      %829 = vmatprep.subr.bf16.mxu0 0
      %830 = vmatpush1.bf16.msra.mxu0 %v700
      %831 = vmatprep.subr.bf16.mxu0 0
      %832 = vmatpush1.bf16.msra.mxu0 %v701
      %833 = vmatprep.subr.bf16.mxu0 0
      %834 = vmatpush1.bf16.msra.mxu0 %v702
      %835 = vmatprep.subr.bf16.mxu0 0
      %836 = vmatpush1.bf16.msra.mxu0 %v703
      %837 = vmatprep.subr.bf16.mxu0 0
      %838 = vmatpush1.bf16.msra.mxu0 %v704
      %839 = vmatprep.subr.bf16.mxu0 0
      %840 = vmatpush1.bf16.msra.mxu0 %v705
      %841 = vmatprep.subr.bf16.mxu0 0
      %842 = vmatpush1.bf16.msra.mxu0 %v706
      %843 = vmatprep.subr.bf16.mxu0 0
      %844 = vmatpush1.bf16.msra.mxu0 %v707
      %845 = vmatprep.subr.bf16.mxu0 0
      %846 = vmatpush1.bf16.msra.mxu0 %v708
      %847 = vmatprep.subr.bf16.mxu0 0
      %848 = vmatpush1.bf16.msra.mxu0 %v709
      %849 = vmatprep.subr.bf16.mxu0 0
      %850 = vmatpush1.bf16.msra.mxu0 %v710
      %851 = vmatprep.subr.bf16.mxu0 0
      %852 = vmatpush1.bf16.msra.mxu0 %v711
      %853 = vmatprep.subr.bf16.mxu0 0
      %854 = vmatpush1.bf16.msra.mxu0 %v712
      %855 = vmatprep.subr.bf16.mxu0 0
      %856 = vmatpush1.bf16.msra.mxu0 %v713
      %857 = vmatprep.subr.bf16.mxu0 0
      %858 = vmatpush1.bf16.msra.mxu0 %v714
      %859 = vmatprep.mubr.bf16.mxu0 %v428
      %860 = vmatmul.mubr.bf16.gmra.mrb[0].mxu0 %v427
      %v861 = vpop.f32.mrb[0].mxu0
      %v862 = vadd.f32 %v401, %v861
      %v863 = vpop.f32.mrb[0].mxu0
      %v864 = vpop.f32.mrb[0].mxu0
      %v865 = vadd.f32 %v401, %v864
      %v866 = vpop.f32.mrb[0].mxu0
      %867 = vdwg.mxu0
      %868 = vmatprep.subr.bf16.mxu0 0
      %869 = vmatpush1.bf16.msra.mxu0 %v715
      %870 = vmatprep.subr.bf16.mxu0 0
      %871 = vmatpush1.bf16.msra.mxu0 %v716
      %872 = vmatprep.subr.bf16.mxu0 0
      %873 = vmatpush1.bf16.msra.mxu0 %v717
      %874 = vmatprep.subr.bf16.mxu0 0
      %875 = vmatpush1.bf16.msra.mxu0 %v718
      %876 = vmatprep.subr.bf16.mxu0 0
      %877 = vmatpush1.bf16.msra.mxu0 %v719
      %878 = vmatprep.subr.bf16.mxu0 0
      %879 = vmatpush1.bf16.msra.mxu0 %v720
      %880 = vmatprep.subr.bf16.mxu0 0
      %881 = vmatpush1.bf16.msra.mxu0 %v721
      %882 = vmatprep.subr.bf16.mxu0 0
      %883 = vmatpush1.bf16.msra.mxu0 %v722
      %884 = vmatprep.subr.bf16.mxu0 0
      %885 = vmatpush1.bf16.msra.mxu0 %v723
      %886 = vmatprep.subr.bf16.mxu0 0
      %887 = vmatpush1.bf16.msra.mxu0 %v724
      %888 = vmatprep.subr.bf16.mxu0 0
      %889 = vmatpush1.bf16.msra.mxu0 %v725
      %890 = vmatprep.subr.bf16.mxu0 0
      %891 = vmatpush1.bf16.msra.mxu0 %v726
      %892 = vmatprep.subr.bf16.mxu0 0
      %893 = vmatpush1.bf16.msra.mxu0 %v727
      %894 = vmatprep.subr.bf16.mxu0 0
      %895 = vmatpush1.bf16.msra.mxu0 %v728
      %896 = vmatprep.subr.bf16.mxu0 0
      %897 = vmatpush1.bf16.msra.mxu0 %v729
      %898 = vmatprep.subr.bf16.mxu0 0
      %899 = vmatpush1.bf16.msra.mxu0 %v730
      %900 = vmatprep.mubr.bf16.mxu0 %v430
      %901 = vmatmul.mubr.bf16.gmra.mrb[0].mxu0 %v429
      %v902 = vpop.f32.mrb[0].mxu0
      %v903 = vadd.f32 %v862, %v902
      %v904 = vpop.f32.mrb[0].mxu0
      %v905 = vpop.f32.mrb[0].mxu0
      %v906 = vadd.f32 %v865, %v905
      %v907 = vpop.f32.mrb[0].mxu0
      %908 = vdwg.mxu0
      %909 = vmatprep.subr.bf16.mxu0 0
      %910 = vmatpush1.bf16.msra.mxu0 %v731
      %911 = vmatprep.subr.bf16.mxu0 0
      %912 = vmatpush1.bf16.msra.mxu0 %v732
      %913 = vmatprep.subr.bf16.mxu0 0
      %914 = vmatpush1.bf16.msra.mxu0 %v733
      %915 = vmatprep.subr.bf16.mxu0 0
      %916 = vmatpush1.bf16.msra.mxu0 %v734
      %917 = vmatprep.subr.bf16.mxu0 0
      %918 = vmatpush1.bf16.msra.mxu0 %v735
      %919 = vmatprep.subr.bf16.mxu0 0
      %920 = vmatpush1.bf16.msra.mxu0 %v736
      %921 = vmatprep.subr.bf16.mxu0 0
      %922 = vmatpush1.bf16.msra.mxu0 %v737
      %923 = vmatprep.subr.bf16.mxu0 0
      %924 = vmatpush1.bf16.msra.mxu0 %v738
      %925 = vmatprep.subr.bf16.mxu0 0
      %926 = vmatpush1.bf16.msra.mxu0 %v739
      %927 = vmatprep.subr.bf16.mxu0 0
      %928 = vmatpush1.bf16.msra.mxu0 %v740
      %929 = vmatprep.subr.bf16.mxu0 0
      %930 = vmatpush1.bf16.msra.mxu0 %v741
      %931 = vmatprep.subr.bf16.mxu0 0
      %932 = vmatpush1.bf16.msra.mxu0 %v742
      %933 = vmatprep.subr.bf16.mxu0 0
      %934 = vmatpush1.bf16.msra.mxu0 %v743
      %935 = vmatprep.subr.bf16.mxu0 0
      %936 = vmatpush1.bf16.msra.mxu0 %v744
      %937 = vmatprep.subr.bf16.mxu0 0
      %938 = vmatpush1.bf16.msra.mxu0 %v745
      %939 = vmatprep.subr.bf16.mxu0 0
      %940 = vmatpush1.bf16.msra.mxu0 %v746
      %941 = vmatprep.mubr.bf16.mxu0 %v432
      %942 = vmatmul.mubr.bf16.gmra.mrb[0].mxu0 %v431
      %v943 = vpop.f32.mrb[0].mxu0
      %v944 = vadd.f32 %v903, %v943
      %v945 = vpop.f32.mrb[0].mxu0
      %v946 = vpop.f32.mrb[0].mxu0
      %v947 = vadd.f32 %v906, %v946
      %v948 = vpop.f32.mrb[0].mxu0
      %949 = vdwg.mxu0
      %950 = vmatprep.subr.bf16.mxu0 0
      %951 = vmatpush1.bf16.msra.mxu0 %v747
      %952 = vmatprep.subr.bf16.mxu0 0
      %953 = vmatpush1.bf16.msra.mxu0 %v748
      %954 = vmatprep.subr.bf16.mxu0 0
      %955 = vmatpush1.bf16.msra.mxu0 %v749
      %956 = vmatprep.subr.bf16.mxu0 0
      %957 = vmatpush1.bf16.msra.mxu0 %v750
      %958 = vmatprep.subr.bf16.mxu0 0
      %959 = vmatpush1.bf16.msra.mxu0 %v751
      %960 = vmatprep.subr.bf16.mxu0 0
      %961 = vmatpush1.bf16.msra.mxu0 %v752
      %962 = vmatprep.subr.bf16.mxu0 0
      %963 = vmatpush1.bf16.msra.mxu0 %v753
      %964 = vmatprep.subr.bf16.mxu0 0
      %965 = vmatpush1.bf16.msra.mxu0 %v754
      %966 = vmatprep.subr.bf16.mxu0 0
      %967 = vmatpush1.bf16.msra.mxu0 %v755
      %968 = vmatprep.subr.bf16.mxu0 0
      %969 = vmatpush1.bf16.msra.mxu0 %v756
      %970 = vmatprep.subr.bf16.mxu0 0
      %971 = vmatpush1.bf16.msra.mxu0 %v757
      %972 = vmatprep.subr.bf16.mxu0 0
      %973 = vmatpush1.bf16.msra.mxu0 %v758
      %974 = vmatprep.subr.bf16.mxu0 0
      %975 = vmatpush1.bf16.msra.mxu0 %v759
      %976 = vmatprep.subr.bf16.mxu0 0
      %977 = vmatpush1.bf16.msra.mxu0 %v760
      %978 = vmatprep.subr.bf16.mxu0 0
      %979 = vmatpush1.bf16.msra.mxu0 %v761
      %980 = vmatprep.subr.bf16.mxu0 0
      %981 = vmatpush1.bf16.msra.mxu0 %v762
      %982 = vmatprep.mubr.bf16.mxu0 %v434
      %983 = vmatmul.mubr.bf16.gmra.mrb[0].mxu0 %v433
      %v984 = vpop.f32.mrb[0].mxu0
      %v985 = vadd.f32 %v944, %v984
      %v986 = vpop.f32.mrb[0].mxu0
      %v987 = vpop.f32.mrb[0].mxu0
      %v988 = vadd.f32 %v947, %v987
      %v989 = vpop.f32.mrb[0].mxu0
      %990 = vdwg.mxu0
      %991 = vst [vmem:[%s257] sm:$0xff] %v985
      %992 = vst [vmem:[%s257 + $0x8] sm:$0xff] %v988
      %s993 = smul.u32 2, %s21
      %p994 = scmp.lt.s32.totalorder %s19, 1
      %s995 = scalar_select %p994, %s19, 1
      %p996 = scmp.lt.s32.totalorder %s993, 1
      %s997 = scalar_select %p996, %s993, 1
      %p998 = scmp.lt.s32.totalorder %s20, 0
      %s999 = scalar_select %p998, %s20, 0
      %s1000 = sadd.s32 %s999, %s997
      %s1001 = smul.addr %s995, 2
      %s1002 = sadd.s32 %s1000, %s1001
      %s1003 = smul.addr %s1002, 8
      %s1004 = scalar_lea.vmem %s3, %s1003
      // Predicated region
      $region33: #{_lambda_.9} parent=31 // pred_check
        %p1005 = pneg %p135
      $region34: #{_lambda_.9} parent=31 // pred_check_branch
        %1007 = sbr.rel (%p1005) target = $region36
      $region35: #{_lambda_.9} parent=31 // pred_region
        %s1008 = smul.u32 2, %s21
      $region36: #{_lambda_.9} parent=31 // pred_fallthru
        _
    $region32: #{_lambda_.9} parent=5 // pred_fallthru
      _
    %p1009 = scmp.le.s32.totalorder 2, %s9
    // Predicated region
    $region37: #{_lambda_.9} parent=5 // pred_check
      %p1010 = pneg %p1009
    $region38: #{_lambda_.9} parent=5 // pred_check_branch
      %1012 = sbr.rel (%p1010) target = $region40
    $region39: #{_lambda_.9} parent=5 // pred_region
      %s1013 = ssub.s32 %s9, 2
      // Predicated region
      $region41: #{_lambda_.9} parent=39 // pred_check
        %p1014 = pneg %p141
      $region42: #{_lambda_.9} parent=39 // pred_check_branch
        %1016 = sbr.rel (%p1014) target = $region44
      $region43: #{_lambda_.9} parent=39 // pred_region
        %s1017 = smul.u32 2, %s24
        %p1018 = scmp.lt.s32.totalorder %s22, 1
        %s1019 = scalar_select %p1018, %s22, 1
        %p1020 = scmp.lt.s32.totalorder %s1017, 1
        %s1021 = scalar_select %p1020, %s1017, 1
        %p1022 = scmp.lt.s32.totalorder %s23, 0
        %s1023 = scalar_select %p1022, %s23, 0
        %s1024 = sadd.s32 %s1023, %s1021
        %s1025 = smul.addr %s1019, 2
        %s1026 = sadd.s32 %s1024, %s1025
        %s1027 = smul.addr %s1026, 8
        %s1028 = scalar_lea.vmem %s3, %s1027
      $region44: #{_lambda_.9} parent=39 // pred_fallthru
        _
    $region40: #{_lambda_.9} parent=5 // pred_fallthru
      _
  $region6: #{_lambda_.9} parent=0 // loop_footer
    %s13 = sadd.s32 1, %s9
  $region7: #{_lambda_.9} parent=0 // loop_footer_branch
    %8 = sbr.rel target = $region3
  $region8: #{_lambda_.9} parent=0 // loop_exit
    _

</llo_original>
